<compile_context>
chip_gen: v7x
topology: tpu7x:2x2x1
jax: 0.10.0
libtpu: 0.0.40
codegen_flags: <defaults>
</compile_context>

<pallas_src>
import functools

import jax
import jax.numpy as jnp
from jax.experimental import pallas as pl
from jax.experimental.pallas import tpu as pltpu


_NEG_BIG = -1e30  # finite "-inf" used to mask padded policy lanes


# -----------------------------------------------------------------------------
# Kernel: the whole rollout in one invocation (grid = (1,)).
# -----------------------------------------------------------------------------
def actor_critic_kernel(patch_ref, u_ref, hx0_ref,
                        wc_ref, bc_ref, wih_ref, bih_ref,
                        whh_ref, bhh_ref, whd_ref, bhd_ref,
                        out_ref, hxo_ref, gi_sc, h_sc,
                        *, T, Bp, hid, n_actions):
    TB = T * Bp

    # ---- Stage 1: batched, time-independent (hoisted off the recurrence) ----
    # conv4 (im2col matmul, 128-lane-padded output) + ELU, then the GRU's
    # input-to-hidden matmul for all T*Bp rows in one MXU pass.
    pre = jnp.dot(patch_ref[...], wc_ref[...],
                  preferred_element_type=jnp.float32) + bc_ref[...]       # (TB,128)
    x = jnp.where(pre > 0.0, pre, jnp.exp(jnp.minimum(pre, 0.0)) - 1.0)   # ELU, f32
    gi_sc[...] = jnp.dot(x.astype(jnp.bfloat16), wih_ref[...],
                         preferred_element_type=jnp.float32) + bih_ref[...]  # (TB,3h)

    # ---- Stage 2: serial GRU recurrence (only h-dependent work) -------------
    h = hx0_ref[...]                                                      # (Bp,hid) f32
    # Static unroll: T is a small compile-time constant.
    # TODO(synk): switch to lax.fori_loop(..., unroll=k) for long rollouts.
    for t in range(T):
        rows = pl.ds(t * Bp, Bp)
        gi = gi_sc[rows, :]                                               # (Bp, 3*hid)
        gh = jnp.dot(h.astype(jnp.bfloat16), whh_ref[...],
                     preferred_element_type=jnp.float32) + bhh_ref[...]   # (Bp, 3*hid)
        r = jax.nn.sigmoid(gi[:, :hid] + gh[:, :hid])
        z = jax.nn.sigmoid(gi[:, hid:2 * hid] + gh[:, hid:2 * hid])
        n = jnp.tanh(gi[:, 2 * hid:] + r * gh[:, 2 * hid:])
        h = (1.0 - z) * n + z * h
        h_sc[rows, :] = h
    hxo_ref[...] = h

    # ---- Stage 3: batched epilogue (head, softmax, sample, lane-dense pack) -
    head = jnp.dot(h_sc[...].astype(jnp.bfloat16), whd_ref[...],
                   preferred_element_type=jnp.float32) + bhd_ref[...]     # (TB,128)
    lane = jax.lax.broadcasted_iota(jnp.int32, (TB, 128), 1)
    logits = jnp.where(lane < n_actions, head, _NEG_BIG)

    m = jnp.max(logits, axis=-1, keepdims=True)
    e = jnp.exp(logits - m)                        # exactly 0 on padded lanes
    s = jnp.sum(e, axis=-1, keepdims=True)
    logp_all = (logits - m) - jnp.log(s)

    # Inverse-CDF sample without normalization: cumsum(probs)[j] <= u is
    # equivalent to prefix(e)[j] <= u * s, so no divide / reciprocal is needed.
    thresh = u_ref[...] * s                                               # (TB,1)
    cnt = jnp.zeros_like(s)
    for j in range(n_actions):
        cdf_j = jnp.sum(jnp.where(lane <= j, e, 0.0), axis=-1, keepdims=True)
        cnt = cnt + jnp.where(cdf_j <= thresh, 1.0, 0.0)
    act_f = jnp.minimum(cnt, float(n_actions - 1))                        # (TB,1) f32
    act_i = act_f.astype(jnp.int32)

    # gathers as masked lane reductions
    logp = jnp.sum(jnp.where(lane == act_i, logp_all, 0.0),
                   axis=-1, keepdims=True)                                # (TB,1)
    v = jnp.sum(jnp.where(lane == n_actions, head, 0.0),
                axis=-1, keepdims=True)                                   # (TB,1)

    # lane-dense packed output: [action | v | logp | 0 ...]
    out_ref[...] = jnp.where(lane == 0, act_f,
                   jnp.where(lane == 1, v,
                   jnp.where(lane == 2, logp, 0.0)))


# -----------------------------------------------------------------------------
# Parameter packing (host side): bf16 split weights, f32 biases.
# -----------------------------------------------------------------------------
def pack_params(raw, *, hid, n_actions):
    f32, bf16 = jnp.float32, jnp.bfloat16
    A = n_actions
    K = raw["w_conv"].shape[0]            # 288 = 32 * 3 * 3
    co = raw["w_conv"].shape[1]           # 32 conv output channels

    w_conv = jnp.zeros((K, 128), f32).at[:, :co].set(raw["w_conv"])
    b_conv = jnp.zeros((1, 128), f32).at[0, :co].set(raw["b_conv"])

    # Split GRU weights (no block-diagonal zero padding streamed through MXU).
    w_ih = jnp.zeros((128, 3 * hid), f32).at[:co, :].set(raw["w_ih"])
    b_ih = raw["b_ih"][None, :].astype(f32)
    w_hh = raw["w_hh"].astype(f32)
    b_hh = raw["b_hh"][None, :].astype(f32)

    # Fused pi|v head: pi in lanes 0..A-1, v in lane A, rest zero.
    w_head = jnp.zeros((hid, 128), f32)
    w_head = w_head.at[:, :A].set(raw["w_pi"]).at[:, A].set(raw["w_v"][:, 0])
    b_head = (jnp.zeros((1, 128), f32)
              .at[0, :A].set(raw["b_pi"]).at[0, A].set(raw["b_v"][0]))

    return {"w_conv": w_conv.astype(bf16), "b_conv": b_conv,
            "w_ih": w_ih.astype(bf16), "b_ih": b_ih,
            "w_hh": w_hh.astype(bf16), "b_hh": b_hh,
            "w_head": w_head.astype(bf16), "b_head": b_head}


# -----------------------------------------------------------------------------
# Wrapper: im2col + batch padding + one pallas_call for the whole rollout.
# -----------------------------------------------------------------------------
def actor_critic_rollout(pp, states, hx, u, *, n_actions, hid):
    T, B, C, H, W = states.shape
    K = C * 9
    # im2col for conv4: kernel 3, stride 2, pad 1.
    xp = jnp.pad(states, ((0, 0), (0, 0), (0, 0), (1, 1), (1, 1)))
    Ho = (H + 2 - 3) // 2 + 1
    Wo = (W + 2 - 3) // 2 + 1
    assert Ho == 1 and Wo == 1, "module semantics require a 1x1 conv4 output"
    patches = xp[:, :, :, 0:3, 0:3].reshape(T, B, K)

    Bp = max(8, ((B + 7) // 8) * 8)                    # fill f32 sublanes
    TB = T * Bp
    patches_flat = (jnp.zeros((T, Bp, K), jnp.float32)
                    .at[:, :B].set(patches).reshape(TB, K).astype(jnp.bfloat16))
    u_flat = (jnp.zeros((T, Bp, 1), jnp.float32)
              .at[:, :B].set(u).reshape(TB, 1))
    hx_p = jnp.zeros((Bp, hid), jnp.float32).at[:B].set(hx)

    flops = 2 * TB * (K * 128 + 128 * 3 * hid + hid * 3 * hid + hid * 128)
    transcend = TB * (2 * 128 + 3 * hid + 1)
    bytes_acc = int(
        2 * patches_flat.size + 4 * u_flat.size + 4 * hx_p.size
        + 2 * (pp["w_conv"].size + pp["w_ih"].size
               + pp["w_hh"].size + pp["w_head"].size)
        + 4 * (pp["b_conv"].size + pp["b_ih"].size
               + pp["b_hh"].size + pp["b_head"].size)
        + 4 * (TB * 128 + Bp * hid))

    grid_spec = pltpu.PrefetchScalarGridSpec(
        num_scalar_prefetch=0,
        grid=(1,),
        in_specs=[
            pl.BlockSpec((TB, K), lambda i: (0, 0)),          # im2col patches
            pl.BlockSpec((TB, 1), lambda i: (0, 0)),          # sampling uniforms
            pl.BlockSpec((Bp, hid), lambda i: (0, 0)),        # initial hidden
            pl.BlockSpec(pp["w_conv"].shape, lambda i: (0, 0)),
            pl.BlockSpec(pp["b_conv"].shape, lambda i: (0, 0)),
            pl.BlockSpec(pp["w_ih"].shape, lambda i: (0, 0)),
            pl.BlockSpec(pp["b_ih"].shape, lambda i: (0, 0)),
            pl.BlockSpec(pp["w_hh"].shape, lambda i: (0, 0)),
            pl.BlockSpec(pp["b_hh"].shape, lambda i: (0, 0)),
            pl.BlockSpec(pp["w_head"].shape, lambda i: (0, 0)),
            pl.BlockSpec(pp["b_head"].shape, lambda i: (0, 0)),
        ],
        out_specs=(
            pl.BlockSpec((TB, 128), lambda i: (0, 0)),        # packed action|v|logp
            pl.BlockSpec((Bp, hid), lambda i: (0, 0)),        # final hidden state
        ),
        scratch_shapes=[
            pltpu.VMEM((TB, 3 * hid), jnp.float32),           # gi = x @ W_ih (+b)
            pltpu.VMEM((TB, hid), jnp.float32),               # h_t for all steps
        ],
    )

    out_slab, hx_out = pl.pallas_call(
        functools.partial(actor_critic_kernel,
                          T=T, Bp=Bp, hid=hid, n_actions=n_actions),
        out_shape=(jax.ShapeDtypeStruct((TB, 128), jnp.float32),
                   jax.ShapeDtypeStruct((Bp, hid), jnp.float32)),
        grid_spec=grid_spec,
        compiler_params=pltpu.CompilerParams(
            dimension_semantics=("arbitrary",)),
        cost_estimate=pl.CostEstimate(flops=int(flops),
                                      transcendentals=int(transcend),
                                      bytes_accessed=bytes_acc),
    )(patches_flat, u_flat, hx_p,
      pp["w_conv"], pp["b_conv"], pp["w_ih"], pp["b_ih"],
      pp["w_hh"], pp["b_hh"], pp["w_head"], pp["b_head"])

    out3 = out_slab.reshape(T, Bp, 128)
    action = out3[:, :B, 0].astype(jnp.int32)          # (T, B)
    v = out3[:, :B, 1]                                  # (T, B)
    log_prob = out3[:, :B, 2]                           # (T, B)
    return action, v, log_prob, hx_out[:B]


def actor_critic_forward(pp, state, hx, u, *, n_actions, hid):
    # Mirrors the PyTorch forward(state, hx) -> (action.numpy()[0], v, log_prob, hx);
    # `u` supplies the sampling randomness (replaces Categorical's internal RNG).
    action, v, log_prob, hx_new = actor_critic_rollout(
        pp, state[None], hx, u[None], n_actions=n_actions, hid=hid)
    return action[0, 0], v[0][:, None], log_prob[0], hx_new


# -----------------------------------------------------------------------------
# Pure-JAX reference (same packed params / same math) for correctness checks.
# -----------------------------------------------------------------------------
def reference_rollout(pp, patches, hx, u, *, n_actions, hid):
    bf16 = jnp.bfloat16
    A = n_actions
    h = hx
    acts, vs, lps = [], [], []
    for t in range(patches.shape[0]):
        p = patches[t].astype(bf16)
        pre = jnp.dot(p, pp["w_conv"],
                      preferred_element_type=jnp.float32) + pp["b_conv"]
        x = jnp.where(pre > 0.0, pre, jnp.expm1(jnp.minimum(pre, 0.0)))
        gi = jnp.dot(x.astype(bf16), pp["w_ih"],
                     preferred_element_type=jnp.float32) + pp["b_ih"]
        gh = jnp.dot(h.astype(bf16), pp["w_hh"],
                     preferred_element_type=jnp.float32) + pp["b_hh"]
        r = jax.nn.sigmoid(gi[:, :hid] + gh[:, :hid])
        z = jax.nn.sigmoid(gi[:, hid:2 * hid] + gh[:, hid:2 * hid])
        n = jnp.tanh(gi[:, 2 * hid:] + r * gh[:, 2 * hid:])
        h = (1.0 - z) * n + z * h
        head = jnp.dot(h.astype(bf16), pp["w_head"],
                       preferred_element_type=jnp.float32) + pp["b_head"]
        pi = head[:, :A]
        v = head[:, A]
        probs = jax.nn.softmax(pi, axis=-1)
        logp_all = jax.nn.log_softmax(pi, axis=-1)
        cdf = jnp.cumsum(probs, axis=-1)
        action = jnp.minimum(
            jnp.sum((cdf <= u[t]).astype(jnp.int32), axis=-1), A - 1)
        lp = jnp.take_along_axis(logp_all, action[:, None], axis=1)[:, 0]
        acts.append(action); vs.append(v); lps.append(lp)
    return jnp.stack(acts), jnp.stack(vs), jnp.stack(lps), h


def init_raw_params(key, *, c_in=32, hid=256, n_actions=6):
    # Math-layout params (already transposed relative to torch's (out, in)).
    ks = jax.random.split(key, 8)
    s = 0.05
    f32 = jnp.float32
    K = c_in * 9
    return {
        "w_conv": s * jax.random.normal(ks[0], (K, 32), f32),
        "b_conv": s * jax.random.normal(ks[1], (32,), f32),
        "w_ih": s * jax.random.normal(ks[2], (32, 3 * hid), f32),
        "b_ih": s * jax.random.normal(ks[3], (3 * hid,), f32),
        "w_hh": s * jax.random.normal(ks[4], (hid, 3 * hid), f32),
        "b_hh": s * jax.random.normal(ks[5], (3 * hid,), f32),
        "w_pi": s * jax.random.normal(ks[6], (hid, n_actions), f32),
        "b_pi": jnp.zeros((n_actions,), f32),
        "w_v": s * jax.random.normal(ks[7], (hid, 1), f32),
        "b_v": jnp.zeros((1,), f32),
    }


if __name__ == "__main__":
    key = jax.random.PRNGKey(0)
    k_param, k_state, k_hx, k_u = jax.random.split(key, 4)

    T, B, C, H, W = 6, 2, 32, 2, 2        # input_dims = (32, 2, 2); see note above
    HID, A = 256, 6

    raw = init_raw_params(k_param, c_in=C, hid=HID, n_actions=A)
    pp = pack_params(raw, hid=HID, n_actions=A)

    states = jax.random.normal(k_state, (T, B, C, H, W), jnp.float32)
    hx = jax.random.normal(k_hx, (B, HID), jnp.float32)
    u = jax.random.uniform(k_u, (T, B, 1), jnp.float32)   # sampling randomness

    action, v, logp, hx_new = jax.block_until_ready(
        actor_critic_rollout(pp, states, hx, u, n_actions=A, hid=HID))

    # ---- correctness check against a pure-JAX reference --------------------
    xp = jnp.pad(states, ((0, 0), (0, 0), (0, 0), (1, 1), (1, 1)))
    patches = xp[:, :, :, 0:3, 0:3].reshape(T, B, C * 9)
    ra, rv, rlp, rh = reference_rollout(pp, patches, hx, u,
                                        n_actions=A, hid=HID)

    assert jnp.all(action == ra), (action, ra)
    assert jnp.allclose(v, rv, atol=1e-4, rtol=1e-4)
    assert jnp.allclose(logp, rlp, atol=1e-4, rtol=1e-4)
    assert jnp.allclose(hx_new, rh, atol=1e-4, rtol=1e-4)

    # ---- single-step, module-style call (T = 1 path) -----------------------
    a0, v0, lp0, hx1 = jax.block_until_ready(
        actor_critic_forward(pp, states[0], hx, u[0], n_actions=A, hid=HID))
    assert int(a0) == int(ra[0, 0])
    assert jnp.allclose(v0[:, 0], rv[0], atol=1e-4, rtol=1e-4)

    print("KERNEL_OK")
</pallas_src>

<mosaic_0001>
module attributes {stable_mosaic.version = 11 : i64} {
  func.func @actor_critic_kernel(%arg0: i32, %arg1: memref<48x288xbf16, #tpu.memory_space<vmem>>, %arg2: memref<48x1xf32, #tpu.memory_space<vmem>>, %arg3: memref<8x256xf32, #tpu.memory_space<vmem>>, %arg4: memref<288x128xbf16, #tpu.memory_space<vmem>>, %arg5: memref<1x128xf32, #tpu.memory_space<vmem>>, %arg6: memref<128x768xbf16, #tpu.memory_space<vmem>>, %arg7: memref<1x768xf32, #tpu.memory_space<vmem>>, %arg8: memref<256x768xbf16, #tpu.memory_space<vmem>>, %arg9: memref<1x768xf32, #tpu.memory_space<vmem>>, %arg10: memref<256x128xbf16, #tpu.memory_space<vmem>>, %arg11: memref<1x128xf32, #tpu.memory_space<vmem>>, %arg12: memref<48x128xf32, #tpu.memory_space<vmem>>, %arg13: memref<8x256xf32, #tpu.memory_space<vmem>>, %arg14: memref<48x768xf32, #tpu.memory_space<vmem>>, %arg15: memref<48x256xf32, #tpu.memory_space<vmem>>) attributes {dimension_semantics = [#tpu.dimension_semantics<arbitrary>], iteration_bounds = array<i64: 1>, scalar_prefetch = 0 : i64, scratch_operands = 2 : i64, tpu.core_type = #tpu.core_type<tc>, window_params = [{pipeline_mode = #tpu.pipeline_mode<synchronous>, transform_indices = @transform_0, window_bounds = array<i64: 48, 288>}, {pipeline_mode = #tpu.pipeline_mode<synchronous>, transform_indices = @transform_1, window_bounds = array<i64: 48, 1>}, {pipeline_mode = #tpu.pipeline_mode<synchronous>, transform_indices = @transform_2, window_bounds = array<i64: 8, 256>}, {pipeline_mode = #tpu.pipeline_mode<synchronous>, transform_indices = @transform_3, window_bounds = array<i64: 288, 128>}, {pipeline_mode = #tpu.pipeline_mode<synchronous>, transform_indices = @transform_4, window_bounds = array<i64: 1, 128>}, {pipeline_mode = #tpu.pipeline_mode<synchronous>, transform_indices = @transform_5, window_bounds = array<i64: 128, 768>}, {pipeline_mode = #tpu.pipeline_mode<synchronous>, transform_indices = @transform_6, window_bounds = array<i64: 1, 768>}, {pipeline_mode = #tpu.pipeline_mode<synchronous>, transform_indices = @transform_7, window_bounds = array<i64: 256, 768>}, {pipeline_mode = #tpu.pipeline_mode<synchronous>, transform_indices = @transform_8, window_bounds = array<i64: 1, 768>}, {pipeline_mode = #tpu.pipeline_mode<synchronous>, transform_indices = @transform_9, window_bounds = array<i64: 256, 128>}, {pipeline_mode = #tpu.pipeline_mode<synchronous>, transform_indices = @transform_10, window_bounds = array<i64: 1, 128>}, {pipeline_mode = #tpu.pipeline_mode<synchronous>, transform_indices = @transform_11, window_bounds = array<i64: 48, 128>}, {pipeline_mode = #tpu.pipeline_mode<synchronous>, transform_indices = @transform_12, window_bounds = array<i64: 8, 256>}]} {
    %c0 = arith.constant 0 : index
    %c0_0 = arith.constant 0 : index
    %0 = vector.load %arg1[%c0, %c0_0] : memref<48x288xbf16, #tpu.memory_space<vmem>>, vector<48x288xbf16>
    %c0_1 = arith.constant 0 : index
    %c0_2 = arith.constant 0 : index
    %1 = vector.load %arg4[%c0_1, %c0_2] : memref<288x128xbf16, #tpu.memory_space<vmem>>, vector<288x128xbf16>
    %cst = arith.constant dense<0.000000e+00> : vector<48x128xf32>
    %2 = tpu.matmul %0, %1, %cst {dimension_numbers = #tpu.dot_dimension_numbers<[1], [0], [0], [1], [0, 0, 1, 1], [], []>} : vector<48x288xbf16>, vector<288x128xbf16>, vector<48x128xf32> -> vector<48x128xf32>
    %c0_3 = arith.constant 0 : index
    %c0_4 = arith.constant 0 : index
    %3 = vector.load %arg5[%c0_3, %c0_4] : memref<1x128xf32, #tpu.memory_space<vmem>>, vector<1x128xf32>
    %4 = vector.broadcast %3 : vector<1x128xf32> to vector<48x128xf32>
    %5 = arith.addf %2, %4 : vector<48x128xf32>
    %cst_5 = arith.constant 0.000000e+00 : f32
    %6 = vector.broadcast %cst_5 : f32 to vector<48x128xf32>
    %7 = arith.cmpf ogt, %5, %6 : vector<48x128xf32>
    %cst_6 = arith.constant 0.000000e+00 : f32
    %8 = vector.broadcast %cst_6 : f32 to vector<48x128xf32>
    %9 = arith.minimumf %5, %8 : vector<48x128xf32>
    %10 = math.exp %9 : vector<48x128xf32>
    %cst_7 = arith.constant 1.000000e+00 : f32
    %11 = vector.broadcast %cst_7 : f32 to vector<48x128xf32>
    %12 = arith.subf %10, %11 : vector<48x128xf32>
    %13 = arith.select %7, %5, %12 : vector<48x128xi1>, vector<48x128xf32>
    %14 = arith.truncf %13 : vector<48x128xf32> to vector<48x128xbf16>
    %c0_8 = arith.constant 0 : index
    %c0_9 = arith.constant 0 : index
    %15 = vector.load %arg6[%c0_8, %c0_9] : memref<128x768xbf16, #tpu.memory_space<vmem>>, vector<128x768xbf16>
    %cst_10 = arith.constant dense<0.000000e+00> : vector<48x768xf32>
    %16 = tpu.matmul %14, %15, %cst_10 {dimension_numbers = #tpu.dot_dimension_numbers<[1], [0], [0], [1], [0, 0, 1, 1], [], []>} : vector<48x128xbf16>, vector<128x768xbf16>, vector<48x768xf32> -> vector<48x768xf32>
    %c0_11 = arith.constant 0 : index
    %c0_12 = arith.constant 0 : index
    %17 = vector.load %arg7[%c0_11, %c0_12] : memref<1x768xf32, #tpu.memory_space<vmem>>, vector<1x768xf32>
    %18 = vector.broadcast %17 : vector<1x768xf32> to vector<48x768xf32>
    %19 = arith.addf %16, %18 : vector<48x768xf32>
    %c0_13 = arith.constant 0 : index
    %c0_14 = arith.constant 0 : index
    %20 = vector.load %arg14[%c0_13, %c0_14] : memref<48x768xf32, #tpu.memory_space<vmem>>, vector<48x768xf32>
    tpu.vector_store %arg14[%c0_13, %c0_14], %19 {strides = array<i32>} : memref<48x768xf32, #tpu.memory_space<vmem>>, vector<48x768xf32>,
    %c0_15 = arith.constant 0 : index
    %c0_16 = arith.constant 0 : index
    %21 = vector.load %arg3[%c0_15, %c0_16] : memref<8x256xf32, #tpu.memory_space<vmem>>, vector<8x256xf32>
    %c0_17 = arith.constant 0 : index
    %c0_18 = arith.constant 0 : index
    %22 = vector.load %arg14[%c0_17, %c0_18] : memref<48x768xf32, #tpu.memory_space<vmem>>, vector<8x768xf32>
    %23 = arith.truncf %21 : vector<8x256xf32> to vector<8x256xbf16>
    %c0_19 = arith.constant 0 : index
    %c0_20 = arith.constant 0 : index
    %24 = vector.load %arg8[%c0_19, %c0_20] : memref<256x768xbf16, #tpu.memory_space<vmem>>, vector<256x768xbf16>
    %cst_21 = arith.constant dense<0.000000e+00> : vector<8x768xf32>
    %25 = tpu.matmul %23, %24, %cst_21 {dimension_numbers = #tpu.dot_dimension_numbers<[1], [0], [0], [1], [0, 0, 1, 1], [], []>} : vector<8x256xbf16>, vector<256x768xbf16>, vector<8x768xf32> -> vector<8x768xf32>
    %c0_22 = arith.constant 0 : index
    %c0_23 = arith.constant 0 : index
    %26 = vector.load %arg9[%c0_22, %c0_23] : memref<1x768xf32, #tpu.memory_space<vmem>>, vector<1x768xf32>
    %27 = vector.broadcast %26 : vector<1x768xf32> to vector<8x768xf32>
    %28 = arith.addf %25, %27 : vector<8x768xf32>
    %29 = vector.extract_strided_slice %22 {offsets = [0, 0], sizes = [8, 256], strides = [1, 1]} : vector<8x768xf32> to vector<8x256xf32>
    %30 = vector.extract_strided_slice %28 {offsets = [0, 0], sizes = [8, 256], strides = [1, 1]} : vector<8x768xf32> to vector<8x256xf32>
    %31 = arith.addf %29, %30 : vector<8x256xf32>
    %32 = arith.negf %31 : vector<8x256xf32>
    %33 = math.exp %32 : vector<8x256xf32>
    %cst_24 = arith.constant 1.000000e+00 : f32
    %34 = vector.broadcast %cst_24 : f32 to vector<8x256xf32>
    %35 = arith.addf %34, %33 : vector<8x256xf32>
    %36 = arith.divf %34, %35 : vector<8x256xf32>
    %37 = vector.extract_strided_slice %22 {offsets = [0, 256], sizes = [8, 256], strides = [1, 1]} : vector<8x768xf32> to vector<8x256xf32>
    %38 = vector.extract_strided_slice %28 {offsets = [0, 256], sizes = [8, 256], strides = [1, 1]} : vector<8x768xf32> to vector<8x256xf32>
    %39 = arith.addf %37, %38 : vector<8x256xf32>
    %40 = arith.negf %39 : vector<8x256xf32>
    %41 = math.exp %40 : vector<8x256xf32>
    %cst_25 = arith.constant 1.000000e+00 : f32
    %42 = vector.broadcast %cst_25 : f32 to vector<8x256xf32>
    %43 = arith.addf %42, %41 : vector<8x256xf32>
    %44 = arith.divf %42, %43 : vector<8x256xf32>
    %45 = vector.extract_strided_slice %22 {offsets = [0, 512], sizes = [8, 256], strides = [1, 1]} : vector<8x768xf32> to vector<8x256xf32>
    %46 = vector.extract_strided_slice %28 {offsets = [0, 512], sizes = [8, 256], strides = [1, 1]} : vector<8x768xf32> to vector<8x256xf32>
    %47 = arith.mulf %36, %46 : vector<8x256xf32>
    %48 = arith.addf %45, %47 : vector<8x256xf32>
    %49 = math.tanh %48 : vector<8x256xf32>
    %cst_26 = arith.constant 1.000000e+00 : f32
    %50 = vector.broadcast %cst_26 : f32 to vector<8x256xf32>
    %51 = arith.subf %50, %44 : vector<8x256xf32>
    %52 = arith.mulf %51, %49 : vector<8x256xf32>
    %53 = arith.mulf %44, %21 : vector<8x256xf32>
    %54 = arith.addf %52, %53 : vector<8x256xf32>
    %c0_27 = arith.constant 0 : index
    %c0_28 = arith.constant 0 : index
    %55 = vector.load %arg15[%c0_27, %c0_28] : memref<48x256xf32, #tpu.memory_space<vmem>>, vector<8x256xf32>
    tpu.vector_store %arg15[%c0_27, %c0_28], %54 {strides = array<i32>} : memref<48x256xf32, #tpu.memory_space<vmem>>, vector<8x256xf32>,
    %c8 = arith.constant 8 : index
    %c0_29 = arith.constant 0 : index
    %56 = vector.load %arg14[%c8, %c0_29] : memref<48x768xf32, #tpu.memory_space<vmem>>, vector<8x768xf32>
    %57 = arith.truncf %54 : vector<8x256xf32> to vector<8x256xbf16>
    %c0_30 = arith.constant 0 : index
    %c0_31 = arith.constant 0 : index
    %58 = vector.load %arg8[%c0_30, %c0_31] : memref<256x768xbf16, #tpu.memory_space<vmem>>, vector<256x768xbf16>
    %cst_32 = arith.constant dense<0.000000e+00> : vector<8x768xf32>
    %59 = tpu.matmul %57, %58, %cst_32 {dimension_numbers = #tpu.dot_dimension_numbers<[1], [0], [0], [1], [0, 0, 1, 1], [], []>} : vector<8x256xbf16>, vector<256x768xbf16>, vector<8x768xf32> -> vector<8x768xf32>
    %c0_33 = arith.constant 0 : index
    %c0_34 = arith.constant 0 : index
    %60 = vector.load %arg9[%c0_33, %c0_34] : memref<1x768xf32, #tpu.memory_space<vmem>>, vector<1x768xf32>
    %61 = vector.broadcast %60 : vector<1x768xf32> to vector<8x768xf32>
    %62 = arith.addf %59, %61 : vector<8x768xf32>
    %63 = vector.extract_strided_slice %56 {offsets = [0, 0], sizes = [8, 256], strides = [1, 1]} : vector<8x768xf32> to vector<8x256xf32>
    %64 = vector.extract_strided_slice %62 {offsets = [0, 0], sizes = [8, 256], strides = [1, 1]} : vector<8x768xf32> to vector<8x256xf32>
    %65 = arith.addf %63, %64 : vector<8x256xf32>
    %66 = arith.negf %65 : vector<8x256xf32>
    %67 = math.exp %66 : vector<8x256xf32>
    %cst_35 = arith.constant 1.000000e+00 : f32
    %68 = vector.broadcast %cst_35 : f32 to vector<8x256xf32>
    %69 = arith.addf %68, %67 : vector<8x256xf32>
    %70 = arith.divf %68, %69 : vector<8x256xf32>
    %71 = vector.extract_strided_slice %56 {offsets = [0, 256], sizes = [8, 256], strides = [1, 1]} : vector<8x768xf32> to vector<8x256xf32>
    %72 = vector.extract_strided_slice %62 {offsets = [0, 256], sizes = [8, 256], strides = [1, 1]} : vector<8x768xf32> to vector<8x256xf32>
    %73 = arith.addf %71, %72 : vector<8x256xf32>
    %74 = arith.negf %73 : vector<8x256xf32>
    %75 = math.exp %74 : vector<8x256xf32>
    %cst_36 = arith.constant 1.000000e+00 : f32
    %76 = vector.broadcast %cst_36 : f32 to vector<8x256xf32>
    %77 = arith.addf %76, %75 : vector<8x256xf32>
    %78 = arith.divf %76, %77 : vector<8x256xf32>
    %79 = vector.extract_strided_slice %56 {offsets = [0, 512], sizes = [8, 256], strides = [1, 1]} : vector<8x768xf32> to vector<8x256xf32>
    %80 = vector.extract_strided_slice %62 {offsets = [0, 512], sizes = [8, 256], strides = [1, 1]} : vector<8x768xf32> to vector<8x256xf32>
    %81 = arith.mulf %70, %80 : vector<8x256xf32>
    %82 = arith.addf %79, %81 : vector<8x256xf32>
    %83 = math.tanh %82 : vector<8x256xf32>
    %cst_37 = arith.constant 1.000000e+00 : f32
    %84 = vector.broadcast %cst_37 : f32 to vector<8x256xf32>
    %85 = arith.subf %84, %78 : vector<8x256xf32>
    %86 = arith.mulf %85, %83 : vector<8x256xf32>
    %87 = arith.mulf %78, %54 : vector<8x256xf32>
    %88 = arith.addf %86, %87 : vector<8x256xf32>
    %c8_38 = arith.constant 8 : index
    %c0_39 = arith.constant 0 : index
    %89 = vector.load %arg15[%c8_38, %c0_39] : memref<48x256xf32, #tpu.memory_space<vmem>>, vector<8x256xf32>
    tpu.vector_store %arg15[%c8_38, %c0_39], %88 {strides = array<i32>} : memref<48x256xf32, #tpu.memory_space<vmem>>, vector<8x256xf32>,
    %c16 = arith.constant 16 : index
    %c0_40 = arith.constant 0 : index
    %90 = vector.load %arg14[%c16, %c0_40] : memref<48x768xf32, #tpu.memory_space<vmem>>, vector<8x768xf32>
    %91 = arith.truncf %88 : vector<8x256xf32> to vector<8x256xbf16>
    %c0_41 = arith.constant 0 : index
    %c0_42 = arith.constant 0 : index
    %92 = vector.load %arg8[%c0_41, %c0_42] : memref<256x768xbf16, #tpu.memory_space<vmem>>, vector<256x768xbf16>
    %cst_43 = arith.constant dense<0.000000e+00> : vector<8x768xf32>
    %93 = tpu.matmul %91, %92, %cst_43 {dimension_numbers = #tpu.dot_dimension_numbers<[1], [0], [0], [1], [0, 0, 1, 1], [], []>} : vector<8x256xbf16>, vector<256x768xbf16>, vector<8x768xf32> -> vector<8x768xf32>
    %c0_44 = arith.constant 0 : index
    %c0_45 = arith.constant 0 : index
    %94 = vector.load %arg9[%c0_44, %c0_45] : memref<1x768xf32, #tpu.memory_space<vmem>>, vector<1x768xf32>
    %95 = vector.broadcast %94 : vector<1x768xf32> to vector<8x768xf32>
    %96 = arith.addf %93, %95 : vector<8x768xf32>
    %97 = vector.extract_strided_slice %90 {offsets = [0, 0], sizes = [8, 256], strides = [1, 1]} : vector<8x768xf32> to vector<8x256xf32>
    %98 = vector.extract_strided_slice %96 {offsets = [0, 0], sizes = [8, 256], strides = [1, 1]} : vector<8x768xf32> to vector<8x256xf32>
    %99 = arith.addf %97, %98 : vector<8x256xf32>
    %100 = arith.negf %99 : vector<8x256xf32>
    %101 = math.exp %100 : vector<8x256xf32>
    %cst_46 = arith.constant 1.000000e+00 : f32
    %102 = vector.broadcast %cst_46 : f32 to vector<8x256xf32>
    %103 = arith.addf %102, %101 : vector<8x256xf32>
    %104 = arith.divf %102, %103 : vector<8x256xf32>
    %105 = vector.extract_strided_slice %90 {offsets = [0, 256], sizes = [8, 256], strides = [1, 1]} : vector<8x768xf32> to vector<8x256xf32>
    %106 = vector.extract_strided_slice %96 {offsets = [0, 256], sizes = [8, 256], strides = [1, 1]} : vector<8x768xf32> to vector<8x256xf32>
    %107 = arith.addf %105, %106 : vector<8x256xf32>
    %108 = arith.negf %107 : vector<8x256xf32>
    %109 = math.exp %108 : vector<8x256xf32>
    %cst_47 = arith.constant 1.000000e+00 : f32
    %110 = vector.broadcast %cst_47 : f32 to vector<8x256xf32>
    %111 = arith.addf %110, %109 : vector<8x256xf32>
    %112 = arith.divf %110, %111 : vector<8x256xf32>
    %113 = vector.extract_strided_slice %90 {offsets = [0, 512], sizes = [8, 256], strides = [1, 1]} : vector<8x768xf32> to vector<8x256xf32>
    %114 = vector.extract_strided_slice %96 {offsets = [0, 512], sizes = [8, 256], strides = [1, 1]} : vector<8x768xf32> to vector<8x256xf32>
    %115 = arith.mulf %104, %114 : vector<8x256xf32>
    %116 = arith.addf %113, %115 : vector<8x256xf32>
    %117 = math.tanh %116 : vector<8x256xf32>
    %cst_48 = arith.constant 1.000000e+00 : f32
    %118 = vector.broadcast %cst_48 : f32 to vector<8x256xf32>
    %119 = arith.subf %118, %112 : vector<8x256xf32>
    %120 = arith.mulf %119, %117 : vector<8x256xf32>
    %121 = arith.mulf %112, %88 : vector<8x256xf32>
    %122 = arith.addf %120, %121 : vector<8x256xf32>
    %c16_49 = arith.constant 16 : index
    %c0_50 = arith.constant 0 : index
    %123 = vector.load %arg15[%c16_49, %c0_50] : memref<48x256xf32, #tpu.memory_space<vmem>>, vector<8x256xf32>
    tpu.vector_store %arg15[%c16_49, %c0_50], %122 {strides = array<i32>} : memref<48x256xf32, #tpu.memory_space<vmem>>, vector<8x256xf32>,
    %c24 = arith.constant 24 : index
    %c0_51 = arith.constant 0 : index
    %124 = vector.load %arg14[%c24, %c0_51] : memref<48x768xf32, #tpu.memory_space<vmem>>, vector<8x768xf32>
    %125 = arith.truncf %122 : vector<8x256xf32> to vector<8x256xbf16>
    %c0_52 = arith.constant 0 : index
    %c0_53 = arith.constant 0 : index
    %126 = vector.load %arg8[%c0_52, %c0_53] : memref<256x768xbf16, #tpu.memory_space<vmem>>, vector<256x768xbf16>
    %cst_54 = arith.constant dense<0.000000e+00> : vector<8x768xf32>
    %127 = tpu.matmul %125, %126, %cst_54 {dimension_numbers = #tpu.dot_dimension_numbers<[1], [0], [0], [1], [0, 0, 1, 1], [], []>} : vector<8x256xbf16>, vector<256x768xbf16>, vector<8x768xf32> -> vector<8x768xf32>
    %c0_55 = arith.constant 0 : index
    %c0_56 = arith.constant 0 : index
    %128 = vector.load %arg9[%c0_55, %c0_56] : memref<1x768xf32, #tpu.memory_space<vmem>>, vector<1x768xf32>
    %129 = vector.broadcast %128 : vector<1x768xf32> to vector<8x768xf32>
    %130 = arith.addf %127, %129 : vector<8x768xf32>
    %131 = vector.extract_strided_slice %124 {offsets = [0, 0], sizes = [8, 256], strides = [1, 1]} : vector<8x768xf32> to vector<8x256xf32>
    %132 = vector.extract_strided_slice %130 {offsets = [0, 0], sizes = [8, 256], strides = [1, 1]} : vector<8x768xf32> to vector<8x256xf32>
    %133 = arith.addf %131, %132 : vector<8x256xf32>
    %134 = arith.negf %133 : vector<8x256xf32>
    %135 = math.exp %134 : vector<8x256xf32>
    %cst_57 = arith.constant 1.000000e+00 : f32
    %136 = vector.broadcast %cst_57 : f32 to vector<8x256xf32>
    %137 = arith.addf %136, %135 : vector<8x256xf32>
    %138 = arith.divf %136, %137 : vector<8x256xf32>
    %139 = vector.extract_strided_slice %124 {offsets = [0, 256], sizes = [8, 256], strides = [1, 1]} : vector<8x768xf32> to vector<8x256xf32>
    %140 = vector.extract_strided_slice %130 {offsets = [0, 256], sizes = [8, 256], strides = [1, 1]} : vector<8x768xf32> to vector<8x256xf32>
    %141 = arith.addf %139, %140 : vector<8x256xf32>
    %142 = arith.negf %141 : vector<8x256xf32>
    %143 = math.exp %142 : vector<8x256xf32>
    %cst_58 = arith.constant 1.000000e+00 : f32
    %144 = vector.broadcast %cst_58 : f32 to vector<8x256xf32>
    %145 = arith.addf %144, %143 : vector<8x256xf32>
    %146 = arith.divf %144, %145 : vector<8x256xf32>
    %147 = vector.extract_strided_slice %124 {offsets = [0, 512], sizes = [8, 256], strides = [1, 1]} : vector<8x768xf32> to vector<8x256xf32>
    %148 = vector.extract_strided_slice %130 {offsets = [0, 512], sizes = [8, 256], strides = [1, 1]} : vector<8x768xf32> to vector<8x256xf32>
    %149 = arith.mulf %138, %148 : vector<8x256xf32>
    %150 = arith.addf %147, %149 : vector<8x256xf32>
    %151 = math.tanh %150 : vector<8x256xf32>
    %cst_59 = arith.constant 1.000000e+00 : f32
    %152 = vector.broadcast %cst_59 : f32 to vector<8x256xf32>
    %153 = arith.subf %152, %146 : vector<8x256xf32>
    %154 = arith.mulf %153, %151 : vector<8x256xf32>
    %155 = arith.mulf %146, %122 : vector<8x256xf32>
    %156 = arith.addf %154, %155 : vector<8x256xf32>
    %c24_60 = arith.constant 24 : index
    %c0_61 = arith.constant 0 : index
    %157 = vector.load %arg15[%c24_60, %c0_61] : memref<48x256xf32, #tpu.memory_space<vmem>>, vector<8x256xf32>
    tpu.vector_store %arg15[%c24_60, %c0_61], %156 {strides = array<i32>} : memref<48x256xf32, #tpu.memory_space<vmem>>, vector<8x256xf32>,
    %c32 = arith.constant 32 : index
    %c0_62 = arith.constant 0 : index
    %158 = vector.load %arg14[%c32, %c0_62] : memref<48x768xf32, #tpu.memory_space<vmem>>, vector<8x768xf32>
    %159 = arith.truncf %156 : vector<8x256xf32> to vector<8x256xbf16>
    %c0_63 = arith.constant 0 : index
    %c0_64 = arith.constant 0 : index
    %160 = vector.load %arg8[%c0_63, %c0_64] : memref<256x768xbf16, #tpu.memory_space<vmem>>, vector<256x768xbf16>
    %cst_65 = arith.constant dense<0.000000e+00> : vector<8x768xf32>
    %161 = tpu.matmul %159, %160, %cst_65 {dimension_numbers = #tpu.dot_dimension_numbers<[1], [0], [0], [1], [0, 0, 1, 1], [], []>} : vector<8x256xbf16>, vector<256x768xbf16>, vector<8x768xf32> -> vector<8x768xf32>
    %c0_66 = arith.constant 0 : index
    %c0_67 = arith.constant 0 : index
    %162 = vector.load %arg9[%c0_66, %c0_67] : memref<1x768xf32, #tpu.memory_space<vmem>>, vector<1x768xf32>
    %163 = vector.broadcast %162 : vector<1x768xf32> to vector<8x768xf32>
    %164 = arith.addf %161, %163 : vector<8x768xf32>
    %165 = vector.extract_strided_slice %158 {offsets = [0, 0], sizes = [8, 256], strides = [1, 1]} : vector<8x768xf32> to vector<8x256xf32>
    %166 = vector.extract_strided_slice %164 {offsets = [0, 0], sizes = [8, 256], strides = [1, 1]} : vector<8x768xf32> to vector<8x256xf32>
    %167 = arith.addf %165, %166 : vector<8x256xf32>
    %168 = arith.negf %167 : vector<8x256xf32>
    %169 = math.exp %168 : vector<8x256xf32>
    %cst_68 = arith.constant 1.000000e+00 : f32
    %170 = vector.broadcast %cst_68 : f32 to vector<8x256xf32>
    %171 = arith.addf %170, %169 : vector<8x256xf32>
    %172 = arith.divf %170, %171 : vector<8x256xf32>
    %173 = vector.extract_strided_slice %158 {offsets = [0, 256], sizes = [8, 256], strides = [1, 1]} : vector<8x768xf32> to vector<8x256xf32>
    %174 = vector.extract_strided_slice %164 {offsets = [0, 256], sizes = [8, 256], strides = [1, 1]} : vector<8x768xf32> to vector<8x256xf32>
    %175 = arith.addf %173, %174 : vector<8x256xf32>
    %176 = arith.negf %175 : vector<8x256xf32>
    %177 = math.exp %176 : vector<8x256xf32>
    %cst_69 = arith.constant 1.000000e+00 : f32
    %178 = vector.broadcast %cst_69 : f32 to vector<8x256xf32>
    %179 = arith.addf %178, %177 : vector<8x256xf32>
    %180 = arith.divf %178, %179 : vector<8x256xf32>
    %181 = vector.extract_strided_slice %158 {offsets = [0, 512], sizes = [8, 256], strides = [1, 1]} : vector<8x768xf32> to vector<8x256xf32>
    %182 = vector.extract_strided_slice %164 {offsets = [0, 512], sizes = [8, 256], strides = [1, 1]} : vector<8x768xf32> to vector<8x256xf32>
    %183 = arith.mulf %172, %182 : vector<8x256xf32>
    %184 = arith.addf %181, %183 : vector<8x256xf32>
    %185 = math.tanh %184 : vector<8x256xf32>
    %cst_70 = arith.constant 1.000000e+00 : f32
    %186 = vector.broadcast %cst_70 : f32 to vector<8x256xf32>
    %187 = arith.subf %186, %180 : vector<8x256xf32>
    %188 = arith.mulf %187, %185 : vector<8x256xf32>
    %189 = arith.mulf %180, %156 : vector<8x256xf32>
    %190 = arith.addf %188, %189 : vector<8x256xf32>
    %c32_71 = arith.constant 32 : index
    %c0_72 = arith.constant 0 : index
    %191 = vector.load %arg15[%c32_71, %c0_72] : memref<48x256xf32, #tpu.memory_space<vmem>>, vector<8x256xf32>
    tpu.vector_store %arg15[%c32_71, %c0_72], %190 {strides = array<i32>} : memref<48x256xf32, #tpu.memory_space<vmem>>, vector<8x256xf32>,
    %c40 = arith.constant 40 : index
    %c0_73 = arith.constant 0 : index
    %192 = vector.load %arg14[%c40, %c0_73] : memref<48x768xf32, #tpu.memory_space<vmem>>, vector<8x768xf32>
    %193 = arith.truncf %190 : vector<8x256xf32> to vector<8x256xbf16>
    %c0_74 = arith.constant 0 : index
    %c0_75 = arith.constant 0 : index
    %194 = vector.load %arg8[%c0_74, %c0_75] : memref<256x768xbf16, #tpu.memory_space<vmem>>, vector<256x768xbf16>
    %cst_76 = arith.constant dense<0.000000e+00> : vector<8x768xf32>
    %195 = tpu.matmul %193, %194, %cst_76 {dimension_numbers = #tpu.dot_dimension_numbers<[1], [0], [0], [1], [0, 0, 1, 1], [], []>} : vector<8x256xbf16>, vector<256x768xbf16>, vector<8x768xf32> -> vector<8x768xf32>
    %c0_77 = arith.constant 0 : index
    %c0_78 = arith.constant 0 : index
    %196 = vector.load %arg9[%c0_77, %c0_78] : memref<1x768xf32, #tpu.memory_space<vmem>>, vector<1x768xf32>
    %197 = vector.broadcast %196 : vector<1x768xf32> to vector<8x768xf32>
    %198 = arith.addf %195, %197 : vector<8x768xf32>
    %199 = vector.extract_strided_slice %192 {offsets = [0, 0], sizes = [8, 256], strides = [1, 1]} : vector<8x768xf32> to vector<8x256xf32>
    %200 = vector.extract_strided_slice %198 {offsets = [0, 0], sizes = [8, 256], strides = [1, 1]} : vector<8x768xf32> to vector<8x256xf32>
    %201 = arith.addf %199, %200 : vector<8x256xf32>
    %202 = arith.negf %201 : vector<8x256xf32>
    %203 = math.exp %202 : vector<8x256xf32>
    %cst_79 = arith.constant 1.000000e+00 : f32
    %204 = vector.broadcast %cst_79 : f32 to vector<8x256xf32>
    %205 = arith.addf %204, %203 : vector<8x256xf32>
    %206 = arith.divf %204, %205 : vector<8x256xf32>
    %207 = vector.extract_strided_slice %192 {offsets = [0, 256], sizes = [8, 256], strides = [1, 1]} : vector<8x768xf32> to vector<8x256xf32>
    %208 = vector.extract_strided_slice %198 {offsets = [0, 256], sizes = [8, 256], strides = [1, 1]} : vector<8x768xf32> to vector<8x256xf32>
    %209 = arith.addf %207, %208 : vector<8x256xf32>
    %210 = arith.negf %209 : vector<8x256xf32>
    %211 = math.exp %210 : vector<8x256xf32>
    %cst_80 = arith.constant 1.000000e+00 : f32
    %212 = vector.broadcast %cst_80 : f32 to vector<8x256xf32>
    %213 = arith.addf %212, %211 : vector<8x256xf32>
    %214 = arith.divf %212, %213 : vector<8x256xf32>
    %215 = vector.extract_strided_slice %192 {offsets = [0, 512], sizes = [8, 256], strides = [1, 1]} : vector<8x768xf32> to vector<8x256xf32>
    %216 = vector.extract_strided_slice %198 {offsets = [0, 512], sizes = [8, 256], strides = [1, 1]} : vector<8x768xf32> to vector<8x256xf32>
    %217 = arith.mulf %206, %216 : vector<8x256xf32>
    %218 = arith.addf %215, %217 : vector<8x256xf32>
    %219 = math.tanh %218 : vector<8x256xf32>
    %cst_81 = arith.constant 1.000000e+00 : f32
    %220 = vector.broadcast %cst_81 : f32 to vector<8x256xf32>
    %221 = arith.subf %220, %214 : vector<8x256xf32>
    %222 = arith.mulf %221, %219 : vector<8x256xf32>
    %223 = arith.mulf %214, %190 : vector<8x256xf32>
    %224 = arith.addf %222, %223 : vector<8x256xf32>
    %c40_82 = arith.constant 40 : index
    %c0_83 = arith.constant 0 : index
    %225 = vector.load %arg15[%c40_82, %c0_83] : memref<48x256xf32, #tpu.memory_space<vmem>>, vector<8x256xf32>
    tpu.vector_store %arg15[%c40_82, %c0_83], %224 {strides = array<i32>} : memref<48x256xf32, #tpu.memory_space<vmem>>, vector<8x256xf32>,
    %c0_84 = arith.constant 0 : index
    %c0_85 = arith.constant 0 : index
    %226 = vector.load %arg13[%c0_84, %c0_85] : memref<8x256xf32, #tpu.memory_space<vmem>>, vector<8x256xf32>
    tpu.vector_store %arg13[%c0_84, %c0_85], %224 {strides = array<i32>} : memref<8x256xf32, #tpu.memory_space<vmem>>, vector<8x256xf32>,
    %c0_86 = arith.constant 0 : index
    %c0_87 = arith.constant 0 : index
    %227 = vector.load %arg15[%c0_86, %c0_87] : memref<48x256xf32, #tpu.memory_space<vmem>>, vector<48x256xf32>
    %228 = arith.truncf %227 : vector<48x256xf32> to vector<48x256xbf16>
    %c0_88 = arith.constant 0 : index
    %c0_89 = arith.constant 0 : index
    %229 = vector.load %arg10[%c0_88, %c0_89] : memref<256x128xbf16, #tpu.memory_space<vmem>>, vector<256x128xbf16>
    %cst_90 = arith.constant dense<0.000000e+00> : vector<48x128xf32>
    %230 = tpu.matmul %228, %229, %cst_90 {dimension_numbers = #tpu.dot_dimension_numbers<[1], [0], [0], [1], [0, 0, 1, 1], [], []>} : vector<48x256xbf16>, vector<256x128xbf16>, vector<48x128xf32> -> vector<48x128xf32>
    %c0_91 = arith.constant 0 : index
    %c0_92 = arith.constant 0 : index
    %231 = vector.load %arg11[%c0_91, %c0_92] : memref<1x128xf32, #tpu.memory_space<vmem>>, vector<1x128xf32>
    %232 = vector.broadcast %231 : vector<1x128xf32> to vector<48x128xf32>
    %233 = arith.addf %230, %232 : vector<48x128xf32>
    %234 = tpu.iota {dimensions = array<i32: 1>} : vector<48x128xi32>
    %c6_i32 = arith.constant 6 : i32
    %235 = vector.broadcast %c6_i32 : i32 to vector<48x128xi32>
    %236 = arith.cmpi slt, %234, %235 : vector<48x128xi32>
    %cst_93 = arith.constant -1.000000e+30 : f32
    %237 = vector.broadcast %cst_93 : f32 to vector<48x128xf32>
    %238 = arith.select %236, %233, %237 : vector<48x128xi1>, vector<48x128xf32>
    %cst_94 = arith.constant dense<0xFF800000> : vector<48xf32>
    %239 = vector.multi_reduction <maximumf>, %238, %cst_94 [1] : vector<48x128xf32> to vector<48xf32>
    %240 = vector.shape_cast %239 : vector<48xf32> to vector<48x1xf32>
    %241 = vector.broadcast %240 : vector<48x1xf32> to vector<48x128xf32>
    %242 = arith.subf %238, %241 : vector<48x128xf32>
    %243 = math.exp %242 : vector<48x128xf32>
    %cst_95 = arith.constant dense<0.000000e+00> : vector<48xf32>
    %244 = vector.multi_reduction <add>, %243, %cst_95 [1] : vector<48x128xf32> to vector<48xf32>
    %245 = vector.shape_cast %244 : vector<48xf32> to vector<48x1xf32>
    %246 = vector.broadcast %240 : vector<48x1xf32> to vector<48x128xf32>
    %247 = arith.subf %238, %246 : vector<48x128xf32>
    %248 = math.log %245 : vector<48x1xf32>
    %249 = vector.broadcast %248 : vector<48x1xf32> to vector<48x128xf32>
    %250 = arith.subf %247, %249 : vector<48x128xf32>
    %c0_96 = arith.constant 0 : index
    %c0_97 = arith.constant 0 : index
    %251 = vector.load %arg2[%c0_96, %c0_97] : memref<48x1xf32, #tpu.memory_space<vmem>>, vector<48x1xf32>
    %252 = arith.mulf %251, %245 : vector<48x1xf32>
    %cst_98 = arith.constant 0.000000e+00 : f32
    %253 = vector.broadcast %cst_98 : f32 to vector<48x1xf32>
    %c0_i32 = arith.constant 0 : i32
    %254 = vector.broadcast %c0_i32 : i32 to vector<48x128xi32>
    %255 = arith.cmpi sle, %234, %254 : vector<48x128xi32>
    %cst_99 = arith.constant 0.000000e+00 : f32
    %256 = vector.broadcast %cst_99 : f32 to vector<48x128xf32>
    %257 = arith.select %255, %243, %256 : vector<48x128xi1>, vector<48x128xf32>
    %cst_100 = arith.constant dense<0.000000e+00> : vector<48xf32>
    %258 = vector.multi_reduction <add>, %257, %cst_100 [1] : vector<48x128xf32> to vector<48xf32>
    %259 = vector.shape_cast %258 : vector<48xf32> to vector<48x1xf32>
    %260 = arith.cmpf ole, %259, %252 : vector<48x1xf32>
    %cst_101 = arith.constant 1.000000e+00 : f32
    %cst_102 = arith.constant 0.000000e+00 : f32
    %261 = vector.broadcast %cst_101 : f32 to vector<48x1xf32>
    %262 = vector.broadcast %cst_102 : f32 to vector<48x1xf32>
    %263 = arith.select %260, %261, %262 : vector<48x1xi1>, vector<48x1xf32>
    %264 = arith.addf %253, %263 : vector<48x1xf32>
    %c1_i32 = arith.constant 1 : i32
    %265 = vector.broadcast %c1_i32 : i32 to vector<48x128xi32>
    %266 = arith.cmpi sle, %234, %265 : vector<48x128xi32>
    %cst_103 = arith.constant 0.000000e+00 : f32
    %267 = vector.broadcast %cst_103 : f32 to vector<48x128xf32>
    %268 = arith.select %266, %243, %267 : vector<48x128xi1>, vector<48x128xf32>
    %cst_104 = arith.constant dense<0.000000e+00> : vector<48xf32>
    %269 = vector.multi_reduction <add>, %268, %cst_104 [1] : vector<48x128xf32> to vector<48xf32>
    %270 = vector.shape_cast %269 : vector<48xf32> to vector<48x1xf32>
    %271 = arith.cmpf ole, %270, %252 : vector<48x1xf32>
    %cst_105 = arith.constant 1.000000e+00 : f32
    %cst_106 = arith.constant 0.000000e+00 : f32
    %272 = vector.broadcast %cst_105 : f32 to vector<48x1xf32>
    %273 = vector.broadcast %cst_106 : f32 to vector<48x1xf32>
    %274 = arith.select %271, %272, %273 : vector<48x1xi1>, vector<48x1xf32>
    %275 = arith.addf %264, %274 : vector<48x1xf32>
    %c2_i32 = arith.constant 2 : i32
    %276 = vector.broadcast %c2_i32 : i32 to vector<48x128xi32>
    %277 = arith.cmpi sle, %234, %276 : vector<48x128xi32>
    %cst_107 = arith.constant 0.000000e+00 : f32
    %278 = vector.broadcast %cst_107 : f32 to vector<48x128xf32>
    %279 = arith.select %277, %243, %278 : vector<48x128xi1>, vector<48x128xf32>
    %cst_108 = arith.constant dense<0.000000e+00> : vector<48xf32>
    %280 = vector.multi_reduction <add>, %279, %cst_108 [1] : vector<48x128xf32> to vector<48xf32>
    %281 = vector.shape_cast %280 : vector<48xf32> to vector<48x1xf32>
    %282 = arith.cmpf ole, %281, %252 : vector<48x1xf32>
    %cst_109 = arith.constant 1.000000e+00 : f32
    %cst_110 = arith.constant 0.000000e+00 : f32
    %283 = vector.broadcast %cst_109 : f32 to vector<48x1xf32>
    %284 = vector.broadcast %cst_110 : f32 to vector<48x1xf32>
    %285 = arith.select %282, %283, %284 : vector<48x1xi1>, vector<48x1xf32>
    %286 = arith.addf %275, %285 : vector<48x1xf32>
    %c3_i32 = arith.constant 3 : i32
    %287 = vector.broadcast %c3_i32 : i32 to vector<48x128xi32>
    %288 = arith.cmpi sle, %234, %287 : vector<48x128xi32>
    %cst_111 = arith.constant 0.000000e+00 : f32
    %289 = vector.broadcast %cst_111 : f32 to vector<48x128xf32>
    %290 = arith.select %288, %243, %289 : vector<48x128xi1>, vector<48x128xf32>
    %cst_112 = arith.constant dense<0.000000e+00> : vector<48xf32>
    %291 = vector.multi_reduction <add>, %290, %cst_112 [1] : vector<48x128xf32> to vector<48xf32>
    %292 = vector.shape_cast %291 : vector<48xf32> to vector<48x1xf32>
    %293 = arith.cmpf ole, %292, %252 : vector<48x1xf32>
    %cst_113 = arith.constant 1.000000e+00 : f32
    %cst_114 = arith.constant 0.000000e+00 : f32
    %294 = vector.broadcast %cst_113 : f32 to vector<48x1xf32>
    %295 = vector.broadcast %cst_114 : f32 to vector<48x1xf32>
    %296 = arith.select %293, %294, %295 : vector<48x1xi1>, vector<48x1xf32>
    %297 = arith.addf %286, %296 : vector<48x1xf32>
    %c4_i32 = arith.constant 4 : i32
    %298 = vector.broadcast %c4_i32 : i32 to vector<48x128xi32>
    %299 = arith.cmpi sle, %234, %298 : vector<48x128xi32>
    %cst_115 = arith.constant 0.000000e+00 : f32
    %300 = vector.broadcast %cst_115 : f32 to vector<48x128xf32>
    %301 = arith.select %299, %243, %300 : vector<48x128xi1>, vector<48x128xf32>
    %cst_116 = arith.constant dense<0.000000e+00> : vector<48xf32>
    %302 = vector.multi_reduction <add>, %301, %cst_116 [1] : vector<48x128xf32> to vector<48xf32>
    %303 = vector.shape_cast %302 : vector<48xf32> to vector<48x1xf32>
    %304 = arith.cmpf ole, %303, %252 : vector<48x1xf32>
    %cst_117 = arith.constant 1.000000e+00 : f32
    %cst_118 = arith.constant 0.000000e+00 : f32
    %305 = vector.broadcast %cst_117 : f32 to vector<48x1xf32>
    %306 = vector.broadcast %cst_118 : f32 to vector<48x1xf32>
    %307 = arith.select %304, %305, %306 : vector<48x1xi1>, vector<48x1xf32>
    %308 = arith.addf %297, %307 : vector<48x1xf32>
    %c5_i32 = arith.constant 5 : i32
    %309 = vector.broadcast %c5_i32 : i32 to vector<48x128xi32>
    %310 = arith.cmpi sle, %234, %309 : vector<48x128xi32>
    %cst_119 = arith.constant 0.000000e+00 : f32
    %311 = vector.broadcast %cst_119 : f32 to vector<48x128xf32>
    %312 = arith.select %310, %243, %311 : vector<48x128xi1>, vector<48x128xf32>
    %cst_120 = arith.constant dense<0.000000e+00> : vector<48xf32>
    %313 = vector.multi_reduction <add>, %312, %cst_120 [1] : vector<48x128xf32> to vector<48xf32>
    %314 = vector.shape_cast %313 : vector<48xf32> to vector<48x1xf32>
    %315 = arith.cmpf ole, %314, %252 : vector<48x1xf32>
    %cst_121 = arith.constant 1.000000e+00 : f32
    %cst_122 = arith.constant 0.000000e+00 : f32
    %316 = vector.broadcast %cst_121 : f32 to vector<48x1xf32>
    %317 = vector.broadcast %cst_122 : f32 to vector<48x1xf32>
    %318 = arith.select %315, %316, %317 : vector<48x1xi1>, vector<48x1xf32>
    %319 = arith.addf %308, %318 : vector<48x1xf32>
    %cst_123 = arith.constant 5.000000e+00 : f32
    %320 = vector.broadcast %cst_123 : f32 to vector<48x1xf32>
    %321 = arith.minimumf %319, %320 : vector<48x1xf32>
    %322 = arith.fptosi %321 : vector<48x1xf32> to vector<48x1xi32>
    %323 = vector.broadcast %322 : vector<48x1xi32> to vector<48x128xi32>
    %324 = arith.cmpi eq, %234, %323 : vector<48x128xi32>
    %cst_124 = arith.constant 0.000000e+00 : f32
    %325 = vector.broadcast %cst_124 : f32 to vector<48x128xf32>
    %326 = arith.select %324, %250, %325 : vector<48x128xi1>, vector<48x128xf32>
    %cst_125 = arith.constant dense<0.000000e+00> : vector<48xf32>
    %327 = vector.multi_reduction <add>, %326, %cst_125 [1] : vector<48x128xf32> to vector<48xf32>
    %328 = vector.shape_cast %327 : vector<48xf32> to vector<48x1xf32>
    %c6_i32_126 = arith.constant 6 : i32
    %329 = vector.broadcast %c6_i32_126 : i32 to vector<48x128xi32>
    %330 = arith.cmpi eq, %234, %329 : vector<48x128xi32>
    %cst_127 = arith.constant 0.000000e+00 : f32
    %331 = vector.broadcast %cst_127 : f32 to vector<48x128xf32>
    %332 = arith.select %330, %233, %331 : vector<48x128xi1>, vector<48x128xf32>
    %cst_128 = arith.constant dense<0.000000e+00> : vector<48xf32>
    %333 = vector.multi_reduction <add>, %332, %cst_128 [1] : vector<48x128xf32> to vector<48xf32>
    %334 = vector.shape_cast %333 : vector<48xf32> to vector<48x1xf32>
    %c0_i32_129 = arith.constant 0 : i32
    %335 = vector.broadcast %c0_i32_129 : i32 to vector<48x128xi32>
    %336 = arith.cmpi eq, %234, %335 : vector<48x128xi32>
    %c1_i32_130 = arith.constant 1 : i32
    %337 = vector.broadcast %c1_i32_130 : i32 to vector<48x128xi32>
    %338 = arith.cmpi eq, %234, %337 : vector<48x128xi32>
    %c2_i32_131 = arith.constant 2 : i32
    %339 = vector.broadcast %c2_i32_131 : i32 to vector<48x128xi32>
    %340 = arith.cmpi eq, %234, %339 : vector<48x128xi32>
    %cst_132 = arith.constant 0.000000e+00 : f32
    %341 = vector.shape_cast %328 : vector<48x1xf32> to vector<48x1xf32>
    %342 = vector.broadcast %341 : vector<48x1xf32> to vector<48x128xf32>
    %343 = vector.broadcast %cst_132 : f32 to vector<48x128xf32>
    %344 = arith.select %340, %342, %343 : vector<48x128xi1>, vector<48x128xf32>
    %345 = vector.shape_cast %334 : vector<48x1xf32> to vector<48x1xf32>
    %346 = vector.broadcast %345 : vector<48x1xf32> to vector<48x128xf32>
    %347 = arith.select %338, %346, %344 : vector<48x128xi1>, vector<48x128xf32>
    %348 = vector.shape_cast %321 : vector<48x1xf32> to vector<48x1xf32>
    %349 = vector.broadcast %348 : vector<48x1xf32> to vector<48x128xf32>
    %350 = arith.select %336, %349, %347 : vector<48x128xi1>, vector<48x128xf32>
    %c0_133 = arith.constant 0 : index
    %c0_134 = arith.constant 0 : index
    %351 = vector.load %arg12[%c0_133, %c0_134] : memref<48x128xf32, #tpu.memory_space<vmem>>, vector<48x128xf32>
    tpu.vector_store %arg12[%c0_133, %c0_134], %350 {strides = array<i32>} : memref<48x128xf32, #tpu.memory_space<vmem>>, vector<48x128xf32>,
    return
  }
  func.func @transform_0(%arg0: i32) -> (i32, i32) {
    %c0_i32 = arith.constant 0 : i32
    %c0_i32_0 = arith.constant 0 : i32
    %c0_i32_1 = arith.constant 0 : i32
    return %c0_i32, %c0_i32_0 : i32, i32
  }
  func.func @transform_1(%arg0: i32) -> (i32, i32) {
    %c0_i32 = arith.constant 0 : i32
    %c0_i32_0 = arith.constant 0 : i32
    %c0_i32_1 = arith.constant 0 : i32
    return %c0_i32, %c0_i32_0 : i32, i32
  }
  func.func @transform_2(%arg0: i32) -> (i32, i32) {
    %c0_i32 = arith.constant 0 : i32
    %c0_i32_0 = arith.constant 0 : i32
    %c0_i32_1 = arith.constant 0 : i32
    return %c0_i32, %c0_i32_0 : i32, i32
  }
  func.func @transform_3(%arg0: i32) -> (i32, i32) {
    %c0_i32 = arith.constant 0 : i32
    %c0_i32_0 = arith.constant 0 : i32
    %c0_i32_1 = arith.constant 0 : i32
    return %c0_i32, %c0_i32_0 : i32, i32
  }
  func.func @transform_4(%arg0: i32) -> (i32, i32) {
    %c0_i32 = arith.constant 0 : i32
    %c0_i32_0 = arith.constant 0 : i32
    %c0_i32_1 = arith.constant 0 : i32
    return %c0_i32, %c0_i32_0 : i32, i32
  }
  func.func @transform_5(%arg0: i32) -> (i32, i32) {
    %c0_i32 = arith.constant 0 : i32
    %c0_i32_0 = arith.constant 0 : i32
    %c0_i32_1 = arith.constant 0 : i32
    return %c0_i32, %c0_i32_0 : i32, i32
  }
  func.func @transform_6(%arg0: i32) -> (i32, i32) {
    %c0_i32 = arith.constant 0 : i32
    %c0_i32_0 = arith.constant 0 : i32
    %c0_i32_1 = arith.constant 0 : i32
    return %c0_i32, %c0_i32_0 : i32, i32
  }
  func.func @transform_7(%arg0: i32) -> (i32, i32) {
    %c0_i32 = arith.constant 0 : i32
    %c0_i32_0 = arith.constant 0 : i32
    %c0_i32_1 = arith.constant 0 : i32
    return %c0_i32, %c0_i32_0 : i32, i32
  }
  func.func @transform_8(%arg0: i32) -> (i32, i32) {
    %c0_i32 = arith.constant 0 : i32
    %c0_i32_0 = arith.constant 0 : i32
    %c0_i32_1 = arith.constant 0 : i32
    return %c0_i32, %c0_i32_0 : i32, i32
  }
  func.func @transform_9(%arg0: i32) -> (i32, i32) {
    %c0_i32 = arith.constant 0 : i32
    %c0_i32_0 = arith.constant 0 : i32
    %c0_i32_1 = arith.constant 0 : i32
    return %c0_i32, %c0_i32_0 : i32, i32
  }
  func.func @transform_10(%arg0: i32) -> (i32, i32) {
    %c0_i32 = arith.constant 0 : i32
    %c0_i32_0 = arith.constant 0 : i32
    %c0_i32_1 = arith.constant 0 : i32
    return %c0_i32, %c0_i32_0 : i32, i32
  }
  func.func @transform_11(%arg0: i32) -> (i32, i32) {
    %c0_i32 = arith.constant 0 : i32
    %c0_i32_0 = arith.constant 0 : i32
    %c0_i32_1 = arith.constant 0 : i32
    return %c0_i32, %c0_i32_0 : i32, i32
  }
  func.func @transform_12(%arg0: i32) -> (i32, i32) {
    %c0_i32 = arith.constant 0 : i32
    %c0_i32_0 = arith.constant 0 : i32
    %c0_i32_1 = arith.constant 0 : i32
    return %c0_i32, %c0_i32_0 : i32, i32
  }
}

</mosaic_0001>

<llo_original>
// kernel: tpu_custom_call.1
$region0: #{tpu_custom_call.1}
  #allocation0 [shape = 'u32[]', space=smem, size = 0x4, offset = 0x4, fixed_abs, tag = 'smem constant byte address 0x4 - core index']
  #allocation1 [shape = 'u32[144,128]{1,0:T(1,128)}', space=vmem, size = 0x12000, scoped, tag = 'internal scratch']
  #allocation2 [shape = 'f32[48,768]{1,0:T(8,128)}', space=vmem, size = 0x24000, scoped, tag = 'scratch operand']
  #allocation3 [shape = 'f32[48,256]{1,0:T(8,128)}', space=vmem, size = 0xc000, scoped, tag = 'scratch operand']
  %s0 = inlined_call_operand.hbm [shape: bf16[48,288], index: 0, kind: input, shape index: {}]
  %s1 = inlined_call_operand.vmem [shape: f32[48,1], index: 1, kind: input, shape index: {}]
  %s2 = inlined_call_operand.vmem [shape: f32[8,256], index: 2, kind: input, shape index: {}]
  %s3 = inlined_call_operand.hbm [shape: bf16[288,128], index: 3, kind: input, shape index: {}]
  %s4 = inlined_call_operand.vmem [shape: f32[1,128], index: 4, kind: input, shape index: {}]
  %s5 = inlined_call_operand.hbm [shape: bf16[128,768], index: 5, kind: input, shape index: {}]
  %s6 = inlined_call_operand.vmem [shape: f32[1,768], index: 6, kind: input, shape index: {}]
  %s7 = inlined_call_operand.hbm [shape: bf16[256,768], index: 7, kind: input, shape index: {}]
  %s8 = inlined_call_operand.vmem [shape: f32[1,768], index: 8, kind: input, shape index: {}]
  %s9 = inlined_call_operand.hbm [shape: bf16[256,128], index: 9, kind: input, shape index: {}]
  %s10 = inlined_call_operand.vmem [shape: f32[1,128], index: 10, kind: input, shape index: {}]
  %s11 = inlined_call_operand.hbm [shape: f32[48,128], index: 11, kind: output, shape index: {0}]
  %s12 = inlined_call_operand.hbm [shape: f32[8,256], index: 12, kind: output, shape index: {1}]
  %13 = xla_tuple %s11, %s12
  %s14 = sld [smem:[#allocation0]]
  $region82: #{tpu_custom_call.1} parent=0
    _
  %s16 = ssub.s32 1, %s14
  %s17 = scalar_select 0, %s16, %s14
  $region1: #{tpu_custom_call.1} parent=0
    #allocation4 [shape = 'u8[36864]{0}', space=vmem, size = 0x9000, scoped, tag = 'input window, operand 0, single buffered']
    #allocation5 [shape = 's32[1]{0}', space=sflag, size = 0x4, scoped, tag = 'scoped memory for tpu_custom_call.1']
    #allocation6 [shape = 's32[1]{0}', space=sflag, size = 0x4, scoped, tag = 'scoped memory for tpu_custom_call.1']
    #allocation7 [shape = 'u8[73728]{0}', space=vmem, size = 0x12000, scoped, tag = 'input window, operand 3, single buffered']
    #allocation8 [shape = 's32[1]{0}', space=sflag, size = 0x4, scoped, tag = 'scoped memory for tpu_custom_call.1']
    #allocation9 [shape = 'u8[196608]{0}', space=vmem, size = 0x30000, scoped, tag = 'input window, operand 5, single buffered']
    #allocation10 [shape = 'u8[393216]{0}', space=vmem, size = 0x60000, scoped, tag = 'input window, operand 7, single buffered']
    #allocation11 [shape = 's32[1]{0}', space=sflag, size = 0x4, scoped, tag = 'scoped memory for tpu_custom_call.1']
    #allocation12 [shape = 'u8[65536]{0}', space=vmem, size = 0x10000, scoped, tag = 'input window, operand 9, single buffered']
    #allocation13 [shape = 'u8[24576]{0}', space=vmem, size = 0x6000, scoped, tag = 'output window, operand 0, single buffered']
    #allocation14 [shape = 'u8[8192]{0}', space=vmem, size = 0x2000, scoped, tag = 'output window, operand 1, single buffered']
    #allocation15 [shape = 's32[1]{0}', space=sflag, size = 0x4, scoped, tag = 'scoped memory for tpu_custom_call.1']
    %18 = vsyncpa [#allocation5], 0
    %19 = vsyncpa [#allocation8], 0
    %20 = vsyncpa [#allocation11], 0
    %21 = vsyncpa [#allocation6], 0
    %22 = vsyncpa [#allocation15], 0
    // Predicated region
    $region2: #{tpu_custom_call.1} parent=1 // pred_check
      _
    $region3: #{tpu_custom_call.1} parent=1 // pred_check_branch
      %24 = sbr.rel (0) target = $region5
    $region4: #{tpu_custom_call.1} parent=1 // pred_region
      %s26 = ssub.s32 1152, 1152
      %27 = vsyncadd [#allocation5], %s26
      %s28 = sshll.u32 [#allocation4], 4
      %s29 = int_to_ptr.vmem [resolvable:$true] %s28
      %34 = dma.hbm_to_vmem [thread:$0]  %s0, 1152, %s29, [#allocation5], 192, 192, 12
    $region5: #{tpu_custom_call.1} parent=1 // pred_fallthru
      _
    // Predicated region
    $region6: #{tpu_custom_call.1} parent=1 // pred_check
      _
    $region7: #{tpu_custom_call.1} parent=1 // pred_check_branch
      %36 = sbr.rel (0) target = $region9
    $region8: #{tpu_custom_call.1} parent=1 // pred_region
      _
    $region9: #{tpu_custom_call.1} parent=1 // pred_fallthru
      _
    // Predicated region
    $region10: #{tpu_custom_call.1} parent=1 // pred_check
      _
    $region11: #{tpu_custom_call.1} parent=1 // pred_check_branch
      %38 = sbr.rel (0) target = $region13
    $region12: #{tpu_custom_call.1} parent=1 // pred_region
      _
    $region13: #{tpu_custom_call.1} parent=1 // pred_fallthru
      _
    // Predicated region
    $region14: #{tpu_custom_call.1} parent=1 // pred_check
      _
    $region15: #{tpu_custom_call.1} parent=1 // pred_check_branch
      %40 = sbr.rel (0) target = $region17
    $region16: #{tpu_custom_call.1} parent=1 // pred_region
      %s42 = ssub.s32 2304, 2304
      %43 = vsyncadd [#allocation8], %s42
      %s44 = sshll.u32 [#allocation7], 4
      %s45 = int_to_ptr.vmem [resolvable:$true] %s44
      %50 = dma.hbm_to_vmem [thread:$0]  %s3, 2304, %s45, [#allocation8], 64, 64, 4
    $region17: #{tpu_custom_call.1} parent=1 // pred_fallthru
      _
    // Predicated region
    $region18: #{tpu_custom_call.1} parent=1 // pred_check
      _
    $region19: #{tpu_custom_call.1} parent=1 // pred_check_branch
      %52 = sbr.rel (0) target = $region21
    $region20: #{tpu_custom_call.1} parent=1 // pred_region
      _
    $region21: #{tpu_custom_call.1} parent=1 // pred_fallthru
      _
    // Predicated region
    $region22: #{tpu_custom_call.1} parent=1 // pred_check
      _
    $region23: #{tpu_custom_call.1} parent=1 // pred_check_branch
      %54 = sbr.rel (0) target = $region25
    $region24: #{tpu_custom_call.1} parent=1 // pred_region
      %s56 = ssub.s32 6144, 6144
      %57 = vsyncadd [#allocation8], %s56
      %s58 = sshll.u32 [#allocation9], 4
      %s59 = int_to_ptr.vmem [resolvable:$true] %s58
      %64 = dma.hbm_to_vmem [thread:$0]  %s5, 6144, %s59, [#allocation8], 384, 384, 24
    $region25: #{tpu_custom_call.1} parent=1 // pred_fallthru
      _
    // Predicated region
    $region26: #{tpu_custom_call.1} parent=1 // pred_check
      _
    $region27: #{tpu_custom_call.1} parent=1 // pred_check_branch
      %66 = sbr.rel (0) target = $region29
    $region28: #{tpu_custom_call.1} parent=1 // pred_region
      _
    $region29: #{tpu_custom_call.1} parent=1 // pred_fallthru
      _
    // Predicated region
    $region30: #{tpu_custom_call.1} parent=1 // pred_check
      _
    $region31: #{tpu_custom_call.1} parent=1 // pred_check_branch
      %68 = sbr.rel (0) target = $region33
    $region32: #{tpu_custom_call.1} parent=1 // pred_region
      %s70 = ssub.s32 12288, 12288
      %71 = vsyncadd [#allocation11], %s70
      %s72 = sshll.u32 [#allocation10], 4
      %s73 = int_to_ptr.vmem [resolvable:$true] %s72
      %78 = dma.hbm_to_vmem [thread:$0]  %s7, 12288, %s73, [#allocation11], 384, 384, 24
    $region33: #{tpu_custom_call.1} parent=1 // pred_fallthru
      _
    // Predicated region
    $region34: #{tpu_custom_call.1} parent=1 // pred_check
      _
    $region35: #{tpu_custom_call.1} parent=1 // pred_check_branch
      %80 = sbr.rel (0) target = $region37
    $region36: #{tpu_custom_call.1} parent=1 // pred_region
      _
    $region37: #{tpu_custom_call.1} parent=1 // pred_fallthru
      _
    // Predicated region
    $region38: #{tpu_custom_call.1} parent=1 // pred_check
      _
    $region39: #{tpu_custom_call.1} parent=1 // pred_check_branch
      %82 = sbr.rel (0) target = $region41
    $region40: #{tpu_custom_call.1} parent=1 // pred_region
      %s84 = ssub.s32 2048, 2048
      %85 = vsyncadd [#allocation11], %s84
      %s86 = sshll.u32 [#allocation12], 4
      %s87 = int_to_ptr.vmem [resolvable:$true] %s86
      %92 = dma.hbm_to_vmem [thread:$0]  %s9, 2048, %s87, [#allocation11], 64, 64, 4
    $region41: #{tpu_custom_call.1} parent=1 // pred_fallthru
      _
    // Predicated region
    $region42: #{tpu_custom_call.1} parent=1 // pred_check
      _
    $region43: #{tpu_custom_call.1} parent=1 // pred_check_branch
      %94 = sbr.rel (0) target = $region45
    $region44: #{tpu_custom_call.1} parent=1 // pred_region
      _
    $region45: #{tpu_custom_call.1} parent=1 // pred_fallthru
      _
    // Predicated region
    $region46: #{tpu_custom_call.1} parent=1 // pred_check
      _
    $region47: #{tpu_custom_call.1} parent=1 // pred_check_branch
      %96 = sbr.rel (0) target = $region49
    $region48: #{tpu_custom_call.1} parent=1 // pred_region
      %97 = dma.done [#allocation5], 1152
    $region49: #{tpu_custom_call.1} parent=1 // pred_fallthru
      _
    // Predicated region
    $region50: #{tpu_custom_call.1} parent=1 // pred_check
      _
    $region51: #{tpu_custom_call.1} parent=1 // pred_check_branch
      %99 = sbr.rel (0) target = $region53
    $region52: #{tpu_custom_call.1} parent=1 // pred_region
      %100 = dma.done [#allocation8], 2304
    $region53: #{tpu_custom_call.1} parent=1 // pred_fallthru
      _
    // Predicated region
    $region54: #{tpu_custom_call.1} parent=1 // pred_check
      _
    $region55: #{tpu_custom_call.1} parent=1 // pred_check_branch
      %102 = sbr.rel (0) target = $region57
    $region56: #{tpu_custom_call.1} parent=1 // pred_region
      %103 = dma.done [#allocation8], 6144
    $region57: #{tpu_custom_call.1} parent=1 // pred_fallthru
      _
    // Predicated region
    $region58: #{tpu_custom_call.1} parent=1 // pred_check
      _
    $region59: #{tpu_custom_call.1} parent=1 // pred_check_branch
      %105 = sbr.rel (0) target = $region61
    $region60: #{tpu_custom_call.1} parent=1 // pred_region
      %106 = dma.done [#allocation11], 12288
    $region61: #{tpu_custom_call.1} parent=1 // pred_fallthru
      _
    // Predicated region
    $region62: #{tpu_custom_call.1} parent=1 // pred_check
      _
    $region63: #{tpu_custom_call.1} parent=1 // pred_check_branch
      %108 = sbr.rel (0) target = $region65
    $region64: #{tpu_custom_call.1} parent=1 // pred_region
      %109 = dma.done [#allocation11], 2048
    $region65: #{tpu_custom_call.1} parent=1 // pred_fallthru
      _
    %v111 = vld [vmem:[#allocation4] sm:$0xff]
    %v112 = vld [vmem:[#allocation4 + $0x8] sm:$0xf]
    %v113 = vld [vmem:[#allocation4 + $0xc] sm:$0xff]
    %v114 = vld [vmem:[#allocation4 + $0x14] sm:$0xf]
    %v115 = vld [vmem:[#allocation4 + $0x18] sm:$0xff]
    %v116 = vld [vmem:[#allocation4 + $0x20] sm:$0xf]
    %v117 = vld [vmem:[#allocation4 + $0x24] sm:$0xff]
    %v118 = vld [vmem:[#allocation4 + $0x2c] sm:$0xf]
    %v119 = vld [vmem:[#allocation4 + $0x30] sm:$0xff]
    %v120 = vld [vmem:[#allocation4 + $0x38] sm:$0xf]
    %v121 = vld [vmem:[#allocation4 + $0x3c] sm:$0xff]
    %v122 = vld [vmem:[#allocation4 + $0x44] sm:$0xf]
    %v123 = vld [vmem:[#allocation7] sm:$0xf]
    %v124 = vld [vmem:[#allocation7 + $0x4] sm:$0xf]
    %v125 = vld [vmem:[#allocation7 + $0x8] sm:$0xf]
    %v126 = vld [vmem:[#allocation7 + $0xc] sm:$0xf]
    %v127 = vld [vmem:[#allocation7 + $0x10] sm:$0xf]
    %v128 = vld [vmem:[#allocation7 + $0x14] sm:$0xf]
    %v129 = vld [vmem:[#allocation7 + $0x18] sm:$0xf]
    %v130 = vld [vmem:[#allocation7 + $0x1c] sm:$0xf]
    %v131 = vld [vmem:[#allocation7 + $0x20] sm:$0xf]
    %v132 = vld [vmem:[#allocation7 + $0x24] sm:$0xf]
    %v133 = vld [vmem:[#allocation7 + $0x28] sm:$0xf]
    %v134 = vld [vmem:[#allocation7 + $0x2c] sm:$0xf]
    %v135 = vld [vmem:[#allocation7 + $0x30] sm:$0xf]
    %v136 = vld [vmem:[#allocation7 + $0x34] sm:$0xf]
    %v137 = vld [vmem:[#allocation7 + $0x38] sm:$0xf]
    %v138 = vld [vmem:[#allocation7 + $0x3c] sm:$0xf]
    %v139 = vld [vmem:[#allocation7 + $0x40] sm:$0xf]
    %v140 = vld [vmem:[#allocation7 + $0x44] sm:$0xf]
    %v141 = vld [vmem:[#allocation7 + $0x48] sm:$0xf]
    %v142 = vld [vmem:[#allocation7 + $0x4c] sm:$0xf]
    %v143 = vld [vmem:[#allocation7 + $0x50] sm:$0xf]
    %v144 = vld [vmem:[#allocation7 + $0x54] sm:$0xf]
    %v145 = vld [vmem:[#allocation7 + $0x58] sm:$0xf]
    %v146 = vld [vmem:[#allocation7 + $0x5c] sm:$0xf]
    %v147 = vld [vmem:[#allocation7 + $0x60] sm:$0xf]
    %v148 = vld [vmem:[#allocation7 + $0x64] sm:$0xf]
    %v149 = vld [vmem:[#allocation7 + $0x68] sm:$0xf]
    %v150 = vld [vmem:[#allocation7 + $0x6c] sm:$0xf]
    %v151 = vld [vmem:[#allocation7 + $0x70] sm:$0xf]
    %v152 = vld [vmem:[#allocation7 + $0x74] sm:$0xf]
    %v153 = vld [vmem:[#allocation7 + $0x78] sm:$0xf]
    %v154 = vld [vmem:[#allocation7 + $0x7c] sm:$0xf]
    %v155 = vld [vmem:[#allocation7 + $0x80] sm:$0xf]
    %v156 = vld [vmem:[#allocation7 + $0x84] sm:$0xf]
    %v157 = vld [vmem:[#allocation7 + $0x88] sm:$0xf]
    %v158 = vld [vmem:[#allocation7 + $0x8c] sm:$0xf]
    %v159 = vld [vmem:[%s4] sm:$0x1]
    %v161 = vlaneseq
    %v162 = vshrl.u32 %v161, 7
    %v163 = vsub.s32 0, %v162
    %v164 = vrot.slane %v159, %v163
    %v178 = vunpack.c.l.b16 %v111
    %v179 = vunpack.c.h.b16 %v111
    %v180 = vunpack.c.l.b16 %v112
    %v181 = vunpack.c.l.b16 %v113
    %v182 = vunpack.c.h.b16 %v113
    %v183 = vunpack.c.l.b16 %v114
    %v184 = vunpack.c.l.b16 %v115
    %v185 = vunpack.c.h.b16 %v115
    %v186 = vunpack.c.l.b16 %v116
    %v187 = vunpack.c.l.b16 %v117
    %v188 = vunpack.c.h.b16 %v117
    %v189 = vunpack.c.l.b16 %v118
    %v190 = vunpack.c.l.b16 %v119
    %v191 = vunpack.c.h.b16 %v119
    %v192 = vunpack.c.l.b16 %v120
    %v193 = vunpack.c.l.b16 %v121
    %v194 = vunpack.c.h.b16 %v121
    %v195 = vunpack.c.l.b16 %v122
    %v196 = vpack.c.b16 %v181, %v178
    %v197 = vpack.c.b16 %v182, %v179
    %v198 = vpack.c.b16 %v183, %v180
    %v199 = vpack.c.b16 %v187, %v184
    %v200 = vpack.c.b16 %v188, %v185
    %v201 = vpack.c.b16 %v189, %v186
    %v202 = vpack.c.b16 %v193, %v190
    %v203 = vpack.c.b16 %v194, %v191
    %v204 = vpack.c.b16 %v195, %v192
    %v247 = vunpack.c.l.b16 %v123
    %v248 = vunpack.c.l.b16 %v124
    %v249 = vunpack.c.l.b16 %v125
    %v250 = vunpack.c.l.b16 %v126
    %v251 = vunpack.c.l.b16 %v127
    %v252 = vunpack.c.l.b16 %v128
    %v253 = vunpack.c.l.b16 %v129
    %v254 = vunpack.c.l.b16 %v130
    %v255 = vunpack.c.l.b16 %v131
    %v256 = vunpack.c.l.b16 %v132
    %v257 = vunpack.c.l.b16 %v133
    %v258 = vunpack.c.l.b16 %v134
    %v259 = vunpack.c.l.b16 %v135
    %v260 = vunpack.c.l.b16 %v136
    %v261 = vunpack.c.l.b16 %v137
    %v262 = vunpack.c.l.b16 %v138
    %v263 = vunpack.c.l.b16 %v139
    %v264 = vunpack.c.l.b16 %v140
    %v265 = vunpack.c.l.b16 %v141
    %v266 = vunpack.c.l.b16 %v142
    %v267 = vunpack.c.l.b16 %v143
    %v268 = vunpack.c.l.b16 %v144
    %v269 = vunpack.c.l.b16 %v145
    %v270 = vunpack.c.l.b16 %v146
    %v271 = vunpack.c.l.b16 %v147
    %v272 = vunpack.c.l.b16 %v148
    %v273 = vunpack.c.l.b16 %v149
    %v274 = vunpack.c.l.b16 %v150
    %v275 = vunpack.c.l.b16 %v151
    %v276 = vunpack.c.l.b16 %v152
    %v277 = vunpack.c.l.b16 %v153
    %v278 = vunpack.c.l.b16 %v154
    %v279 = vunpack.c.l.b16 %v155
    %v280 = vunpack.c.l.b16 %v156
    %v281 = vunpack.c.l.b16 %v157
    %v282 = vunpack.c.l.b16 %v158
    %v283 = vpack.c.b16 %v248, %v247
    %v284 = vpack.c.b16 %v250, %v249
    %v285 = vpack.c.b16 %v252, %v251
    %v286 = vpack.c.b16 %v254, %v253
    %v287 = vpack.c.b16 %v256, %v255
    %v288 = vpack.c.b16 %v258, %v257
    %v289 = vpack.c.b16 %v260, %v259
    %v290 = vpack.c.b16 %v262, %v261
    %v291 = vpack.c.b16 %v264, %v263
    %v292 = vpack.c.b16 %v266, %v265
    %v293 = vpack.c.b16 %v268, %v267
    %v294 = vpack.c.b16 %v270, %v269
    %v295 = vpack.c.b16 %v272, %v271
    %v296 = vpack.c.b16 %v274, %v273
    %v297 = vpack.c.b16 %v276, %v275
    %v298 = vpack.c.b16 %v278, %v277
    %v299 = vpack.c.b16 %v280, %v279
    %v300 = vpack.c.b16 %v282, %v281
    %vm319 = vcmask 261120
    %v321 = vsel %vm319, %v198, 0
    %v324 = vsel %vm319, %v201, 0
    %v327 = vsel %vm319, %v204, 0
    %329 = vmatprep.subr.bf16.mxu0 0
    %330 = vmatpush1.bf16.msra.mxu0 %v283
    %331 = vmatprep.subr.bf16.mxu0 0
    %332 = vmatpush1.bf16.msra.mxu0 %v284
    %333 = vmatprep.subr.bf16.mxu0 0
    %334 = vmatpush1.bf16.msra.mxu0 %v285
    %335 = vmatprep.subr.bf16.mxu0 0
    %336 = vmatpush1.bf16.msra.mxu0 %v286
    %337 = vmatprep.subr.bf16.mxu0 0
    %338 = vmatpush1.bf16.msra.mxu0 %v287
    %339 = vmatprep.subr.bf16.mxu0 0
    %340 = vmatpush1.bf16.msra.mxu0 %v288
    %341 = vmatprep.subr.bf16.mxu0 0
    %342 = vmatpush1.bf16.msra.mxu0 %v289
    %343 = vmatprep.subr.bf16.mxu0 0
    %344 = vmatpush1.bf16.msra.mxu0 %v290
    %345 = vmatprep.subr.bf16.mxu0 0
    %346 = vmatpush1.bf16.msra.mxu0 %v291
    %347 = vmatprep.subr.bf16.mxu0 0
    %348 = vmatpush1.bf16.msra.mxu0 %v292
    %349 = vmatprep.subr.bf16.mxu0 0
    %350 = vmatpush1.bf16.msra.mxu0 %v293
    %351 = vmatprep.subr.bf16.mxu0 0
    %352 = vmatpush1.bf16.msra.mxu0 %v294
    %353 = vmatprep.subr.bf16.mxu0 0
    %354 = vmatpush1.bf16.msra.mxu0 %v295
    %355 = vmatprep.subr.bf16.mxu0 0
    %356 = vmatpush1.bf16.msra.mxu0 %v296
    %357 = vmatprep.subr.bf16.mxu0 0
    %358 = vmatpush1.bf16.msra.mxu0 %v297
    %359 = vmatprep.subr.bf16.mxu0 0
    %360 = vmatpush1.bf16.msra.mxu0 %v298
    %361 = vmatprep.mubr.bf16.mxu0 %v197
    %362 = vmatmul.mubr.bf16.gmra.mrb[0].mxu0 %v196
    %v363 = vpop.f32.mrb[0].mxu0
    %v364 = vadd.f32 %v164, %v363
    %v365 = vpop.f32.mrb[0].mxu0
    %v366 = vpop.f32.mrb[0].mxu0
    %v367 = vadd.f32 %v164, %v366
    %v368 = vpop.f32.mrb[0].mxu0
    %369 = vmatprep.mubr.bf16.mxu0 %v200
    %370 = vmatmul.mubr.bf16.gmra.mrb[0].mxu0 %v199
    %v371 = vpop.f32.mrb[0].mxu0
    %v372 = vadd.f32 %v164, %v371
    %v373 = vpop.f32.mrb[0].mxu0
    %v374 = vpop.f32.mrb[0].mxu0
    %v375 = vadd.f32 %v164, %v374
    %v376 = vpop.f32.mrb[0].mxu0
    %377 = vmatprep.mubr.bf16.mxu0 %v203
    %378 = vmatmul.mubr.bf16.gmra.mrb[0].mxu0 %v202
    %v379 = vpop.f32.mrb[0].mxu0
    %v380 = vadd.f32 %v164, %v379
    %v381 = vpop.f32.mrb[0].mxu0
    %v382 = vpop.f32.mrb[0].mxu0
    %v383 = vadd.f32 %v164, %v382
    %v384 = vpop.f32.mrb[0].mxu0
    %385 = vdwg.mxu0
    %386 = vmatprep.subr.bf16.mxu0 0
    %387 = vmatpush1.bf16.msra.mxu0 %v299
    %388 = vmatprep.subr.bf16.mxu0 0
    %389 = vmatpush1.bf16.msra.mxu0 %v300
    %390 = vmatprep.subr.bf16.mxu0 0
    %391 = vmatpush1.bf16.msra.mxu0 0
    %392 = vmatprep.subr.bf16.mxu0 0
    %393 = vmatpush1.bf16.msra.mxu0 0
    %394 = vmatprep.subr.bf16.mxu0 0
    %395 = vmatpush1.bf16.msra.mxu0 0
    %396 = vmatprep.subr.bf16.mxu0 0
    %397 = vmatpush1.bf16.msra.mxu0 0
    %398 = vmatprep.subr.bf16.mxu0 0
    %399 = vmatpush1.bf16.msra.mxu0 0
    %400 = vmatprep.subr.bf16.mxu0 0
    %401 = vmatpush1.bf16.msra.mxu0 0
    %402 = vmatprep.subr.bf16.mxu0 0
    %403 = vmatpush1.bf16.msra.mxu0 0
    %404 = vmatprep.subr.bf16.mxu0 0
    %405 = vmatpush1.bf16.msra.mxu0 0
    %406 = vmatprep.subr.bf16.mxu0 0
    %407 = vmatpush1.bf16.msra.mxu0 0
    %408 = vmatprep.subr.bf16.mxu0 0
    %409 = vmatpush1.bf16.msra.mxu0 0
    %410 = vmatprep.subr.bf16.mxu0 0
    %411 = vmatpush1.bf16.msra.mxu0 0
    %412 = vmatprep.subr.bf16.mxu0 0
    %413 = vmatpush1.bf16.msra.mxu0 0
    %414 = vmatprep.subr.bf16.mxu0 0
    %415 = vmatpush1.bf16.msra.mxu0 0
    %416 = vmatprep.subr.bf16.mxu0 0
    %417 = vmatpush1.bf16.msra.mxu0 0
    %418 = vmatprep.mubr.bf16.mxu0 0
    %419 = vmatmul.mubr.bf16.gmra.mrb[0].mxu0 %v321
    %v420 = vpop.f32.mrb[0].mxu0
    %v421 = vadd.f32 %v364, %v420
    %v422 = vpop.f32.mrb[0].mxu0
    %v423 = vpop.f32.mrb[0].mxu0
    %v424 = vadd.f32 %v367, %v423
    %v425 = vpop.f32.mrb[0].mxu0
    %426 = vmatprep.mubr.bf16.mxu0 0
    %427 = vmatmul.mubr.bf16.gmra.mrb[0].mxu0 %v324
    %v428 = vpop.f32.mrb[0].mxu0
    %v429 = vadd.f32 %v372, %v428
    %v430 = vpop.f32.mrb[0].mxu0
    %v431 = vpop.f32.mrb[0].mxu0
    %v432 = vadd.f32 %v375, %v431
    %v433 = vpop.f32.mrb[0].mxu0
    %434 = vmatprep.mubr.bf16.mxu0 0
    %435 = vmatmul.mubr.bf16.gmra.mrb[0].mxu0 %v327
    %v436 = vpop.f32.mrb[0].mxu0
    %v437 = vadd.f32 %v380, %v436
    %v438 = vpop.f32.mrb[0].mxu0
    %v439 = vpop.f32.mrb[0].mxu0
    %v440 = vadd.f32 %v383, %v439
    %v441 = vpop.f32.mrb[0].mxu0
    %442 = vdwg.mxu0
    %vm443 = vcmp.gt.f32.partialorder %v421, 0.0
    %vm444 = vcmp.gt.f32.partialorder %v424, 0.0
    %vm445 = vcmp.gt.f32.partialorder %v429, 0.0
    %vm446 = vcmp.gt.f32.partialorder %v432, 0.0
    %vm447 = vcmp.gt.f32.partialorder %v437, 0.0
    %vm448 = vcmp.gt.f32.partialorder %v440, 0.0
    %v449 = vmin.f32 %v421, 0.0
    %v450 = vmin.f32 %v424, 0.0
    %v451 = vmin.f32 %v429, 0.0
    %v452 = vmin.f32 %v432, 0.0
    %v453 = vmin.f32 %v437, 0.0
    %v454 = vmin.f32 %v440, 0.0
    %v455 = vmul.f32 %v449, 1.442695
    %v456 = vpow.pop %v455
    %v457 = vmul.f32 %v450, 1.442695
    %v458 = vpow.pop %v457
    %v459 = vmul.f32 %v451, 1.442695
    %v460 = vpow.pop %v459
    %v461 = vmul.f32 %v452, 1.442695
    %v462 = vpow.pop %v461
    %v463 = vmul.f32 %v453, 1.442695
    %v464 = vpow.pop %v463
    %v465 = vmul.f32 %v454, 1.442695
    %v466 = vpow.pop %v465
    %v467 = vsub.f32 %v456, 1.0
    %v468 = vsub.f32 %v458, 1.0
    %v469 = vsub.f32 %v460, 1.0
    %v470 = vsub.f32 %v462, 1.0
    %v471 = vsub.f32 %v464, 1.0
    %v472 = vsub.f32 %v466, 1.0
    %v473 = vsel %vm443, %v421, %v467
    %v474 = vsel %vm444, %v424, %v468
    %v475 = vsel %vm445, %v429, %v469
    %v476 = vsel %vm446, %v432, %v470
    %v477 = vsel %vm447, %v437, %v471
    %v478 = vsel %vm448, %v440, %v472
    %v479 = vpack.c.bf16 %v474, %v473
    %v480 = vpack.c.bf16 %v476, %v475
    %v481 = vpack.c.bf16 %v478, %v477
    %v482 = vld [vmem:[#allocation9] sm:$0xff]
    %v483 = vld [vmem:[#allocation9 + $0x8] sm:$0xff]
    %v484 = vld [vmem:[#allocation9 + $0x10] sm:$0xff]
    %v485 = vld [vmem:[#allocation9 + $0x18] sm:$0xff]
    %v486 = vld [vmem:[#allocation9 + $0x20] sm:$0xff]
    %v487 = vld [vmem:[#allocation9 + $0x28] sm:$0xff]
    %v488 = vld [vmem:[#allocation9 + $0x30] sm:$0xff]
    %v489 = vld [vmem:[#allocation9 + $0x38] sm:$0xff]
    %v490 = vld [vmem:[#allocation9 + $0x40] sm:$0xff]
    %v491 = vld [vmem:[#allocation9 + $0x48] sm:$0xff]
    %v492 = vld [vmem:[#allocation9 + $0x50] sm:$0xff]
    %v493 = vld [vmem:[#allocation9 + $0x58] sm:$0xff]
    %v494 = vld [vmem:[#allocation9 + $0x60] sm:$0xff]
    %v495 = vld [vmem:[#allocation9 + $0x68] sm:$0xff]
    %v496 = vld [vmem:[#allocation9 + $0x70] sm:$0xff]
    %v497 = vld [vmem:[#allocation9 + $0x78] sm:$0xff]
    %v498 = vld [vmem:[#allocation9 + $0x80] sm:$0xff]
    %v499 = vld [vmem:[#allocation9 + $0x88] sm:$0xff]
    %v500 = vld [vmem:[#allocation9 + $0x90] sm:$0xff]
    %v501 = vld [vmem:[#allocation9 + $0x98] sm:$0xff]
    %v502 = vld [vmem:[#allocation9 + $0xa0] sm:$0xff]
    %v503 = vld [vmem:[#allocation9 + $0xa8] sm:$0xff]
    %v504 = vld [vmem:[#allocation9 + $0xb0] sm:$0xff]
    %v505 = vld [vmem:[#allocation9 + $0xb8] sm:$0xff]
    %v506 = vld [vmem:[#allocation9 + $0xc0] sm:$0xff]
    %v507 = vld [vmem:[#allocation9 + $0xc8] sm:$0xff]
    %v508 = vld [vmem:[#allocation9 + $0xd0] sm:$0xff]
    %v509 = vld [vmem:[#allocation9 + $0xd8] sm:$0xff]
    %v510 = vld [vmem:[#allocation9 + $0xe0] sm:$0xff]
    %v511 = vld [vmem:[#allocation9 + $0xe8] sm:$0xff]
    %v512 = vld [vmem:[#allocation9 + $0xf0] sm:$0xff]
    %v513 = vld [vmem:[#allocation9 + $0xf8] sm:$0xff]
    %v514 = vld [vmem:[#allocation9 + $0x100] sm:$0xff]
    %v515 = vld [vmem:[#allocation9 + $0x108] sm:$0xff]
    %v516 = vld [vmem:[#allocation9 + $0x110] sm:$0xff]
    %v517 = vld [vmem:[#allocation9 + $0x118] sm:$0xff]
    %v518 = vld [vmem:[#allocation9 + $0x120] sm:$0xff]
    %v519 = vld [vmem:[#allocation9 + $0x128] sm:$0xff]
    %v520 = vld [vmem:[#allocation9 + $0x130] sm:$0xff]
    %v521 = vld [vmem:[#allocation9 + $0x138] sm:$0xff]
    %v522 = vld [vmem:[#allocation9 + $0x140] sm:$0xff]
    %v523 = vld [vmem:[#allocation9 + $0x148] sm:$0xff]
    %v524 = vld [vmem:[#allocation9 + $0x150] sm:$0xff]
    %v525 = vld [vmem:[#allocation9 + $0x158] sm:$0xff]
    %v526 = vld [vmem:[#allocation9 + $0x160] sm:$0xff]
    %v527 = vld [vmem:[#allocation9 + $0x168] sm:$0xff]
    %v528 = vld [vmem:[#allocation9 + $0x170] sm:$0xff]
    %v529 = vld [vmem:[#allocation9 + $0x178] sm:$0xff]
    %v530 = vld [vmem:[%s6] sm:$0x3f]
    %v532 = vlaneseq
    %v533 = vshrl.u32 %v532, 7
    %v534 = vsub.s32 0, %v533
    %v535 = vrot.slane %v530, %v534
    %v536 = vlaneseq
    %v537 = vshrl.u32 %v536, 7
    %v538 = vsub.s32 1, %v537
    %v539 = vrot.slane %v530, %v538
    %v540 = vlaneseq
    %v541 = vshrl.u32 %v540, 7
    %v542 = vsub.s32 2, %v541
    %v543 = vrot.slane %v530, %v542
    %v544 = vlaneseq
    %v545 = vshrl.u32 %v544, 7
    %v546 = vsub.s32 3, %v545
    %v547 = vrot.slane %v530, %v546
    %v548 = vlaneseq
    %v549 = vshrl.u32 %v548, 7
    %v550 = vsub.s32 4, %v549
    %v551 = vrot.slane %v530, %v550
    %v552 = vlaneseq
    %v553 = vshrl.u32 %v552, 7
    %v554 = vsub.s32 5, %v553
    %v555 = vrot.slane %v530, %v554
    %v610 = vunpack.c.l.b16 %v482
    %v611 = vunpack.c.h.b16 %v482
    %v612 = vunpack.c.l.b16 %v483
    %v613 = vunpack.c.h.b16 %v483
    %v614 = vunpack.c.l.b16 %v484
    %v615 = vunpack.c.h.b16 %v484
    %v616 = vunpack.c.l.b16 %v485
    %v617 = vunpack.c.h.b16 %v485
    %v618 = vunpack.c.l.b16 %v486
    %v619 = vunpack.c.h.b16 %v486
    %v620 = vunpack.c.l.b16 %v487
    %v621 = vunpack.c.h.b16 %v487
    %v622 = vunpack.c.l.b16 %v488
    %v623 = vunpack.c.h.b16 %v488
    %v624 = vunpack.c.l.b16 %v489
    %v625 = vunpack.c.h.b16 %v489
    %v626 = vunpack.c.l.b16 %v490
    %v627 = vunpack.c.h.b16 %v490
    %v628 = vunpack.c.l.b16 %v491
    %v629 = vunpack.c.h.b16 %v491
    %v630 = vunpack.c.l.b16 %v492
    %v631 = vunpack.c.h.b16 %v492
    %v632 = vunpack.c.l.b16 %v493
    %v633 = vunpack.c.h.b16 %v493
    %v634 = vunpack.c.l.b16 %v494
    %v635 = vunpack.c.h.b16 %v494
    %v636 = vunpack.c.l.b16 %v495
    %v637 = vunpack.c.h.b16 %v495
    %v638 = vunpack.c.l.b16 %v496
    %v639 = vunpack.c.h.b16 %v496
    %v640 = vunpack.c.l.b16 %v497
    %v641 = vunpack.c.h.b16 %v497
    %v642 = vunpack.c.l.b16 %v498
    %v643 = vunpack.c.h.b16 %v498
    %v644 = vunpack.c.l.b16 %v499
    %v645 = vunpack.c.h.b16 %v499
    %v646 = vunpack.c.l.b16 %v500
    %v647 = vunpack.c.h.b16 %v500
    %v648 = vunpack.c.l.b16 %v501
    %v649 = vunpack.c.h.b16 %v501
    %v650 = vunpack.c.l.b16 %v502
    %v651 = vunpack.c.h.b16 %v502
    %v652 = vunpack.c.l.b16 %v503
    %v653 = vunpack.c.h.b16 %v503
    %v654 = vunpack.c.l.b16 %v504
    %v655 = vunpack.c.h.b16 %v504
    %v656 = vunpack.c.l.b16 %v505
    %v657 = vunpack.c.h.b16 %v505
    %v658 = vunpack.c.l.b16 %v506
    %v659 = vunpack.c.h.b16 %v506
    %v660 = vunpack.c.l.b16 %v507
    %v661 = vunpack.c.h.b16 %v507
    %v662 = vunpack.c.l.b16 %v508
    %v663 = vunpack.c.h.b16 %v508
    %v664 = vunpack.c.l.b16 %v509
    %v665 = vunpack.c.h.b16 %v509
    %v666 = vunpack.c.l.b16 %v510
    %v667 = vunpack.c.h.b16 %v510
    %v668 = vunpack.c.l.b16 %v511
    %v669 = vunpack.c.h.b16 %v511
    %v670 = vunpack.c.l.b16 %v512
    %v671 = vunpack.c.h.b16 %v512
    %v672 = vunpack.c.l.b16 %v513
    %v673 = vunpack.c.h.b16 %v513
    %v674 = vunpack.c.l.b16 %v514
    %v675 = vunpack.c.h.b16 %v514
    %v676 = vunpack.c.l.b16 %v515
    %v677 = vunpack.c.h.b16 %v515
    %v678 = vunpack.c.l.b16 %v516
    %v679 = vunpack.c.h.b16 %v516
    %v680 = vunpack.c.l.b16 %v517
    %v681 = vunpack.c.h.b16 %v517
    %v682 = vunpack.c.l.b16 %v518
    %v683 = vunpack.c.h.b16 %v518
    %v684 = vunpack.c.l.b16 %v519
    %v685 = vunpack.c.h.b16 %v519
    %v686 = vunpack.c.l.b16 %v520
    %v687 = vunpack.c.h.b16 %v520
    %v688 = vunpack.c.l.b16 %v521
    %v689 = vunpack.c.h.b16 %v521
    %v690 = vunpack.c.l.b16 %v522
    %v691 = vunpack.c.h.b16 %v522
    %v692 = vunpack.c.l.b16 %v523
    %v693 = vunpack.c.h.b16 %v523
    %v694 = vunpack.c.l.b16 %v524
    %v695 = vunpack.c.h.b16 %v524
    %v696 = vunpack.c.l.b16 %v525
    %v697 = vunpack.c.h.b16 %v525
    %v698 = vunpack.c.l.b16 %v526
    %v699 = vunpack.c.h.b16 %v526
    %v700 = vunpack.c.l.b16 %v527
    %v701 = vunpack.c.h.b16 %v527
    %v702 = vunpack.c.l.b16 %v528
    %v703 = vunpack.c.h.b16 %v528
    %v704 = vunpack.c.l.b16 %v529
    %v705 = vunpack.c.h.b16 %v529
    %v706 = vpack.c.b16 %v616, %v610
    %v707 = vpack.c.b16 %v617, %v611
    %v708 = vpack.c.b16 %v618, %v612
    %v709 = vpack.c.b16 %v619, %v613
    %v710 = vpack.c.b16 %v620, %v614
    %v711 = vpack.c.b16 %v621, %v615
    %v712 = vpack.c.b16 %v628, %v622
    %v713 = vpack.c.b16 %v629, %v623
    %v714 = vpack.c.b16 %v630, %v624
    %v715 = vpack.c.b16 %v631, %v625
    %v716 = vpack.c.b16 %v632, %v626
    %v717 = vpack.c.b16 %v633, %v627
    %v718 = vpack.c.b16 %v640, %v634
    %v719 = vpack.c.b16 %v641, %v635
    %v720 = vpack.c.b16 %v642, %v636
    %v721 = vpack.c.b16 %v643, %v637
    %v722 = vpack.c.b16 %v644, %v638
    %v723 = vpack.c.b16 %v645, %v639
    %v724 = vpack.c.b16 %v652, %v646
    %v725 = vpack.c.b16 %v653, %v647
    %v726 = vpack.c.b16 %v654, %v648
    %v727 = vpack.c.b16 %v655, %v649
    %v728 = vpack.c.b16 %v656, %v650
    %v729 = vpack.c.b16 %v657, %v651
    %v730 = vpack.c.b16 %v664, %v658
    %v731 = vpack.c.b16 %v665, %v659
    %v732 = vpack.c.b16 %v666, %v660
    %v733 = vpack.c.b16 %v667, %v661
    %v734 = vpack.c.b16 %v668, %v662
    %v735 = vpack.c.b16 %v669, %v663
    %v736 = vpack.c.b16 %v676, %v670
    %v737 = vpack.c.b16 %v677, %v671
    %v738 = vpack.c.b16 %v678, %v672
    %v739 = vpack.c.b16 %v679, %v673
    %v740 = vpack.c.b16 %v680, %v674
    %v741 = vpack.c.b16 %v681, %v675
    %v742 = vpack.c.b16 %v688, %v682
    %v743 = vpack.c.b16 %v689, %v683
    %v744 = vpack.c.b16 %v690, %v684
    %v745 = vpack.c.b16 %v691, %v685
    %v746 = vpack.c.b16 %v692, %v686
    %v747 = vpack.c.b16 %v693, %v687
    %v748 = vpack.c.b16 %v700, %v694
    %v749 = vpack.c.b16 %v701, %v695
    %v750 = vpack.c.b16 %v702, %v696
    %v751 = vpack.c.b16 %v703, %v697
    %v752 = vpack.c.b16 %v704, %v698
    %v753 = vpack.c.b16 %v705, %v699
    %802 = vmatprep.subr.bf16.mxu0 %v707
    %803 = vmatpush1.bf16.msra.mxu0 %v706
    %804 = vmatprep.subr.bf16.mxu0 %v713
    %805 = vmatpush1.bf16.msra.mxu0 %v712
    %806 = vmatprep.subr.bf16.mxu0 %v719
    %807 = vmatpush1.bf16.msra.mxu0 %v718
    %808 = vmatprep.subr.bf16.mxu0 %v725
    %809 = vmatpush1.bf16.msra.mxu0 %v724
    %810 = vmatprep.subr.bf16.mxu0 %v731
    %811 = vmatpush1.bf16.msra.mxu0 %v730
    %812 = vmatprep.subr.bf16.mxu0 %v737
    %813 = vmatpush1.bf16.msra.mxu0 %v736
    %814 = vmatprep.subr.bf16.mxu0 %v743
    %815 = vmatpush1.bf16.msra.mxu0 %v742
    %816 = vmatprep.subr.bf16.mxu0 %v749
    %817 = vmatpush1.bf16.msra.mxu0 %v748
    %818 = vmatprep.subr.bf16.mxu0 0
    %819 = vmatpush1.bf16.msra.mxu0 0
    %820 = vmatprep.subr.bf16.mxu0 0
    %821 = vmatpush1.bf16.msra.mxu0 0
    %822 = vmatprep.subr.bf16.mxu0 0
    %823 = vmatpush1.bf16.msra.mxu0 0
    %824 = vmatprep.subr.bf16.mxu0 0
    %825 = vmatpush1.bf16.msra.mxu0 0
    %826 = vmatprep.subr.bf16.mxu0 0
    %827 = vmatpush1.bf16.msra.mxu0 0
    %828 = vmatprep.subr.bf16.mxu0 0
    %829 = vmatpush1.bf16.msra.mxu0 0
    %830 = vmatprep.subr.bf16.mxu0 0
    %831 = vmatpush1.bf16.msra.mxu0 0
    %832 = vmatprep.subr.bf16.mxu0 0
    %833 = vmatpush1.bf16.msra.mxu0 0
    %834 = vmatprep.mubr.bf16.mxu0 0
    %835 = vmatmul.mubr.bf16.gmra.mrb[0].mxu0 %v479
    %v836 = vpop.f32.mrb[0].mxu0
    %v837 = vadd.f32 %v535, %v836
    %v838 = vpop.f32.mrb[0].mxu0
    %v839 = vadd.f32 %v539, %v838
    %v840 = vpop.f32.mrb[0].mxu0
    %v841 = vadd.f32 %v535, %v840
    %v842 = vpop.f32.mrb[0].mxu0
    %v843 = vadd.f32 %v539, %v842
    %844 = vmatprep.mubr.bf16.mxu0 0
    %845 = vmatmul.mubr.bf16.gmra.mrb[0].mxu0 %v480
    %v846 = vpop.f32.mrb[0].mxu0
    %v847 = vadd.f32 %v535, %v846
    %v848 = vpop.f32.mrb[0].mxu0
    %v849 = vadd.f32 %v539, %v848
    %v850 = vpop.f32.mrb[0].mxu0
    %v851 = vadd.f32 %v535, %v850
    %v852 = vpop.f32.mrb[0].mxu0
    %v853 = vadd.f32 %v539, %v852
    %854 = vmatprep.mubr.bf16.mxu0 0
    %855 = vmatmul.mubr.bf16.gmra.mrb[0].mxu0 %v481
    %v856 = vpop.f32.mrb[0].mxu0
    %v857 = vadd.f32 %v535, %v856
    %v858 = vpop.f32.mrb[0].mxu0
    %v859 = vadd.f32 %v539, %v858
    %v860 = vpop.f32.mrb[0].mxu0
    %v861 = vadd.f32 %v535, %v860
    %v862 = vpop.f32.mrb[0].mxu0
    %v863 = vadd.f32 %v539, %v862
    %864 = vdwg.mxu0
    %865 = vmatprep.subr.bf16.mxu0 %v709
    %866 = vmatpush1.bf16.msra.mxu0 %v708
    %867 = vmatprep.subr.bf16.mxu0 %v715
    %868 = vmatpush1.bf16.msra.mxu0 %v714
    %869 = vmatprep.subr.bf16.mxu0 %v721
    %870 = vmatpush1.bf16.msra.mxu0 %v720
    %871 = vmatprep.subr.bf16.mxu0 %v727
    %872 = vmatpush1.bf16.msra.mxu0 %v726
    %873 = vmatprep.subr.bf16.mxu0 %v733
    %874 = vmatpush1.bf16.msra.mxu0 %v732
    %875 = vmatprep.subr.bf16.mxu0 %v739
    %876 = vmatpush1.bf16.msra.mxu0 %v738
    %877 = vmatprep.subr.bf16.mxu0 %v745
    %878 = vmatpush1.bf16.msra.mxu0 %v744
    %879 = vmatprep.subr.bf16.mxu0 %v751
    %880 = vmatpush1.bf16.msra.mxu0 %v750
    %881 = vmatprep.subr.bf16.mxu0 0
    %882 = vmatpush1.bf16.msra.mxu0 0
    %883 = vmatprep.subr.bf16.mxu0 0
    %884 = vmatpush1.bf16.msra.mxu0 0
    %885 = vmatprep.subr.bf16.mxu0 0
    %886 = vmatpush1.bf16.msra.mxu0 0
    %887 = vmatprep.subr.bf16.mxu0 0
    %888 = vmatpush1.bf16.msra.mxu0 0
    %889 = vmatprep.subr.bf16.mxu0 0
    %890 = vmatpush1.bf16.msra.mxu0 0
    %891 = vmatprep.subr.bf16.mxu0 0
    %892 = vmatpush1.bf16.msra.mxu0 0
    %893 = vmatprep.subr.bf16.mxu0 0
    %894 = vmatpush1.bf16.msra.mxu0 0
    %895 = vmatprep.subr.bf16.mxu0 0
    %896 = vmatpush1.bf16.msra.mxu0 0
    %897 = vmatprep.mubr.bf16.mxu0 0
    %898 = vmatmul.mubr.bf16.gmra.mrb[0].mxu0 %v479
    %v899 = vpop.f32.mrb[0].mxu0
    %v900 = vadd.f32 %v543, %v899
    %v901 = vpop.f32.mrb[0].mxu0
    %v902 = vadd.f32 %v547, %v901
    %v903 = vpop.f32.mrb[0].mxu0
    %v904 = vadd.f32 %v543, %v903
    %v905 = vpop.f32.mrb[0].mxu0
    %v906 = vadd.f32 %v547, %v905
    %907 = vmatprep.mubr.bf16.mxu0 0
    %908 = vmatmul.mubr.bf16.gmra.mrb[0].mxu0 %v480
    %v909 = vpop.f32.mrb[0].mxu0
    %v910 = vadd.f32 %v543, %v909
    %v911 = vpop.f32.mrb[0].mxu0
    %v912 = vadd.f32 %v547, %v911
    %v913 = vpop.f32.mrb[0].mxu0
    %v914 = vadd.f32 %v543, %v913
    %v915 = vpop.f32.mrb[0].mxu0
    %v916 = vadd.f32 %v547, %v915
    %917 = vmatprep.mubr.bf16.mxu0 0
    %918 = vmatmul.mubr.bf16.gmra.mrb[0].mxu0 %v481
    %v919 = vpop.f32.mrb[0].mxu0
    %v920 = vadd.f32 %v543, %v919
    %v921 = vpop.f32.mrb[0].mxu0
    %v922 = vadd.f32 %v547, %v921
    %v923 = vpop.f32.mrb[0].mxu0
    %v924 = vadd.f32 %v543, %v923
    %v925 = vpop.f32.mrb[0].mxu0
    %v926 = vadd.f32 %v547, %v925
    %927 = vdwg.mxu0
    %928 = vmatprep.subr.bf16.mxu0 %v711
    %929 = vmatpush1.bf16.msra.mxu0 %v710
    %930 = vmatprep.subr.bf16.mxu0 %v717
    %931 = vmatpush1.bf16.msra.mxu0 %v716
    %932 = vmatprep.subr.bf16.mxu0 %v723
    %933 = vmatpush1.bf16.msra.mxu0 %v722
    %934 = vmatprep.subr.bf16.mxu0 %v729
    %935 = vmatpush1.bf16.msra.mxu0 %v728
    %936 = vmatprep.subr.bf16.mxu0 %v735
    %937 = vmatpush1.bf16.msra.mxu0 %v734
    %938 = vmatprep.subr.bf16.mxu0 %v741
    %939 = vmatpush1.bf16.msra.mxu0 %v740
    %940 = vmatprep.subr.bf16.mxu0 %v747
    %941 = vmatpush1.bf16.msra.mxu0 %v746
    %942 = vmatprep.subr.bf16.mxu0 %v753
    %943 = vmatpush1.bf16.msra.mxu0 %v752
    %944 = vmatprep.subr.bf16.mxu0 0
    %945 = vmatpush1.bf16.msra.mxu0 0
    %946 = vmatprep.subr.bf16.mxu0 0
    %947 = vmatpush1.bf16.msra.mxu0 0
    %948 = vmatprep.subr.bf16.mxu0 0
    %949 = vmatpush1.bf16.msra.mxu0 0
    %950 = vmatprep.subr.bf16.mxu0 0
    %951 = vmatpush1.bf16.msra.mxu0 0
    %952 = vmatprep.subr.bf16.mxu0 0
    %953 = vmatpush1.bf16.msra.mxu0 0
    %954 = vmatprep.subr.bf16.mxu0 0
    %955 = vmatpush1.bf16.msra.mxu0 0
    %956 = vmatprep.subr.bf16.mxu0 0
    %957 = vmatpush1.bf16.msra.mxu0 0
    %958 = vmatprep.subr.bf16.mxu0 0
    %959 = vmatpush1.bf16.msra.mxu0 0
    %960 = vmatprep.mubr.bf16.mxu0 0
    %961 = vmatmul.mubr.bf16.gmra.mrb[0].mxu0 %v479
    %v962 = vpop.f32.mrb[0].mxu0
    %v963 = vadd.f32 %v551, %v962
    %v964 = vpop.f32.mrb[0].mxu0
    %v965 = vadd.f32 %v555, %v964
    %v966 = vpop.f32.mrb[0].mxu0
    %v967 = vadd.f32 %v551, %v966
    %v968 = vpop.f32.mrb[0].mxu0
    %v969 = vadd.f32 %v555, %v968
    %970 = vmatprep.mubr.bf16.mxu0 0
    %971 = vmatmul.mubr.bf16.gmra.mrb[0].mxu0 %v480
    %v972 = vpop.f32.mrb[0].mxu0
    %v973 = vadd.f32 %v551, %v972
    %v974 = vpop.f32.mrb[0].mxu0
    %v975 = vadd.f32 %v555, %v974
    %v976 = vpop.f32.mrb[0].mxu0
    %v977 = vadd.f32 %v551, %v976
    %v978 = vpop.f32.mrb[0].mxu0
    %v979 = vadd.f32 %v555, %v978
    %980 = vmatprep.mubr.bf16.mxu0 0
    %981 = vmatmul.mubr.bf16.gmra.mrb[0].mxu0 %v481
    %v982 = vpop.f32.mrb[0].mxu0
    %v983 = vadd.f32 %v551, %v982
    %v984 = vpop.f32.mrb[0].mxu0
    %v985 = vadd.f32 %v555, %v984
    %v986 = vpop.f32.mrb[0].mxu0
    %v987 = vadd.f32 %v551, %v986
    %v988 = vpop.f32.mrb[0].mxu0
    %v989 = vadd.f32 %v555, %v988
    %990 = vdwg.mxu0
    %991 = vst [vmem:[#allocation2] sm:$0xff] %v837
    %992 = vst [vmem:[#allocation2 + $0x8] sm:$0xff] %v839
    %993 = vst [vmem:[#allocation2 + $0x10] sm:$0xff] %v900
    %994 = vst [vmem:[#allocation2 + $0x18] sm:$0xff] %v902
    %995 = vst [vmem:[#allocation2 + $0x20] sm:$0xff] %v963
    %996 = vst [vmem:[#allocation2 + $0x28] sm:$0xff] %v965
    %997 = vst [vmem:[#allocation2 + $0x30] sm:$0xff] %v841
    %998 = vst [vmem:[#allocation2 + $0x38] sm:$0xff] %v843
    %999 = vst [vmem:[#allocation2 + $0x40] sm:$0xff] %v904
    %1000 = vst [vmem:[#allocation2 + $0x48] sm:$0xff] %v906
    %1001 = vst [vmem:[#allocation2 + $0x50] sm:$0xff] %v967
    %1002 = vst [vmem:[#allocation2 + $0x58] sm:$0xff] %v969
    %1003 = vst [vmem:[#allocation2 + $0x60] sm:$0xff] %v847
    %1004 = vst [vmem:[#allocation2 + $0x68] sm:$0xff] %v849
    %1005 = vst [vmem:[#allocation2 + $0x70] sm:$0xff] %v910
    %1006 = vst [vmem:[#allocation2 + $0x78] sm:$0xff] %v912
    %1007 = vst [vmem:[#allocation2 + $0x80] sm:$0xff] %v973
    %1008 = vst [vmem:[#allocation2 + $0x88] sm:$0xff] %v975
    %1009 = vst [vmem:[#allocation2 + $0x90] sm:$0xff] %v851
    %1010 = vst [vmem:[#allocation2 + $0x98] sm:$0xff] %v853
    %1011 = vst [vmem:[#allocation2 + $0xa0] sm:$0xff] %v914
    %1012 = vst [vmem:[#allocation2 + $0xa8] sm:$0xff] %v916
    %1013 = vst [vmem:[#allocation2 + $0xb0] sm:$0xff] %v977
    %1014 = vst [vmem:[#allocation2 + $0xb8] sm:$0xff] %v979
    %1015 = vst [vmem:[#allocation2 + $0xc0] sm:$0xff] %v857
    %1016 = vst [vmem:[#allocation2 + $0xc8] sm:$0xff] %v859
    %1017 = vst [vmem:[#allocation2 + $0xd0] sm:$0xff] %v920
    %1018 = vst [vmem:[#allocation2 + $0xd8] sm:$0xff] %v922
    %1019 = vst [vmem:[#allocation2 + $0xe0] sm:$0xff] %v983
    %1020 = vst [vmem:[#allocation2 + $0xe8] sm:$0xff] %v985
    %1021 = vst [vmem:[#allocation2 + $0xf0] sm:$0xff] %v861
    %1022 = vst [vmem:[#allocation2 + $0xf8] sm:$0xff] %v863
    %1023 = vst [vmem:[#allocation2 + $0x100] sm:$0xff] %v924
    %1024 = vst [vmem:[#allocation2 + $0x108] sm:$0xff] %v926
    %1025 = vst [vmem:[#allocation2 + $0x110] sm:$0xff] %v987
    %1026 = vst [vmem:[#allocation2 + $0x118] sm:$0xff] %v989
    %v1027 = vld [vmem:[%s2] sm:$0xff]
    %v1028 = vld [vmem:[%s2 + $0x8] sm:$0xff]
    %v1029 = vld [vmem:[#allocation2] sm:$0xff]
    %v1030 = vld [vmem:[#allocation2 + $0x8] sm:$0xff]
    %v1031 = vld [vmem:[#allocation2 + $0x10] sm:$0xff]
    %v1032 = vld [vmem:[#allocation2 + $0x18] sm:$0xff]
    %v1033 = vld [vmem:[#allocation2 + $0x20] sm:$0xff]
    %v1034 = vld [vmem:[#allocation2 + $0x28] sm:$0xff]
    %v1035 = vpack.c.bf16 %v1027, %v1027
    %v1036 = vpack.c.bf16 %v1028, %v1028
    %v1037 = vld [vmem:[#allocation10] sm:$0xff]
    %v1038 = vld [vmem:[#allocation10 + $0x8] sm:$0xff]
    %v1039 = vld [vmem:[#allocation10 + $0x10] sm:$0xff]
    %v1040 = vld [vmem:[#allocation10 + $0x18] sm:$0xff]
    %v1041 = vld [vmem:[#allocation10 + $0x20] sm:$0xff]
    %v1042 = vld [vmem:[#allocation10 + $0x28] sm:$0xff]
    %v1043 = vld [vmem:[#allocation10 + $0x30] sm:$0xff]
    %v1044 = vld [vmem:[#allocation10 + $0x38] sm:$0xff]
    %v1045 = vld [vmem:[#allocation10 + $0x40] sm:$0xff]
    %v1046 = vld [vmem:[#allocation10 + $0x48] sm:$0xff]
    %v1047 = vld [vmem:[#allocation10 + $0x50] sm:$0xff]
    %v1048 = vld [vmem:[#allocation10 + $0x58] sm:$0xff]
    %v1049 = vld [vmem:[#allocation10 + $0x60] sm:$0xff]
    %v1050 = vld [vmem:[#allocation10 + $0x68] sm:$0xff]
    %v1051 = vld [vmem:[#allocation10 + $0x70] sm:$0xff]
    %v1052 = vld [vmem:[#allocation10 + $0x78] sm:$0xff]
    %v1053 = vld [vmem:[#allocation10 + $0x80] sm:$0xff]
    %v1054 = vld [vmem:[#allocation10 + $0x88] sm:$0xff]
    %v1055 = vld [vmem:[#allocation10 + $0x90] sm:$0xff]
    %v1056 = vld [vmem:[#allocation10 + $0x98] sm:$0xff]
    %v1057 = vld [vmem:[#allocation10 + $0xa0] sm:$0xff]
    %v1058 = vld [vmem:[#allocation10 + $0xa8] sm:$0xff]
    %v1059 = vld [vmem:[#allocation10 + $0xb0] sm:$0xff]
    %v1060 = vld [vmem:[#allocation10 + $0xb8] sm:$0xff]
    %v1061 = vld [vmem:[#allocation10 + $0xc0] sm:$0xff]
    %v1062 = vld [vmem:[#allocation10 + $0xc8] sm:$0xff]
    %v1063 = vld [vmem:[#allocation10 + $0xd0] sm:$0xff]
    %v1064 = vld [vmem:[#allocation10 + $0xd8] sm:$0xff]
    %v1065 = vld [vmem:[#allocation10 + $0xe0] sm:$0xff]
    %v1066 = vld [vmem:[#allocation10 + $0xe8] sm:$0xff]
    %v1067 = vld [vmem:[#allocation10 + $0xf0] sm:$0xff]
    %v1068 = vld [vmem:[#allocation10 + $0xf8] sm:$0xff]
    %v1069 = vld [vmem:[#allocation10 + $0x100] sm:$0xff]
    %v1070 = vld [vmem:[#allocation10 + $0x108] sm:$0xff]
    %v1071 = vld [vmem:[#allocation10 + $0x110] sm:$0xff]
    %v1072 = vld [vmem:[#allocation10 + $0x118] sm:$0xff]
    %v1073 = vld [vmem:[#allocation10 + $0x120] sm:$0xff]
    %v1074 = vld [vmem:[#allocation10 + $0x128] sm:$0xff]
    %v1075 = vld [vmem:[#allocation10 + $0x130] sm:$0xff]
    %v1076 = vld [vmem:[#allocation10 + $0x138] sm:$0xff]
    %v1077 = vld [vmem:[#allocation10 + $0x140] sm:$0xff]
    %v1078 = vld [vmem:[#allocation10 + $0x148] sm:$0xff]
    %v1079 = vld [vmem:[#allocation10 + $0x150] sm:$0xff]
    %v1080 = vld [vmem:[#allocation10 + $0x158] sm:$0xff]
    %v1081 = vld [vmem:[#allocation10 + $0x160] sm:$0xff]
    %v1082 = vld [vmem:[#allocation10 + $0x168] sm:$0xff]
    %v1083 = vld [vmem:[#allocation10 + $0x170] sm:$0xff]
    %v1084 = vld [vmem:[#allocation10 + $0x178] sm:$0xff]
    %v1085 = vld [vmem:[#allocation10 + $0x180] sm:$0xff]
    %v1086 = vld [vmem:[#allocation10 + $0x188] sm:$0xff]
    %v1087 = vld [vmem:[#allocation10 + $0x190] sm:$0xff]
    %v1088 = vld [vmem:[#allocation10 + $0x198] sm:$0xff]
    %v1089 = vld [vmem:[#allocation10 + $0x1a0] sm:$0xff]
    %v1090 = vld [vmem:[#allocation10 + $0x1a8] sm:$0xff]
    %v1091 = vld [vmem:[#allocation10 + $0x1b0] sm:$0xff]
    %v1092 = vld [vmem:[#allocation10 + $0x1b8] sm:$0xff]
    %v1093 = vld [vmem:[#allocation10 + $0x1c0] sm:$0xff]
    %v1094 = vld [vmem:[#allocation10 + $0x1c8] sm:$0xff]
    %v1095 = vld [vmem:[#allocation10 + $0x1d0] sm:$0xff]
    %v1096 = vld [vmem:[#allocation10 + $0x1d8] sm:$0xff]
    %v1097 = vld [vmem:[#allocation10 + $0x1e0] sm:$0xff]
    %v1098 = vld [vmem:[#allocation10 + $0x1e8] sm:$0xff]
    %v1099 = vld [vmem:[#allocation10 + $0x1f0] sm:$0xff]
    %v1100 = vld [vmem:[#allocation10 + $0x1f8] sm:$0xff]
    %v1101 = vld [vmem:[#allocation10 + $0x200] sm:$0xff]
    %v1102 = vld [vmem:[#allocation10 + $0x208] sm:$0xff]
    %v1103 = vld [vmem:[#allocation10 + $0x210] sm:$0xff]
    %v1104 = vld [vmem:[#allocation10 + $0x218] sm:$0xff]
    %v1105 = vld [vmem:[#allocation10 + $0x220] sm:$0xff]
    %v1106 = vld [vmem:[#allocation10 + $0x228] sm:$0xff]
    %v1107 = vld [vmem:[#allocation10 + $0x230] sm:$0xff]
    %v1108 = vld [vmem:[#allocation10 + $0x238] sm:$0xff]
    %v1109 = vld [vmem:[#allocation10 + $0x240] sm:$0xff]
    %v1110 = vld [vmem:[#allocation10 + $0x248] sm:$0xff]
    %v1111 = vld [vmem:[#allocation10 + $0x250] sm:$0xff]
    %v1112 = vld [vmem:[#allocation10 + $0x258] sm:$0xff]
    %v1113 = vld [vmem:[#allocation10 + $0x260] sm:$0xff]
    %v1114 = vld [vmem:[#allocation10 + $0x268] sm:$0xff]
    %v1115 = vld [vmem:[#allocation10 + $0x270] sm:$0xff]
    %v1116 = vld [vmem:[#allocation10 + $0x278] sm:$0xff]
    %v1117 = vld [vmem:[#allocation10 + $0x280] sm:$0xff]
    %v1118 = vld [vmem:[#allocation10 + $0x288] sm:$0xff]
    %v1119 = vld [vmem:[#allocation10 + $0x290] sm:$0xff]
    %v1120 = vld [vmem:[#allocation10 + $0x298] sm:$0xff]
    %v1121 = vld [vmem:[#allocation10 + $0x2a0] sm:$0xff]
    %v1122 = vld [vmem:[#allocation10 + $0x2a8] sm:$0xff]
    %v1123 = vld [vmem:[#allocation10 + $0x2b0] sm:$0xff]
    %v1124 = vld [vmem:[#allocation10 + $0x2b8] sm:$0xff]
    %v1125 = vld [vmem:[#allocation10 + $0x2c0] sm:$0xff]
    %v1126 = vld [vmem:[#allocation10 + $0x2c8] sm:$0xff]
    %v1127 = vld [vmem:[#allocation10 + $0x2d0] sm:$0xff]
    %v1128 = vld [vmem:[#allocation10 + $0x2d8] sm:$0xff]
    %v1129 = vld [vmem:[#allocation10 + $0x2e0] sm:$0xff]
    %v1130 = vld [vmem:[#allocation10 + $0x2e8] sm:$0xff]
    %v1131 = vld [vmem:[#allocation10 + $0x2f0] sm:$0xff]
    %v1132 = vld [vmem:[#allocation10 + $0x2f8] sm:$0xff]
    %v1133 = vld [vmem:[%s8] sm:$0x3f]
    %v1135 = vlaneseq
    %v1136 = vshrl.u32 %v1135, 7
    %v1137 = vsub.s32 0, %v1136
    %v1138 = vrot.slane %v1133, %v1137
    %v1139 = vlaneseq
    %v1140 = vshrl.u32 %v1139, 7
    %v1141 = vsub.s32 1, %v1140
    %v1142 = vrot.slane %v1133, %v1141
    %v1143 = vlaneseq
    %v1144 = vshrl.u32 %v1143, 7
    %v1145 = vsub.s32 2, %v1144
    %v1146 = vrot.slane %v1133, %v1145
    %v1147 = vlaneseq
    %v1148 = vshrl.u32 %v1147, 7
    %v1149 = vsub.s32 3, %v1148
    %v1150 = vrot.slane %v1133, %v1149
    %v1151 = vlaneseq
    %v1152 = vshrl.u32 %v1151, 7
    %v1153 = vsub.s32 4, %v1152
    %v1154 = vrot.slane %v1133, %v1153
    %v1155 = vlaneseq
    %v1156 = vshrl.u32 %v1155, 7
    %v1157 = vsub.s32 5, %v1156
    %v1158 = vrot.slane %v1133, %v1157
    %v1261 = vunpack.c.l.b16 %v1037
    %v1262 = vunpack.c.h.b16 %v1037
    %v1263 = vunpack.c.l.b16 %v1038
    %v1264 = vunpack.c.h.b16 %v1038
    %v1265 = vunpack.c.l.b16 %v1039
    %v1266 = vunpack.c.h.b16 %v1039
    %v1267 = vunpack.c.l.b16 %v1040
    %v1268 = vunpack.c.h.b16 %v1040
    %v1269 = vunpack.c.l.b16 %v1041
    %v1270 = vunpack.c.h.b16 %v1041
    %v1271 = vunpack.c.l.b16 %v1042
    %v1272 = vunpack.c.h.b16 %v1042
    %v1273 = vunpack.c.l.b16 %v1043
    %v1274 = vunpack.c.h.b16 %v1043
    %v1275 = vunpack.c.l.b16 %v1044
    %v1276 = vunpack.c.h.b16 %v1044
    %v1277 = vunpack.c.l.b16 %v1045
    %v1278 = vunpack.c.h.b16 %v1045
    %v1279 = vunpack.c.l.b16 %v1046
    %v1280 = vunpack.c.h.b16 %v1046
    %v1281 = vunpack.c.l.b16 %v1047
    %v1282 = vunpack.c.h.b16 %v1047
    %v1283 = vunpack.c.l.b16 %v1048
    %v1284 = vunpack.c.h.b16 %v1048
    %v1285 = vunpack.c.l.b16 %v1049
    %v1286 = vunpack.c.h.b16 %v1049
    %v1287 = vunpack.c.l.b16 %v1050
    %v1288 = vunpack.c.h.b16 %v1050
    %v1289 = vunpack.c.l.b16 %v1051
    %v1290 = vunpack.c.h.b16 %v1051
    %v1291 = vunpack.c.l.b16 %v1052
    %v1292 = vunpack.c.h.b16 %v1052
    %v1293 = vunpack.c.l.b16 %v1053
    %v1294 = vunpack.c.h.b16 %v1053
    %v1295 = vunpack.c.l.b16 %v1054
    %v1296 = vunpack.c.h.b16 %v1054
    %v1297 = vunpack.c.l.b16 %v1055
    %v1298 = vunpack.c.h.b16 %v1055
    %v1299 = vunpack.c.l.b16 %v1056
    %v1300 = vunpack.c.h.b16 %v1056
    %v1301 = vunpack.c.l.b16 %v1057
    %v1302 = vunpack.c.h.b16 %v1057
    %v1303 = vunpack.c.l.b16 %v1058
    %v1304 = vunpack.c.h.b16 %v1058
    %v1305 = vunpack.c.l.b16 %v1059
    %v1306 = vunpack.c.h.b16 %v1059
    %v1307 = vunpack.c.l.b16 %v1060
    %v1308 = vunpack.c.h.b16 %v1060
    %v1309 = vunpack.c.l.b16 %v1061
    %v1310 = vunpack.c.h.b16 %v1061
    %v1311 = vunpack.c.l.b16 %v1062
    %v1312 = vunpack.c.h.b16 %v1062
    %v1313 = vunpack.c.l.b16 %v1063
    %v1314 = vunpack.c.h.b16 %v1063
    %v1315 = vunpack.c.l.b16 %v1064
    %v1316 = vunpack.c.h.b16 %v1064
    %v1317 = vunpack.c.l.b16 %v1065
    %v1318 = vunpack.c.h.b16 %v1065
    %v1319 = vunpack.c.l.b16 %v1066
    %v1320 = vunpack.c.h.b16 %v1066
    %v1321 = vunpack.c.l.b16 %v1067
    %v1322 = vunpack.c.h.b16 %v1067
    %v1323 = vunpack.c.l.b16 %v1068
    %v1324 = vunpack.c.h.b16 %v1068
    %v1325 = vunpack.c.l.b16 %v1069
    %v1326 = vunpack.c.h.b16 %v1069
    %v1327 = vunpack.c.l.b16 %v1070
    %v1328 = vunpack.c.h.b16 %v1070
    %v1329 = vunpack.c.l.b16 %v1071
    %v1330 = vunpack.c.h.b16 %v1071
    %v1331 = vunpack.c.l.b16 %v1072
    %v1332 = vunpack.c.h.b16 %v1072
    %v1333 = vunpack.c.l.b16 %v1073
    %v1334 = vunpack.c.h.b16 %v1073
    %v1335 = vunpack.c.l.b16 %v1074
    %v1336 = vunpack.c.h.b16 %v1074
    %v1337 = vunpack.c.l.b16 %v1075
    %v1338 = vunpack.c.h.b16 %v1075
    %v1339 = vunpack.c.l.b16 %v1076
    %v1340 = vunpack.c.h.b16 %v1076
    %v1341 = vunpack.c.l.b16 %v1077
    %v1342 = vunpack.c.h.b16 %v1077
    %v1343 = vunpack.c.l.b16 %v1078
    %v1344 = vunpack.c.h.b16 %v1078
    %v1345 = vunpack.c.l.b16 %v1079
    %v1346 = vunpack.c.h.b16 %v1079
    %v1347 = vunpack.c.l.b16 %v1080
    %v1348 = vunpack.c.h.b16 %v1080
    %v1349 = vunpack.c.l.b16 %v1081
    %v1350 = vunpack.c.h.b16 %v1081
    %v1351 = vunpack.c.l.b16 %v1082
    %v1352 = vunpack.c.h.b16 %v1082
    %v1353 = vunpack.c.l.b16 %v1083
    %v1354 = vunpack.c.h.b16 %v1083
    %v1355 = vunpack.c.l.b16 %v1084
    %v1356 = vunpack.c.h.b16 %v1084
    %v1357 = vunpack.c.l.b16 %v1085
    %v1358 = vunpack.c.h.b16 %v1085
    %v1359 = vunpack.c.l.b16 %v1086
    %v1360 = vunpack.c.h.b16 %v1086
    %v1361 = vunpack.c.l.b16 %v1087
    %v1362 = vunpack.c.h.b16 %v1087
    %v1363 = vunpack.c.l.b16 %v1088
    %v1364 = vunpack.c.h.b16 %v1088
    %v1365 = vunpack.c.l.b16 %v1089
    %v1366 = vunpack.c.h.b16 %v1089
    %v1367 = vunpack.c.l.b16 %v1090
    %v1368 = vunpack.c.h.b16 %v1090
    %v1369 = vunpack.c.l.b16 %v1091
    %v1370 = vunpack.c.h.b16 %v1091
    %v1371 = vunpack.c.l.b16 %v1092
    %v1372 = vunpack.c.h.b16 %v1092
    %v1373 = vunpack.c.l.b16 %v1093
    %v1374 = vunpack.c.h.b16 %v1093
    %v1375 = vunpack.c.l.b16 %v1094
    %v1376 = vunpack.c.h.b16 %v1094
    %v1377 = vunpack.c.l.b16 %v1095
    %v1378 = vunpack.c.h.b16 %v1095
    %v1379 = vunpack.c.l.b16 %v1096
    %v1380 = vunpack.c.h.b16 %v1096
    %v1381 = vunpack.c.l.b16 %v1097
    %v1382 = vunpack.c.h.b16 %v1097
    %v1383 = vunpack.c.l.b16 %v1098
    %v1384 = vunpack.c.h.b16 %v1098
    %v1385 = vunpack.c.l.b16 %v1099
    %v1386 = vunpack.c.h.b16 %v1099
    %v1387 = vunpack.c.l.b16 %v1100
    %v1388 = vunpack.c.h.b16 %v1100
    %v1389 = vunpack.c.l.b16 %v1101
    %v1390 = vunpack.c.h.b16 %v1101
    %v1391 = vunpack.c.l.b16 %v1102
    %v1392 = vunpack.c.h.b16 %v1102
    %v1393 = vunpack.c.l.b16 %v1103
    %v1394 = vunpack.c.h.b16 %v1103
    %v1395 = vunpack.c.l.b16 %v1104
    %v1396 = vunpack.c.h.b16 %v1104
    %v1397 = vunpack.c.l.b16 %v1105
    %v1398 = vunpack.c.h.b16 %v1105
    %v1399 = vunpack.c.l.b16 %v1106
    %v1400 = vunpack.c.h.b16 %v1106
    %v1401 = vunpack.c.l.b16 %v1107
    %v1402 = vunpack.c.h.b16 %v1107
    %v1403 = vunpack.c.l.b16 %v1108
    %v1404 = vunpack.c.h.b16 %v1108
    %v1405 = vunpack.c.l.b16 %v1109
    %v1406 = vunpack.c.h.b16 %v1109
    %v1407 = vunpack.c.l.b16 %v1110
    %v1408 = vunpack.c.h.b16 %v1110
    %v1409 = vunpack.c.l.b16 %v1111
    %v1410 = vunpack.c.h.b16 %v1111
    %v1411 = vunpack.c.l.b16 %v1112
    %v1412 = vunpack.c.h.b16 %v1112
    %v1413 = vunpack.c.l.b16 %v1113
    %v1414 = vunpack.c.h.b16 %v1113
    %v1415 = vunpack.c.l.b16 %v1114
    %v1416 = vunpack.c.h.b16 %v1114
    %v1417 = vunpack.c.l.b16 %v1115
    %v1418 = vunpack.c.h.b16 %v1115
    %v1419 = vunpack.c.l.b16 %v1116
    %v1420 = vunpack.c.h.b16 %v1116
    %v1421 = vunpack.c.l.b16 %v1117
    %v1422 = vunpack.c.h.b16 %v1117
    %v1423 = vunpack.c.l.b16 %v1118
    %v1424 = vunpack.c.h.b16 %v1118
    %v1425 = vunpack.c.l.b16 %v1119
    %v1426 = vunpack.c.h.b16 %v1119
    %v1427 = vunpack.c.l.b16 %v1120
    %v1428 = vunpack.c.h.b16 %v1120
    %v1429 = vunpack.c.l.b16 %v1121
    %v1430 = vunpack.c.h.b16 %v1121
    %v1431 = vunpack.c.l.b16 %v1122
    %v1432 = vunpack.c.h.b16 %v1122
    %v1433 = vunpack.c.l.b16 %v1123
    %v1434 = vunpack.c.h.b16 %v1123
    %v1435 = vunpack.c.l.b16 %v1124
    %v1436 = vunpack.c.h.b16 %v1124
    %v1437 = vunpack.c.l.b16 %v1125
    %v1438 = vunpack.c.h.b16 %v1125
    %v1439 = vunpack.c.l.b16 %v1126
    %v1440 = vunpack.c.h.b16 %v1126
    %v1441 = vunpack.c.l.b16 %v1127
    %v1442 = vunpack.c.h.b16 %v1127
    %v1443 = vunpack.c.l.b16 %v1128
    %v1444 = vunpack.c.h.b16 %v1128
    %v1445 = vunpack.c.l.b16 %v1129
    %v1446 = vunpack.c.h.b16 %v1129
    %v1447 = vunpack.c.l.b16 %v1130
    %v1448 = vunpack.c.h.b16 %v1130
    %v1449 = vunpack.c.l.b16 %v1131
    %v1450 = vunpack.c.h.b16 %v1131
    %v1451 = vunpack.c.l.b16 %v1132
    %v1452 = vunpack.c.h.b16 %v1132
    %v1453 = vpack.c.b16 %v1267, %v1261
    %v1454 = vpack.c.b16 %v1268, %v1262
    %v1455 = vpack.c.b16 %v1269, %v1263
    %v1456 = vpack.c.b16 %v1270, %v1264
    %v1457 = vpack.c.b16 %v1271, %v1265
    %v1458 = vpack.c.b16 %v1272, %v1266
    %v1459 = vpack.c.b16 %v1279, %v1273
    %v1460 = vpack.c.b16 %v1280, %v1274
    %v1461 = vpack.c.b16 %v1281, %v1275
    %v1462 = vpack.c.b16 %v1282, %v1276
    %v1463 = vpack.c.b16 %v1283, %v1277
    %v1464 = vpack.c.b16 %v1284, %v1278
    %v1465 = vpack.c.b16 %v1291, %v1285
    %v1466 = vpack.c.b16 %v1292, %v1286
    %v1467 = vpack.c.b16 %v1293, %v1287
    %v1468 = vpack.c.b16 %v1294, %v1288
    %v1469 = vpack.c.b16 %v1295, %v1289
    %v1470 = vpack.c.b16 %v1296, %v1290
    %v1471 = vpack.c.b16 %v1303, %v1297
    %v1472 = vpack.c.b16 %v1304, %v1298
    %v1473 = vpack.c.b16 %v1305, %v1299
    %v1474 = vpack.c.b16 %v1306, %v1300
    %v1475 = vpack.c.b16 %v1307, %v1301
    %v1476 = vpack.c.b16 %v1308, %v1302
    %v1477 = vpack.c.b16 %v1315, %v1309
    %v1478 = vpack.c.b16 %v1316, %v1310
    %v1479 = vpack.c.b16 %v1317, %v1311
    %v1480 = vpack.c.b16 %v1318, %v1312
    %v1481 = vpack.c.b16 %v1319, %v1313
    %v1482 = vpack.c.b16 %v1320, %v1314
    %v1483 = vpack.c.b16 %v1327, %v1321
    %v1484 = vpack.c.b16 %v1328, %v1322
    %v1485 = vpack.c.b16 %v1329, %v1323
    %v1486 = vpack.c.b16 %v1330, %v1324
    %v1487 = vpack.c.b16 %v1331, %v1325
    %v1488 = vpack.c.b16 %v1332, %v1326
    %v1489 = vpack.c.b16 %v1339, %v1333
    %v1490 = vpack.c.b16 %v1340, %v1334
    %v1491 = vpack.c.b16 %v1341, %v1335
    %v1492 = vpack.c.b16 %v1342, %v1336
    %v1493 = vpack.c.b16 %v1343, %v1337
    %v1494 = vpack.c.b16 %v1344, %v1338
    %v1495 = vpack.c.b16 %v1351, %v1345
    %v1496 = vpack.c.b16 %v1352, %v1346
    %v1497 = vpack.c.b16 %v1353, %v1347
    %v1498 = vpack.c.b16 %v1354, %v1348
    %v1499 = vpack.c.b16 %v1355, %v1349
    %v1500 = vpack.c.b16 %v1356, %v1350
    %v1501 = vpack.c.b16 %v1363, %v1357
    %v1502 = vpack.c.b16 %v1364, %v1358
    %v1503 = vpack.c.b16 %v1365, %v1359
    %v1504 = vpack.c.b16 %v1366, %v1360
    %v1505 = vpack.c.b16 %v1367, %v1361
    %v1506 = vpack.c.b16 %v1368, %v1362
    %v1507 = vpack.c.b16 %v1375, %v1369
    %v1508 = vpack.c.b16 %v1376, %v1370
    %v1509 = vpack.c.b16 %v1377, %v1371
    %v1510 = vpack.c.b16 %v1378, %v1372
    %v1511 = vpack.c.b16 %v1379, %v1373
    %v1512 = vpack.c.b16 %v1380, %v1374
    %v1513 = vpack.c.b16 %v1387, %v1381
    %v1514 = vpack.c.b16 %v1388, %v1382
    %v1515 = vpack.c.b16 %v1389, %v1383
    %v1516 = vpack.c.b16 %v1390, %v1384
    %v1517 = vpack.c.b16 %v1391, %v1385
    %v1518 = vpack.c.b16 %v1392, %v1386
    %v1519 = vpack.c.b16 %v1399, %v1393
    %v1520 = vpack.c.b16 %v1400, %v1394
    %v1521 = vpack.c.b16 %v1401, %v1395
    %v1522 = vpack.c.b16 %v1402, %v1396
    %v1523 = vpack.c.b16 %v1403, %v1397
    %v1524 = vpack.c.b16 %v1404, %v1398
    %v1525 = vpack.c.b16 %v1411, %v1405
    %v1526 = vpack.c.b16 %v1412, %v1406
    %v1527 = vpack.c.b16 %v1413, %v1407
    %v1528 = vpack.c.b16 %v1414, %v1408
    %v1529 = vpack.c.b16 %v1415, %v1409
    %v1530 = vpack.c.b16 %v1416, %v1410
    %v1531 = vpack.c.b16 %v1423, %v1417
    %v1532 = vpack.c.b16 %v1424, %v1418
    %v1533 = vpack.c.b16 %v1425, %v1419
    %v1534 = vpack.c.b16 %v1426, %v1420
    %v1535 = vpack.c.b16 %v1427, %v1421
    %v1536 = vpack.c.b16 %v1428, %v1422
    %v1537 = vpack.c.b16 %v1435, %v1429
    %v1538 = vpack.c.b16 %v1436, %v1430
    %v1539 = vpack.c.b16 %v1437, %v1431
    %v1540 = vpack.c.b16 %v1438, %v1432
    %v1541 = vpack.c.b16 %v1439, %v1433
    %v1542 = vpack.c.b16 %v1440, %v1434
    %v1543 = vpack.c.b16 %v1447, %v1441
    %v1544 = vpack.c.b16 %v1448, %v1442
    %v1545 = vpack.c.b16 %v1449, %v1443
    %v1546 = vpack.c.b16 %v1450, %v1444
    %v1547 = vpack.c.b16 %v1451, %v1445
    %v1548 = vpack.c.b16 %v1452, %v1446
    %1645 = vmatprep.subr.bf16.mxu0 %v1454
    %1646 = vmatpush1.bf16.msra.mxu0 %v1453
    %1647 = vmatprep.subr.bf16.mxu0 %v1460
    %1648 = vmatpush1.bf16.msra.mxu0 %v1459
    %1649 = vmatprep.subr.bf16.mxu0 %v1466
    %1650 = vmatpush1.bf16.msra.mxu0 %v1465
    %1651 = vmatprep.subr.bf16.mxu0 %v1472
    %1652 = vmatpush1.bf16.msra.mxu0 %v1471
    %1653 = vmatprep.subr.bf16.mxu0 %v1478
    %1654 = vmatpush1.bf16.msra.mxu0 %v1477
    %1655 = vmatprep.subr.bf16.mxu0 %v1484
    %1656 = vmatpush1.bf16.msra.mxu0 %v1483
    %1657 = vmatprep.subr.bf16.mxu0 %v1490
    %1658 = vmatpush1.bf16.msra.mxu0 %v1489
    %1659 = vmatprep.subr.bf16.mxu0 %v1496
    %1660 = vmatpush1.bf16.msra.mxu0 %v1495
    %1661 = vmatprep.subr.bf16.mxu0 %v1502
    %1662 = vmatpush1.bf16.msra.mxu0 %v1501
    %1663 = vmatprep.subr.bf16.mxu0 %v1508
    %1664 = vmatpush1.bf16.msra.mxu0 %v1507
    %1665 = vmatprep.subr.bf16.mxu0 %v1514
    %1666 = vmatpush1.bf16.msra.mxu0 %v1513
    %1667 = vmatprep.subr.bf16.mxu0 %v1520
    %1668 = vmatpush1.bf16.msra.mxu0 %v1519
    %1669 = vmatprep.subr.bf16.mxu0 %v1526
    %1670 = vmatpush1.bf16.msra.mxu0 %v1525
    %1671 = vmatprep.subr.bf16.mxu0 %v1532
    %1672 = vmatpush1.bf16.msra.mxu0 %v1531
    %1673 = vmatprep.subr.bf16.mxu0 %v1538
    %1674 = vmatpush1.bf16.msra.mxu0 %v1537
    %1675 = vmatprep.subr.bf16.mxu0 %v1544
    %1676 = vmatpush1.bf16.msra.mxu0 %v1543
    %1677 = vmatprep.mubr.bf16.mxu0 %v1036
    %1678 = vmatmul.mubr.bf16.gmra.mrb[0].mxu0 %v1035
    %v1679 = vpop.f32.mrb[0].mxu0
    %v1680 = vadd.f32 %v1138, %v1679
    %v1681 = vpop.f32.mrb[0].mxu0
    %v1682 = vadd.f32 %v1142, %v1681
    %v1683 = vpop.f32.mrb[0].mxu0
    %v1684 = vpop.f32.mrb[0].mxu0
    %1685 = vdwg.mxu0
    %1686 = vmatprep.subr.bf16.mxu0 %v1456
    %1687 = vmatpush1.bf16.msra.mxu0 %v1455
    %1688 = vmatprep.subr.bf16.mxu0 %v1462
    %1689 = vmatpush1.bf16.msra.mxu0 %v1461
    %1690 = vmatprep.subr.bf16.mxu0 %v1468
    %1691 = vmatpush1.bf16.msra.mxu0 %v1467
    %1692 = vmatprep.subr.bf16.mxu0 %v1474
    %1693 = vmatpush1.bf16.msra.mxu0 %v1473
    %1694 = vmatprep.subr.bf16.mxu0 %v1480
    %1695 = vmatpush1.bf16.msra.mxu0 %v1479
    %1696 = vmatprep.subr.bf16.mxu0 %v1486
    %1697 = vmatpush1.bf16.msra.mxu0 %v1485
    %1698 = vmatprep.subr.bf16.mxu0 %v1492
    %1699 = vmatpush1.bf16.msra.mxu0 %v1491
    %1700 = vmatprep.subr.bf16.mxu0 %v1498
    %1701 = vmatpush1.bf16.msra.mxu0 %v1497
    %1702 = vmatprep.subr.bf16.mxu0 %v1504
    %1703 = vmatpush1.bf16.msra.mxu0 %v1503
    %1704 = vmatprep.subr.bf16.mxu0 %v1510
    %1705 = vmatpush1.bf16.msra.mxu0 %v1509
    %1706 = vmatprep.subr.bf16.mxu0 %v1516
    %1707 = vmatpush1.bf16.msra.mxu0 %v1515
    %1708 = vmatprep.subr.bf16.mxu0 %v1522
    %1709 = vmatpush1.bf16.msra.mxu0 %v1521
    %1710 = vmatprep.subr.bf16.mxu0 %v1528
    %1711 = vmatpush1.bf16.msra.mxu0 %v1527
    %1712 = vmatprep.subr.bf16.mxu0 %v1534
    %1713 = vmatpush1.bf16.msra.mxu0 %v1533
    %1714 = vmatprep.subr.bf16.mxu0 %v1540
    %1715 = vmatpush1.bf16.msra.mxu0 %v1539
    %1716 = vmatprep.subr.bf16.mxu0 %v1546
    %1717 = vmatpush1.bf16.msra.mxu0 %v1545
    %1718 = vmatprep.mubr.bf16.mxu0 %v1036
    %1719 = vmatmul.mubr.bf16.gmra.mrb[0].mxu0 %v1035
    %v1720 = vpop.f32.mrb[0].mxu0
    %v1721 = vadd.f32 %v1146, %v1720
    %v1722 = vpop.f32.mrb[0].mxu0
    %v1723 = vadd.f32 %v1150, %v1722
    %v1724 = vpop.f32.mrb[0].mxu0
    %v1725 = vpop.f32.mrb[0].mxu0
    %1726 = vdwg.mxu0
    %1727 = vmatprep.subr.bf16.mxu0 %v1458
    %1728 = vmatpush1.bf16.msra.mxu0 %v1457
    %1729 = vmatprep.subr.bf16.mxu0 %v1464
    %1730 = vmatpush1.bf16.msra.mxu0 %v1463
    %1731 = vmatprep.subr.bf16.mxu0 %v1470
    %1732 = vmatpush1.bf16.msra.mxu0 %v1469
    %1733 = vmatprep.subr.bf16.mxu0 %v1476
    %1734 = vmatpush1.bf16.msra.mxu0 %v1475
    %1735 = vmatprep.subr.bf16.mxu0 %v1482
    %1736 = vmatpush1.bf16.msra.mxu0 %v1481
    %1737 = vmatprep.subr.bf16.mxu0 %v1488
    %1738 = vmatpush1.bf16.msra.mxu0 %v1487
    %1739 = vmatprep.subr.bf16.mxu0 %v1494
    %1740 = vmatpush1.bf16.msra.mxu0 %v1493
    %1741 = vmatprep.subr.bf16.mxu0 %v1500
    %1742 = vmatpush1.bf16.msra.mxu0 %v1499
    %1743 = vmatprep.subr.bf16.mxu0 %v1506
    %1744 = vmatpush1.bf16.msra.mxu0 %v1505
    %1745 = vmatprep.subr.bf16.mxu0 %v1512
    %1746 = vmatpush1.bf16.msra.mxu0 %v1511
    %1747 = vmatprep.subr.bf16.mxu0 %v1518
    %1748 = vmatpush1.bf16.msra.mxu0 %v1517
    %1749 = vmatprep.subr.bf16.mxu0 %v1524
    %1750 = vmatpush1.bf16.msra.mxu0 %v1523
    %1751 = vmatprep.subr.bf16.mxu0 %v1530
    %1752 = vmatpush1.bf16.msra.mxu0 %v1529
    %1753 = vmatprep.subr.bf16.mxu0 %v1536
    %1754 = vmatpush1.bf16.msra.mxu0 %v1535
    %1755 = vmatprep.subr.bf16.mxu0 %v1542
    %1756 = vmatpush1.bf16.msra.mxu0 %v1541
    %1757 = vmatprep.subr.bf16.mxu0 %v1548
    %1758 = vmatpush1.bf16.msra.mxu0 %v1547
    %1759 = vmatprep.mubr.bf16.mxu0 %v1036
    %1760 = vmatmul.mubr.bf16.gmra.mrb[0].mxu0 %v1035
    %v1761 = vpop.f32.mrb[0].mxu0
    %v1762 = vadd.f32 %v1154, %v1761
    %v1763 = vpop.f32.mrb[0].mxu0
    %v1764 = vadd.f32 %v1158, %v1763
    %v1765 = vpop.f32.mrb[0].mxu0
    %v1766 = vpop.f32.mrb[0].mxu0
    %1767 = vdwg.mxu0
    %v1768 = vadd.f32 %v1029, %v1680
    %v1769 = vadd.f32 %v1030, %v1682
    %v1770 = vxor.u32 %v1768, 2147483648
    %v1771 = vxor.u32 %v1769, 2147483648
    %v1772 = vmul.f32 %v1770, 1.442695
    %v1773 = vpow.pop %v1772
    %v1774 = vmul.f32 %v1771, 1.442695
    %v1775 = vpow.pop %v1774
    %v1776 = vadd.f32 %v1773, 1.0
    %v1777 = vadd.f32 %v1775, 1.0
    %v1778 = vrcp.pop %v1776
    %v1779 = vmul.f32 1.0, %v1778
    %v1780 = vrcp.pop %v1777
    %v1781 = vmul.f32 1.0, %v1780
    %v1782 = vadd.f32 %v1031, %v1721
    %v1783 = vadd.f32 %v1032, %v1723
    %v1784 = vxor.u32 %v1782, 2147483648
    %v1785 = vxor.u32 %v1783, 2147483648
    %v1786 = vmul.f32 %v1784, 1.442695
    %v1787 = vpow.pop %v1786
    %v1788 = vmul.f32 %v1785, 1.442695
    %v1789 = vpow.pop %v1788
    %v1790 = vadd.f32 %v1787, 1.0
    %v1791 = vadd.f32 %v1789, 1.0
    %v1792 = vrcp.pop %v1790
    %v1793 = vmul.f32 1.0, %v1792
    %v1794 = vrcp.pop %v1791
    %v1795 = vmul.f32 1.0, %v1794
    %v1796 = vmul.f32 %v1779, %v1762
    %v1797 = vmul.f32 %v1781, %v1764
    %v1798 = vadd.f32 %v1033, %v1796
    %v1799 = vadd.f32 %v1034, %v1797
    %v1800 = vtanh.pop %v1798
    %v1801 = vtanh.pop %v1799
    %v1802 = vsub.f32 1.0, %v1793
    %v1803 = vsub.f32 1.0, %v1795
    %v1804 = vmul.f32 %v1802, %v1800
    %v1805 = vmul.f32 %v1803, %v1801
    %v1806 = vmul.f32 %v1793, %v1027
    %v1807 = vmul.f32 %v1795, %v1028
    %v1808 = vadd.f32 %v1804, %v1806
    %v1809 = vadd.f32 %v1805, %v1807
    %1810 = vst [vmem:[#allocation3] sm:$0xff] %v1808
    %1811 = vst [vmem:[#allocation3 + $0x8] sm:$0xff] %v1809
    %v1812 = vld [vmem:[#allocation2 + $0x30] sm:$0xff]
    %v1813 = vld [vmem:[#allocation2 + $0x38] sm:$0xff]
    %v1814 = vld [vmem:[#allocation2 + $0x40] sm:$0xff]
    %v1815 = vld [vmem:[#allocation2 + $0x48] sm:$0xff]
    %v1816 = vld [vmem:[#allocation2 + $0x50] sm:$0xff]
    %v1817 = vld [vmem:[#allocation2 + $0x58] sm:$0xff]
    %v1818 = vpack.c.bf16 %v1808, %v1808
    %v1819 = vpack.c.bf16 %v1809, %v1809
    %v1820 = vld [vmem:[#allocation10] sm:$0xff]
    %v1821 = vld [vmem:[#allocation10 + $0x8] sm:$0xff]
    %v1822 = vld [vmem:[#allocation10 + $0x10] sm:$0xff]
    %v1823 = vld [vmem:[#allocation10 + $0x18] sm:$0xff]
    %v1824 = vld [vmem:[#allocation10 + $0x20] sm:$0xff]
    %v1825 = vld [vmem:[#allocation10 + $0x28] sm:$0xff]
    %v1826 = vld [vmem:[#allocation10 + $0x30] sm:$0xff]
    %v1827 = vld [vmem:[#allocation10 + $0x38] sm:$0xff]
    %v1828 = vld [vmem:[#allocation10 + $0x40] sm:$0xff]
    %v1829 = vld [vmem:[#allocation10 + $0x48] sm:$0xff]
    %v1830 = vld [vmem:[#allocation10 + $0x50] sm:$0xff]
    %v1831 = vld [vmem:[#allocation10 + $0x58] sm:$0xff]
    %v1832 = vld [vmem:[#allocation10 + $0x60] sm:$0xff]
    %v1833 = vld [vmem:[#allocation10 + $0x68] sm:$0xff]
    %v1834 = vld [vmem:[#allocation10 + $0x70] sm:$0xff]
    %v1835 = vld [vmem:[#allocation10 + $0x78] sm:$0xff]
    %v1836 = vld [vmem:[#allocation10 + $0x80] sm:$0xff]
    %v1837 = vld [vmem:[#allocation10 + $0x88] sm:$0xff]
    %v1838 = vld [vmem:[#allocation10 + $0x90] sm:$0xff]
    %v1839 = vld [vmem:[#allocation10 + $0x98] sm:$0xff]
    %v1840 = vld [vmem:[#allocation10 + $0xa0] sm:$0xff]
    %v1841 = vld [vmem:[#allocation10 + $0xa8] sm:$0xff]
    %v1842 = vld [vmem:[#allocation10 + $0xb0] sm:$0xff]
    %v1843 = vld [vmem:[#allocation10 + $0xb8] sm:$0xff]
    %v1844 = vld [vmem:[#allocation10 + $0xc0] sm:$0xff]
    %v1845 = vld [vmem:[#allocation10 + $0xc8] sm:$0xff]
    %v1846 = vld [vmem:[#allocation10 + $0xd0] sm:$0xff]
    %v1847 = vld [vmem:[#allocation10 + $0xd8] sm:$0xff]
    %v1848 = vld [vmem:[#allocation10 + $0xe0] sm:$0xff]
    %v1849 = vld [vmem:[#allocation10 + $0xe8] sm:$0xff]
    %v1850 = vld [vmem:[#allocation10 + $0xf0] sm:$0xff]
    %v1851 = vld [vmem:[#allocation10 + $0xf8] sm:$0xff]
    %v1852 = vld [vmem:[#allocation10 + $0x100] sm:$0xff]
    %v1853 = vld [vmem:[#allocation10 + $0x108] sm:$0xff]
    %v1854 = vld [vmem:[#allocation10 + $0x110] sm:$0xff]
    %v1855 = vld [vmem:[#allocation10 + $0x118] sm:$0xff]
    %v1856 = vld [vmem:[#allocation10 + $0x120] sm:$0xff]
    %v1857 = vld [vmem:[#allocation10 + $0x128] sm:$0xff]
    %v1858 = vld [vmem:[#allocation10 + $0x130] sm:$0xff]
    %v1859 = vld [vmem:[#allocation10 + $0x138] sm:$0xff]
    %v1860 = vld [vmem:[#allocation10 + $0x140] sm:$0xff]
    %v1861 = vld [vmem:[#allocation10 + $0x148] sm:$0xff]
    %v1862 = vld [vmem:[#allocation10 + $0x150] sm:$0xff]
    %v1863 = vld [vmem:[#allocation10 + $0x158] sm:$0xff]
    %v1864 = vld [vmem:[#allocation10 + $0x160] sm:$0xff]
    %v1865 = vld [vmem:[#allocation10 + $0x168] sm:$0xff]
    %v1866 = vld [vmem:[#allocation10 + $0x170] sm:$0xff]
    %v1867 = vld [vmem:[#allocation10 + $0x178] sm:$0xff]
    %v1868 = vld [vmem:[#allocation10 + $0x180] sm:$0xff]
    %v1869 = vld [vmem:[#allocation10 + $0x188] sm:$0xff]
    %v1870 = vld [vmem:[#allocation10 + $0x190] sm:$0xff]
    %v1871 = vld [vmem:[#allocation10 + $0x198] sm:$0xff]
    %v1872 = vld [vmem:[#allocation10 + $0x1a0] sm:$0xff]
    %v1873 = vld [vmem:[#allocation10 + $0x1a8] sm:$0xff]
    %v1874 = vld [vmem:[#allocation10 + $0x1b0] sm:$0xff]
    %v1875 = vld [vmem:[#allocation10 + $0x1b8] sm:$0xff]
    %v1876 = vld [vmem:[#allocation10 + $0x1c0] sm:$0xff]
    %v1877 = vld [vmem:[#allocation10 + $0x1c8] sm:$0xff]
    %v1878 = vld [vmem:[#allocation10 + $0x1d0] sm:$0xff]
    %v1879 = vld [vmem:[#allocation10 + $0x1d8] sm:$0xff]
    %v1880 = vld [vmem:[#allocation10 + $0x1e0] sm:$0xff]
    %v1881 = vld [vmem:[#allocation10 + $0x1e8] sm:$0xff]
    %v1882 = vld [vmem:[#allocation10 + $0x1f0] sm:$0xff]
    %v1883 = vld [vmem:[#allocation10 + $0x1f8] sm:$0xff]
    %v1884 = vld [vmem:[#allocation10 + $0x200] sm:$0xff]
    %v1885 = vld [vmem:[#allocation10 + $0x208] sm:$0xff]
    %v1886 = vld [vmem:[#allocation10 + $0x210] sm:$0xff]
    %v1887 = vld [vmem:[#allocation10 + $0x218] sm:$0xff]
    %v1888 = vld [vmem:[#allocation10 + $0x220] sm:$0xff]
    %v1889 = vld [vmem:[#allocation10 + $0x228] sm:$0xff]
    %v1890 = vld [vmem:[#allocation10 + $0x230] sm:$0xff]
    %v1891 = vld [vmem:[#allocation10 + $0x238] sm:$0xff]
    %v1892 = vld [vmem:[#allocation10 + $0x240] sm:$0xff]
    %v1893 = vld [vmem:[#allocation10 + $0x248] sm:$0xff]
    %v1894 = vld [vmem:[#allocation10 + $0x250] sm:$0xff]
    %v1895 = vld [vmem:[#allocation10 + $0x258] sm:$0xff]
    %v1896 = vld [vmem:[#allocation10 + $0x260] sm:$0xff]
    %v1897 = vld [vmem:[#allocation10 + $0x268] sm:$0xff]
    %v1898 = vld [vmem:[#allocation10 + $0x270] sm:$0xff]
    %v1899 = vld [vmem:[#allocation10 + $0x278] sm:$0xff]
    %v1900 = vld [vmem:[#allocation10 + $0x280] sm:$0xff]
    %v1901 = vld [vmem:[#allocation10 + $0x288] sm:$0xff]
    %v1902 = vld [vmem:[#allocation10 + $0x290] sm:$0xff]
    %v1903 = vld [vmem:[#allocation10 + $0x298] sm:$0xff]
    %v1904 = vld [vmem:[#allocation10 + $0x2a0] sm:$0xff]
    %v1905 = vld [vmem:[#allocation10 + $0x2a8] sm:$0xff]
    %v1906 = vld [vmem:[#allocation10 + $0x2b0] sm:$0xff]
    %v1907 = vld [vmem:[#allocation10 + $0x2b8] sm:$0xff]
    %v1908 = vld [vmem:[#allocation10 + $0x2c0] sm:$0xff]
    %v1909 = vld [vmem:[#allocation10 + $0x2c8] sm:$0xff]
    %v1910 = vld [vmem:[#allocation10 + $0x2d0] sm:$0xff]
    %v1911 = vld [vmem:[#allocation10 + $0x2d8] sm:$0xff]
    %v1912 = vld [vmem:[#allocation10 + $0x2e0] sm:$0xff]
    %v1913 = vld [vmem:[#allocation10 + $0x2e8] sm:$0xff]
    %v1914 = vld [vmem:[#allocation10 + $0x2f0] sm:$0xff]
    %v1915 = vld [vmem:[#allocation10 + $0x2f8] sm:$0xff]
    %v1916 = vld [vmem:[%s8] sm:$0x3f]
    %v1918 = vlaneseq
    %v1919 = vshrl.u32 %v1918, 7
    %v1920 = vsub.s32 0, %v1919
    %v1921 = vrot.slane %v1916, %v1920
    %v1922 = vlaneseq
    %v1923 = vshrl.u32 %v1922, 7
    %v1924 = vsub.s32 1, %v1923
    %v1925 = vrot.slane %v1916, %v1924
    %v1926 = vlaneseq
    %v1927 = vshrl.u32 %v1926, 7
    %v1928 = vsub.s32 2, %v1927
    %v1929 = vrot.slane %v1916, %v1928
    %v1930 = vlaneseq
    %v1931 = vshrl.u32 %v1930, 7
    %v1932 = vsub.s32 3, %v1931
    %v1933 = vrot.slane %v1916, %v1932
    %v1934 = vlaneseq
    %v1935 = vshrl.u32 %v1934, 7
    %v1936 = vsub.s32 4, %v1935
    %v1937 = vrot.slane %v1916, %v1936
    %v1938 = vlaneseq
    %v1939 = vshrl.u32 %v1938, 7
    %v1940 = vsub.s32 5, %v1939
    %v1941 = vrot.slane %v1916, %v1940
    %v2044 = vunpack.c.l.b16 %v1820
    %v2045 = vunpack.c.h.b16 %v1820
    %v2046 = vunpack.c.l.b16 %v1821
    %v2047 = vunpack.c.h.b16 %v1821
    %v2048 = vunpack.c.l.b16 %v1822
    %v2049 = vunpack.c.h.b16 %v1822
    %v2050 = vunpack.c.l.b16 %v1823
    %v2051 = vunpack.c.h.b16 %v1823
    %v2052 = vunpack.c.l.b16 %v1824
    %v2053 = vunpack.c.h.b16 %v1824
    %v2054 = vunpack.c.l.b16 %v1825
    %v2055 = vunpack.c.h.b16 %v1825
    %v2056 = vunpack.c.l.b16 %v1826
    %v2057 = vunpack.c.h.b16 %v1826
    %v2058 = vunpack.c.l.b16 %v1827
    %v2059 = vunpack.c.h.b16 %v1827
    %v2060 = vunpack.c.l.b16 %v1828
    %v2061 = vunpack.c.h.b16 %v1828
    %v2062 = vunpack.c.l.b16 %v1829
    %v2063 = vunpack.c.h.b16 %v1829
    %v2064 = vunpack.c.l.b16 %v1830
    %v2065 = vunpack.c.h.b16 %v1830
    %v2066 = vunpack.c.l.b16 %v1831
    %v2067 = vunpack.c.h.b16 %v1831
    %v2068 = vunpack.c.l.b16 %v1832
    %v2069 = vunpack.c.h.b16 %v1832
    %v2070 = vunpack.c.l.b16 %v1833
    %v2071 = vunpack.c.h.b16 %v1833
    %v2072 = vunpack.c.l.b16 %v1834
    %v2073 = vunpack.c.h.b16 %v1834
    %v2074 = vunpack.c.l.b16 %v1835
    %v2075 = vunpack.c.h.b16 %v1835
    %v2076 = vunpack.c.l.b16 %v1836
    %v2077 = vunpack.c.h.b16 %v1836
    %v2078 = vunpack.c.l.b16 %v1837
    %v2079 = vunpack.c.h.b16 %v1837
    %v2080 = vunpack.c.l.b16 %v1838
    %v2081 = vunpack.c.h.b16 %v1838
    %v2082 = vunpack.c.l.b16 %v1839
    %v2083 = vunpack.c.h.b16 %v1839
    %v2084 = vunpack.c.l.b16 %v1840
    %v2085 = vunpack.c.h.b16 %v1840
    %v2086 = vunpack.c.l.b16 %v1841
    %v2087 = vunpack.c.h.b16 %v1841
    %v2088 = vunpack.c.l.b16 %v1842
    %v2089 = vunpack.c.h.b16 %v1842
    %v2090 = vunpack.c.l.b16 %v1843
    %v2091 = vunpack.c.h.b16 %v1843
    %v2092 = vunpack.c.l.b16 %v1844
    %v2093 = vunpack.c.h.b16 %v1844
    %v2094 = vunpack.c.l.b16 %v1845
    %v2095 = vunpack.c.h.b16 %v1845
    %v2096 = vunpack.c.l.b16 %v1846
    %v2097 = vunpack.c.h.b16 %v1846
    %v2098 = vunpack.c.l.b16 %v1847
    %v2099 = vunpack.c.h.b16 %v1847
    %v2100 = vunpack.c.l.b16 %v1848
    %v2101 = vunpack.c.h.b16 %v1848
    %v2102 = vunpack.c.l.b16 %v1849
    %v2103 = vunpack.c.h.b16 %v1849
    %v2104 = vunpack.c.l.b16 %v1850
    %v2105 = vunpack.c.h.b16 %v1850
    %v2106 = vunpack.c.l.b16 %v1851
    %v2107 = vunpack.c.h.b16 %v1851
    %v2108 = vunpack.c.l.b16 %v1852
    %v2109 = vunpack.c.h.b16 %v1852
    %v2110 = vunpack.c.l.b16 %v1853
    %v2111 = vunpack.c.h.b16 %v1853
    %v2112 = vunpack.c.l.b16 %v1854
    %v2113 = vunpack.c.h.b16 %v1854
    %v2114 = vunpack.c.l.b16 %v1855
    %v2115 = vunpack.c.h.b16 %v1855
    %v2116 = vunpack.c.l.b16 %v1856
    %v2117 = vunpack.c.h.b16 %v1856
    %v2118 = vunpack.c.l.b16 %v1857
    %v2119 = vunpack.c.h.b16 %v1857
    %v2120 = vunpack.c.l.b16 %v1858
    %v2121 = vunpack.c.h.b16 %v1858
    %v2122 = vunpack.c.l.b16 %v1859
    %v2123 = vunpack.c.h.b16 %v1859
    %v2124 = vunpack.c.l.b16 %v1860
    %v2125 = vunpack.c.h.b16 %v1860
    %v2126 = vunpack.c.l.b16 %v1861
    %v2127 = vunpack.c.h.b16 %v1861
    %v2128 = vunpack.c.l.b16 %v1862
    %v2129 = vunpack.c.h.b16 %v1862
    %v2130 = vunpack.c.l.b16 %v1863
    %v2131 = vunpack.c.h.b16 %v1863
    %v2132 = vunpack.c.l.b16 %v1864
    %v2133 = vunpack.c.h.b16 %v1864
    %v2134 = vunpack.c.l.b16 %v1865
    %v2135 = vunpack.c.h.b16 %v1865
    %v2136 = vunpack.c.l.b16 %v1866
    %v2137 = vunpack.c.h.b16 %v1866
    %v2138 = vunpack.c.l.b16 %v1867
    %v2139 = vunpack.c.h.b16 %v1867
    %v2140 = vunpack.c.l.b16 %v1868
    %v2141 = vunpack.c.h.b16 %v1868
    %v2142 = vunpack.c.l.b16 %v1869
    %v2143 = vunpack.c.h.b16 %v1869
    %v2144 = vunpack.c.l.b16 %v1870
    %v2145 = vunpack.c.h.b16 %v1870
    %v2146 = vunpack.c.l.b16 %v1871
    %v2147 = vunpack.c.h.b16 %v1871
    %v2148 = vunpack.c.l.b16 %v1872
    %v2149 = vunpack.c.h.b16 %v1872
    %v2150 = vunpack.c.l.b16 %v1873
    %v2151 = vunpack.c.h.b16 %v1873
    %v2152 = vunpack.c.l.b16 %v1874
    %v2153 = vunpack.c.h.b16 %v1874
    %v2154 = vunpack.c.l.b16 %v1875
    %v2155 = vunpack.c.h.b16 %v1875
    %v2156 = vunpack.c.l.b16 %v1876
    %v2157 = vunpack.c.h.b16 %v1876
    %v2158 = vunpack.c.l.b16 %v1877
    %v2159 = vunpack.c.h.b16 %v1877
    %v2160 = vunpack.c.l.b16 %v1878
    %v2161 = vunpack.c.h.b16 %v1878
    %v2162 = vunpack.c.l.b16 %v1879
    %v2163 = vunpack.c.h.b16 %v1879
    %v2164 = vunpack.c.l.b16 %v1880
    %v2165 = vunpack.c.h.b16 %v1880
    %v2166 = vunpack.c.l.b16 %v1881
    %v2167 = vunpack.c.h.b16 %v1881
    %v2168 = vunpack.c.l.b16 %v1882
    %v2169 = vunpack.c.h.b16 %v1882
    %v2170 = vunpack.c.l.b16 %v1883
    %v2171 = vunpack.c.h.b16 %v1883
    %v2172 = vunpack.c.l.b16 %v1884
    %v2173 = vunpack.c.h.b16 %v1884
    %v2174 = vunpack.c.l.b16 %v1885
    %v2175 = vunpack.c.h.b16 %v1885
    %v2176 = vunpack.c.l.b16 %v1886
    %v2177 = vunpack.c.h.b16 %v1886
    %v2178 = vunpack.c.l.b16 %v1887
    %v2179 = vunpack.c.h.b16 %v1887
    %v2180 = vunpack.c.l.b16 %v1888
    %v2181 = vunpack.c.h.b16 %v1888
    %v2182 = vunpack.c.l.b16 %v1889
    %v2183 = vunpack.c.h.b16 %v1889
    %v2184 = vunpack.c.l.b16 %v1890
    %v2185 = vunpack.c.h.b16 %v1890
    %v2186 = vunpack.c.l.b16 %v1891
    %v2187 = vunpack.c.h.b16 %v1891
    %v2188 = vunpack.c.l.b16 %v1892
    %v2189 = vunpack.c.h.b16 %v1892
    %v2190 = vunpack.c.l.b16 %v1893
    %v2191 = vunpack.c.h.b16 %v1893
    %v2192 = vunpack.c.l.b16 %v1894
    %v2193 = vunpack.c.h.b16 %v1894
    %v2194 = vunpack.c.l.b16 %v1895
    %v2195 = vunpack.c.h.b16 %v1895
    %v2196 = vunpack.c.l.b16 %v1896
    %v2197 = vunpack.c.h.b16 %v1896
    %v2198 = vunpack.c.l.b16 %v1897
    %v2199 = vunpack.c.h.b16 %v1897
    %v2200 = vunpack.c.l.b16 %v1898
    %v2201 = vunpack.c.h.b16 %v1898
    %v2202 = vunpack.c.l.b16 %v1899
    %v2203 = vunpack.c.h.b16 %v1899
    %v2204 = vunpack.c.l.b16 %v1900
    %v2205 = vunpack.c.h.b16 %v1900
    %v2206 = vunpack.c.l.b16 %v1901
    %v2207 = vunpack.c.h.b16 %v1901
    %v2208 = vunpack.c.l.b16 %v1902
    %v2209 = vunpack.c.h.b16 %v1902
    %v2210 = vunpack.c.l.b16 %v1903
    %v2211 = vunpack.c.h.b16 %v1903
    %v2212 = vunpack.c.l.b16 %v1904
    %v2213 = vunpack.c.h.b16 %v1904
    %v2214 = vunpack.c.l.b16 %v1905
    %v2215 = vunpack.c.h.b16 %v1905
    %v2216 = vunpack.c.l.b16 %v1906
    %v2217 = vunpack.c.h.b16 %v1906
    %v2218 = vunpack.c.l.b16 %v1907
    %v2219 = vunpack.c.h.b16 %v1907
    %v2220 = vunpack.c.l.b16 %v1908
    %v2221 = vunpack.c.h.b16 %v1908
    %v2222 = vunpack.c.l.b16 %v1909
    %v2223 = vunpack.c.h.b16 %v1909
    %v2224 = vunpack.c.l.b16 %v1910
    %v2225 = vunpack.c.h.b16 %v1910
    %v2226 = vunpack.c.l.b16 %v1911
    %v2227 = vunpack.c.h.b16 %v1911
    %v2228 = vunpack.c.l.b16 %v1912
    %v2229 = vunpack.c.h.b16 %v1912
    %v2230 = vunpack.c.l.b16 %v1913
    %v2231 = vunpack.c.h.b16 %v1913
    %v2232 = vunpack.c.l.b16 %v1914
    %v2233 = vunpack.c.h.b16 %v1914
    %v2234 = vunpack.c.l.b16 %v1915
    %v2235 = vunpack.c.h.b16 %v1915
    %v2236 = vpack.c.b16 %v2050, %v2044
    %v2237 = vpack.c.b16 %v2051, %v2045
    %v2238 = vpack.c.b16 %v2052, %v2046
    %v2239 = vpack.c.b16 %v2053, %v2047
    %v2240 = vpack.c.b16 %v2054, %v2048
    %v2241 = vpack.c.b16 %v2055, %v2049
    %v2242 = vpack.c.b16 %v2062, %v2056
    %v2243 = vpack.c.b16 %v2063, %v2057
    %v2244 = vpack.c.b16 %v2064, %v2058
    %v2245 = vpack.c.b16 %v2065, %v2059
    %v2246 = vpack.c.b16 %v2066, %v2060
    %v2247 = vpack.c.b16 %v2067, %v2061
    %v2248 = vpack.c.b16 %v2074, %v2068
    %v2249 = vpack.c.b16 %v2075, %v2069
    %v2250 = vpack.c.b16 %v2076, %v2070
    %v2251 = vpack.c.b16 %v2077, %v2071
    %v2252 = vpack.c.b16 %v2078, %v2072
    %v2253 = vpack.c.b16 %v2079, %v2073
    %v2254 = vpack.c.b16 %v2086, %v2080
    %v2255 = vpack.c.b16 %v2087, %v2081
    %v2256 = vpack.c.b16 %v2088, %v2082
    %v2257 = vpack.c.b16 %v2089, %v2083
    %v2258 = vpack.c.b16 %v2090, %v2084
    %v2259 = vpack.c.b16 %v2091, %v2085
    %v2260 = vpack.c.b16 %v2098, %v2092
    %v2261 = vpack.c.b16 %v2099, %v2093
    %v2262 = vpack.c.b16 %v2100, %v2094
    %v2263 = vpack.c.b16 %v2101, %v2095
    %v2264 = vpack.c.b16 %v2102, %v2096
    %v2265 = vpack.c.b16 %v2103, %v2097
    %v2266 = vpack.c.b16 %v2110, %v2104
    %v2267 = vpack.c.b16 %v2111, %v2105
    %v2268 = vpack.c.b16 %v2112, %v2106
    %v2269 = vpack.c.b16 %v2113, %v2107
    %v2270 = vpack.c.b16 %v2114, %v2108
    %v2271 = vpack.c.b16 %v2115, %v2109
    %v2272 = vpack.c.b16 %v2122, %v2116
    %v2273 = vpack.c.b16 %v2123, %v2117
    %v2274 = vpack.c.b16 %v2124, %v2118
    %v2275 = vpack.c.b16 %v2125, %v2119
    %v2276 = vpack.c.b16 %v2126, %v2120
    %v2277 = vpack.c.b16 %v2127, %v2121
    %v2278 = vpack.c.b16 %v2134, %v2128
    %v2279 = vpack.c.b16 %v2135, %v2129
    %v2280 = vpack.c.b16 %v2136, %v2130
    %v2281 = vpack.c.b16 %v2137, %v2131
    %v2282 = vpack.c.b16 %v2138, %v2132
    %v2283 = vpack.c.b16 %v2139, %v2133
    %v2284 = vpack.c.b16 %v2146, %v2140
    %v2285 = vpack.c.b16 %v2147, %v2141
    %v2286 = vpack.c.b16 %v2148, %v2142
    %v2287 = vpack.c.b16 %v2149, %v2143
    %v2288 = vpack.c.b16 %v2150, %v2144
    %v2289 = vpack.c.b16 %v2151, %v2145
    %v2290 = vpack.c.b16 %v2158, %v2152
    %v2291 = vpack.c.b16 %v2159, %v2153
    %v2292 = vpack.c.b16 %v2160, %v2154
    %v2293 = vpack.c.b16 %v2161, %v2155
    %v2294 = vpack.c.b16 %v2162, %v2156
    %v2295 = vpack.c.b16 %v2163, %v2157
    %v2296 = vpack.c.b16 %v2170, %v2164
    %v2297 = vpack.c.b16 %v2171, %v2165
    %v2298 = vpack.c.b16 %v2172, %v2166
    %v2299 = vpack.c.b16 %v2173, %v2167
    %v2300 = vpack.c.b16 %v2174, %v2168
    %v2301 = vpack.c.b16 %v2175, %v2169
    %v2302 = vpack.c.b16 %v2182, %v2176
    %v2303 = vpack.c.b16 %v2183, %v2177
    %v2304 = vpack.c.b16 %v2184, %v2178
    %v2305 = vpack.c.b16 %v2185, %v2179
    %v2306 = vpack.c.b16 %v2186, %v2180
    %v2307 = vpack.c.b16 %v2187, %v2181
    %v2308 = vpack.c.b16 %v2194, %v2188
    %v2309 = vpack.c.b16 %v2195, %v2189
    %v2310 = vpack.c.b16 %v2196, %v2190
    %v2311 = vpack.c.b16 %v2197, %v2191
    %v2312 = vpack.c.b16 %v2198, %v2192
    %v2313 = vpack.c.b16 %v2199, %v2193
    %v2314 = vpack.c.b16 %v2206, %v2200
    %v2315 = vpack.c.b16 %v2207, %v2201
    %v2316 = vpack.c.b16 %v2208, %v2202
    %v2317 = vpack.c.b16 %v2209, %v2203
    %v2318 = vpack.c.b16 %v2210, %v2204
    %v2319 = vpack.c.b16 %v2211, %v2205
    %v2320 = vpack.c.b16 %v2218, %v2212
    %v2321 = vpack.c.b16 %v2219, %v2213
    %v2322 = vpack.c.b16 %v2220, %v2214
    %v2323 = vpack.c.b16 %v2221, %v2215
    %v2324 = vpack.c.b16 %v2222, %v2216
    %v2325 = vpack.c.b16 %v2223, %v2217
    %v2326 = vpack.c.b16 %v2230, %v2224
    %v2327 = vpack.c.b16 %v2231, %v2225
    %v2328 = vpack.c.b16 %v2232, %v2226
    %v2329 = vpack.c.b16 %v2233, %v2227
    %v2330 = vpack.c.b16 %v2234, %v2228
    %v2331 = vpack.c.b16 %v2235, %v2229
    %2428 = vmatprep.subr.bf16.mxu0 %v2237
    %2429 = vmatpush1.bf16.msra.mxu0 %v2236
    %2430 = vmatprep.subr.bf16.mxu0 %v2243
    %2431 = vmatpush1.bf16.msra.mxu0 %v2242
    %2432 = vmatprep.subr.bf16.mxu0 %v2249
    %2433 = vmatpush1.bf16.msra.mxu0 %v2248
    %2434 = vmatprep.subr.bf16.mxu0 %v2255
    %2435 = vmatpush1.bf16.msra.mxu0 %v2254
    %2436 = vmatprep.subr.bf16.mxu0 %v2261
    %2437 = vmatpush1.bf16.msra.mxu0 %v2260
    %2438 = vmatprep.subr.bf16.mxu0 %v2267
    %2439 = vmatpush1.bf16.msra.mxu0 %v2266
    %2440 = vmatprep.subr.bf16.mxu0 %v2273
    %2441 = vmatpush1.bf16.msra.mxu0 %v2272
    %2442 = vmatprep.subr.bf16.mxu0 %v2279
    %2443 = vmatpush1.bf16.msra.mxu0 %v2278
    %2444 = vmatprep.subr.bf16.mxu0 %v2285
    %2445 = vmatpush1.bf16.msra.mxu0 %v2284
    %2446 = vmatprep.subr.bf16.mxu0 %v2291
    %2447 = vmatpush1.bf16.msra.mxu0 %v2290
    %2448 = vmatprep.subr.bf16.mxu0 %v2297
    %2449 = vmatpush1.bf16.msra.mxu0 %v2296
    %2450 = vmatprep.subr.bf16.mxu0 %v2303
    %2451 = vmatpush1.bf16.msra.mxu0 %v2302
    %2452 = vmatprep.subr.bf16.mxu0 %v2309
    %2453 = vmatpush1.bf16.msra.mxu0 %v2308
    %2454 = vmatprep.subr.bf16.mxu0 %v2315
    %2455 = vmatpush1.bf16.msra.mxu0 %v2314
    %2456 = vmatprep.subr.bf16.mxu0 %v2321
    %2457 = vmatpush1.bf16.msra.mxu0 %v2320
    %2458 = vmatprep.subr.bf16.mxu0 %v2327
    %2459 = vmatpush1.bf16.msra.mxu0 %v2326
    %2460 = vmatprep.mubr.bf16.mxu0 %v1819
    %2461 = vmatmul.mubr.bf16.gmra.mrb[0].mxu0 %v1818
    %v2462 = vpop.f32.mrb[0].mxu0
    %v2463 = vadd.f32 %v1921, %v2462
    %v2464 = vpop.f32.mrb[0].mxu0
    %v2465 = vadd.f32 %v1925, %v2464
    %v2466 = vpop.f32.mrb[0].mxu0
    %v2467 = vpop.f32.mrb[0].mxu0
    %2468 = vdwg.mxu0
    %2469 = vmatprep.subr.bf16.mxu0 %v2239
    %2470 = vmatpush1.bf16.msra.mxu0 %v2238
    %2471 = vmatprep.subr.bf16.mxu0 %v2245
    %2472 = vmatpush1.bf16.msra.mxu0 %v2244
    %2473 = vmatprep.subr.bf16.mxu0 %v2251
    %2474 = vmatpush1.bf16.msra.mxu0 %v2250
    %2475 = vmatprep.subr.bf16.mxu0 %v2257
    %2476 = vmatpush1.bf16.msra.mxu0 %v2256
    %2477 = vmatprep.subr.bf16.mxu0 %v2263
    %2478 = vmatpush1.bf16.msra.mxu0 %v2262
    %2479 = vmatprep.subr.bf16.mxu0 %v2269
    %2480 = vmatpush1.bf16.msra.mxu0 %v2268
    %2481 = vmatprep.subr.bf16.mxu0 %v2275
    %2482 = vmatpush1.bf16.msra.mxu0 %v2274
    %2483 = vmatprep.subr.bf16.mxu0 %v2281
    %2484 = vmatpush1.bf16.msra.mxu0 %v2280
    %2485 = vmatprep.subr.bf16.mxu0 %v2287
    %2486 = vmatpush1.bf16.msra.mxu0 %v2286
    %2487 = vmatprep.subr.bf16.mxu0 %v2293
    %2488 = vmatpush1.bf16.msra.mxu0 %v2292
    %2489 = vmatprep.subr.bf16.mxu0 %v2299
    %2490 = vmatpush1.bf16.msra.mxu0 %v2298
    %2491 = vmatprep.subr.bf16.mxu0 %v2305
    %2492 = vmatpush1.bf16.msra.mxu0 %v2304
    %2493 = vmatprep.subr.bf16.mxu0 %v2311
    %2494 = vmatpush1.bf16.msra.mxu0 %v2310
    %2495 = vmatprep.subr.bf16.mxu0 %v2317
    %2496 = vmatpush1.bf16.msra.mxu0 %v2316
    %2497 = vmatprep.subr.bf16.mxu0 %v2323
    %2498 = vmatpush1.bf16.msra.mxu0 %v2322
    %2499 = vmatprep.subr.bf16.mxu0 %v2329
    %2500 = vmatpush1.bf16.msra.mxu0 %v2328
    %2501 = vmatprep.mubr.bf16.mxu0 %v1819
    %2502 = vmatmul.mubr.bf16.gmra.mrb[0].mxu0 %v1818
    %v2503 = vpop.f32.mrb[0].mxu0
    %v2504 = vadd.f32 %v1929, %v2503
    %v2505 = vpop.f32.mrb[0].mxu0
    %v2506 = vadd.f32 %v1933, %v2505
    %v2507 = vpop.f32.mrb[0].mxu0
    %v2508 = vpop.f32.mrb[0].mxu0
    %2509 = vdwg.mxu0
    %2510 = vmatprep.subr.bf16.mxu0 %v2241
    %2511 = vmatpush1.bf16.msra.mxu0 %v2240
    %2512 = vmatprep.subr.bf16.mxu0 %v2247
    %2513 = vmatpush1.bf16.msra.mxu0 %v2246
    %2514 = vmatprep.subr.bf16.mxu0 %v2253
    %2515 = vmatpush1.bf16.msra.mxu0 %v2252
    %2516 = vmatprep.subr.bf16.mxu0 %v2259
    %2517 = vmatpush1.bf16.msra.mxu0 %v2258
    %2518 = vmatprep.subr.bf16.mxu0 %v2265
    %2519 = vmatpush1.bf16.msra.mxu0 %v2264
    %2520 = vmatprep.subr.bf16.mxu0 %v2271
    %2521 = vmatpush1.bf16.msra.mxu0 %v2270
    %2522 = vmatprep.subr.bf16.mxu0 %v2277
    %2523 = vmatpush1.bf16.msra.mxu0 %v2276
    %2524 = vmatprep.subr.bf16.mxu0 %v2283
    %2525 = vmatpush1.bf16.msra.mxu0 %v2282
    %2526 = vmatprep.subr.bf16.mxu0 %v2289
    %2527 = vmatpush1.bf16.msra.mxu0 %v2288
    %2528 = vmatprep.subr.bf16.mxu0 %v2295
    %2529 = vmatpush1.bf16.msra.mxu0 %v2294
    %2530 = vmatprep.subr.bf16.mxu0 %v2301
    %2531 = vmatpush1.bf16.msra.mxu0 %v2300
    %2532 = vmatprep.subr.bf16.mxu0 %v2307
    %2533 = vmatpush1.bf16.msra.mxu0 %v2306
    %2534 = vmatprep.subr.bf16.mxu0 %v2313
    %2535 = vmatpush1.bf16.msra.mxu0 %v2312
    %2536 = vmatprep.subr.bf16.mxu0 %v2319
    %2537 = vmatpush1.bf16.msra.mxu0 %v2318
    %2538 = vmatprep.subr.bf16.mxu0 %v2325
    %2539 = vmatpush1.bf16.msra.mxu0 %v2324
    %2540 = vmatprep.subr.bf16.mxu0 %v2331
    %2541 = vmatpush1.bf16.msra.mxu0 %v2330
    %2542 = vmatprep.mubr.bf16.mxu0 %v1819
    %2543 = vmatmul.mubr.bf16.gmra.mrb[0].mxu0 %v1818
    %v2544 = vpop.f32.mrb[0].mxu0
    %v2545 = vadd.f32 %v1937, %v2544
    %v2546 = vpop.f32.mrb[0].mxu0
    %v2547 = vadd.f32 %v1941, %v2546
    %v2548 = vpop.f32.mrb[0].mxu0
    %v2549 = vpop.f32.mrb[0].mxu0
    %2550 = vdwg.mxu0
    %v2551 = vadd.f32 %v1812, %v2463
    %v2552 = vadd.f32 %v1813, %v2465
    %v2553 = vxor.u32 %v2551, 2147483648
    %v2554 = vxor.u32 %v2552, 2147483648
    %v2555 = vmul.f32 %v2553, 1.442695
    %v2556 = vpow.pop %v2555
    %v2557 = vmul.f32 %v2554, 1.442695
    %v2558 = vpow.pop %v2557
    %v2559 = vadd.f32 %v2556, 1.0
    %v2560 = vadd.f32 %v2558, 1.0
    %v2561 = vrcp.pop %v2559
    %v2562 = vmul.f32 1.0, %v2561
    %v2563 = vrcp.pop %v2560
    %v2564 = vmul.f32 1.0, %v2563
    %v2565 = vadd.f32 %v1814, %v2504
    %v2566 = vadd.f32 %v1815, %v2506
    %v2567 = vxor.u32 %v2565, 2147483648
    %v2568 = vxor.u32 %v2566, 2147483648
    %v2569 = vmul.f32 %v2567, 1.442695
    %v2570 = vpow.pop %v2569
    %v2571 = vmul.f32 %v2568, 1.442695
    %v2572 = vpow.pop %v2571
    %v2573 = vadd.f32 %v2570, 1.0
    %v2574 = vadd.f32 %v2572, 1.0
    %v2575 = vrcp.pop %v2573
    %v2576 = vmul.f32 1.0, %v2575
    %v2577 = vrcp.pop %v2574
    %v2578 = vmul.f32 1.0, %v2577
    %v2579 = vmul.f32 %v2562, %v2545
    %v2580 = vmul.f32 %v2564, %v2547
    %v2581 = vadd.f32 %v1816, %v2579
    %v2582 = vadd.f32 %v1817, %v2580
    %v2583 = vtanh.pop %v2581
    %v2584 = vtanh.pop %v2582
    %v2585 = vsub.f32 1.0, %v2576
    %v2586 = vsub.f32 1.0, %v2578
    %v2587 = vmul.f32 %v2585, %v2583
    %v2588 = vmul.f32 %v2586, %v2584
    %v2589 = vmul.f32 %v2576, %v1808
    %v2590 = vmul.f32 %v2578, %v1809
    %v2591 = vadd.f32 %v2587, %v2589
    %v2592 = vadd.f32 %v2588, %v2590
    %2593 = vst [vmem:[#allocation3 + $0x10] sm:$0xff] %v2591
    %2594 = vst [vmem:[#allocation3 + $0x18] sm:$0xff] %v2592
    %v2595 = vld [vmem:[#allocation2 + $0x60] sm:$0xff]
    %v2596 = vld [vmem:[#allocation2 + $0x68] sm:$0xff]
    %v2597 = vld [vmem:[#allocation2 + $0x70] sm:$0xff]
    %v2598 = vld [vmem:[#allocation2 + $0x78] sm:$0xff]
    %v2599 = vld [vmem:[#allocation2 + $0x80] sm:$0xff]
    %v2600 = vld [vmem:[#allocation2 + $0x88] sm:$0xff]
    %v2601 = vpack.c.bf16 %v2591, %v2591
    %v2602 = vpack.c.bf16 %v2592, %v2592
    %v2603 = vld [vmem:[#allocation10] sm:$0xff]
    %v2604 = vld [vmem:[#allocation10 + $0x8] sm:$0xff]
    %v2605 = vld [vmem:[#allocation10 + $0x10] sm:$0xff]
    %v2606 = vld [vmem:[#allocation10 + $0x18] sm:$0xff]
    %v2607 = vld [vmem:[#allocation10 + $0x20] sm:$0xff]
    %v2608 = vld [vmem:[#allocation10 + $0x28] sm:$0xff]
    %v2609 = vld [vmem:[#allocation10 + $0x30] sm:$0xff]
    %v2610 = vld [vmem:[#allocation10 + $0x38] sm:$0xff]
    %v2611 = vld [vmem:[#allocation10 + $0x40] sm:$0xff]
    %v2612 = vld [vmem:[#allocation10 + $0x48] sm:$0xff]
    %v2613 = vld [vmem:[#allocation10 + $0x50] sm:$0xff]
    %v2614 = vld [vmem:[#allocation10 + $0x58] sm:$0xff]
    %v2615 = vld [vmem:[#allocation10 + $0x60] sm:$0xff]
    %v2616 = vld [vmem:[#allocation10 + $0x68] sm:$0xff]
    %v2617 = vld [vmem:[#allocation10 + $0x70] sm:$0xff]
    %v2618 = vld [vmem:[#allocation10 + $0x78] sm:$0xff]
    %v2619 = vld [vmem:[#allocation10 + $0x80] sm:$0xff]
    %v2620 = vld [vmem:[#allocation10 + $0x88] sm:$0xff]
    %v2621 = vld [vmem:[#allocation10 + $0x90] sm:$0xff]
    %v2622 = vld [vmem:[#allocation10 + $0x98] sm:$0xff]
    %v2623 = vld [vmem:[#allocation10 + $0xa0] sm:$0xff]
    %v2624 = vld [vmem:[#allocation10 + $0xa8] sm:$0xff]
    %v2625 = vld [vmem:[#allocation10 + $0xb0] sm:$0xff]
    %v2626 = vld [vmem:[#allocation10 + $0xb8] sm:$0xff]
    %v2627 = vld [vmem:[#allocation10 + $0xc0] sm:$0xff]
    %v2628 = vld [vmem:[#allocation10 + $0xc8] sm:$0xff]
    %v2629 = vld [vmem:[#allocation10 + $0xd0] sm:$0xff]
    %v2630 = vld [vmem:[#allocation10 + $0xd8] sm:$0xff]
    %v2631 = vld [vmem:[#allocation10 + $0xe0] sm:$0xff]
    %v2632 = vld [vmem:[#allocation10 + $0xe8] sm:$0xff]
    %v2633 = vld [vmem:[#allocation10 + $0xf0] sm:$0xff]
    %v2634 = vld [vmem:[#allocation10 + $0xf8] sm:$0xff]
    %v2635 = vld [vmem:[#allocation10 + $0x100] sm:$0xff]
    %v2636 = vld [vmem:[#allocation10 + $0x108] sm:$0xff]
    %v2637 = vld [vmem:[#allocation10 + $0x110] sm:$0xff]
    %v2638 = vld [vmem:[#allocation10 + $0x118] sm:$0xff]
    %v2639 = vld [vmem:[#allocation10 + $0x120] sm:$0xff]
    %v2640 = vld [vmem:[#allocation10 + $0x128] sm:$0xff]
    %v2641 = vld [vmem:[#allocation10 + $0x130] sm:$0xff]
    %v2642 = vld [vmem:[#allocation10 + $0x138] sm:$0xff]
    %v2643 = vld [vmem:[#allocation10 + $0x140] sm:$0xff]
    %v2644 = vld [vmem:[#allocation10 + $0x148] sm:$0xff]
    %v2645 = vld [vmem:[#allocation10 + $0x150] sm:$0xff]
    %v2646 = vld [vmem:[#allocation10 + $0x158] sm:$0xff]
    %v2647 = vld [vmem:[#allocation10 + $0x160] sm:$0xff]
    %v2648 = vld [vmem:[#allocation10 + $0x168] sm:$0xff]
    %v2649 = vld [vmem:[#allocation10 + $0x170] sm:$0xff]
    %v2650 = vld [vmem:[#allocation10 + $0x178] sm:$0xff]
    %v2651 = vld [vmem:[#allocation10 + $0x180] sm:$0xff]
    %v2652 = vld [vmem:[#allocation10 + $0x188] sm:$0xff]
    %v2653 = vld [vmem:[#allocation10 + $0x190] sm:$0xff]
    %v2654 = vld [vmem:[#allocation10 + $0x198] sm:$0xff]
    %v2655 = vld [vmem:[#allocation10 + $0x1a0] sm:$0xff]
    %v2656 = vld [vmem:[#allocation10 + $0x1a8] sm:$0xff]
    %v2657 = vld [vmem:[#allocation10 + $0x1b0] sm:$0xff]
    %v2658 = vld [vmem:[#allocation10 + $0x1b8] sm:$0xff]
    %v2659 = vld [vmem:[#allocation10 + $0x1c0] sm:$0xff]
    %v2660 = vld [vmem:[#allocation10 + $0x1c8] sm:$0xff]
    %v2661 = vld [vmem:[#allocation10 + $0x1d0] sm:$0xff]
    %v2662 = vld [vmem:[#allocation10 + $0x1d8] sm:$0xff]
    %v2663 = vld [vmem:[#allocation10 + $0x1e0] sm:$0xff]
    %v2664 = vld [vmem:[#allocation10 + $0x1e8] sm:$0xff]
    %v2665 = vld [vmem:[#allocation10 + $0x1f0] sm:$0xff]
    %v2666 = vld [vmem:[#allocation10 + $0x1f8] sm:$0xff]
    %v2667 = vld [vmem:[#allocation10 + $0x200] sm:$0xff]
    %v2668 = vld [vmem:[#allocation10 + $0x208] sm:$0xff]
    %v2669 = vld [vmem:[#allocation10 + $0x210] sm:$0xff]
    %v2670 = vld [vmem:[#allocation10 + $0x218] sm:$0xff]
    %v2671 = vld [vmem:[#allocation10 + $0x220] sm:$0xff]
    %v2672 = vld [vmem:[#allocation10 + $0x228] sm:$0xff]
    %v2673 = vld [vmem:[#allocation10 + $0x230] sm:$0xff]
    %v2674 = vld [vmem:[#allocation10 + $0x238] sm:$0xff]
    %v2675 = vld [vmem:[#allocation10 + $0x240] sm:$0xff]
    %v2676 = vld [vmem:[#allocation10 + $0x248] sm:$0xff]
    %v2677 = vld [vmem:[#allocation10 + $0x250] sm:$0xff]
    %v2678 = vld [vmem:[#allocation10 + $0x258] sm:$0xff]
    %v2679 = vld [vmem:[#allocation10 + $0x260] sm:$0xff]
    %v2680 = vld [vmem:[#allocation10 + $0x268] sm:$0xff]
    %v2681 = vld [vmem:[#allocation10 + $0x270] sm:$0xff]
    %v2682 = vld [vmem:[#allocation10 + $0x278] sm:$0xff]
    %v2683 = vld [vmem:[#allocation10 + $0x280] sm:$0xff]
    %v2684 = vld [vmem:[#allocation10 + $0x288] sm:$0xff]
    %v2685 = vld [vmem:[#allocation10 + $0x290] sm:$0xff]
    %v2686 = vld [vmem:[#allocation10 + $0x298] sm:$0xff]
    %v2687 = vld [vmem:[#allocation10 + $0x2a0] sm:$0xff]
    %v2688 = vld [vmem:[#allocation10 + $0x2a8] sm:$0xff]
    %v2689 = vld [vmem:[#allocation10 + $0x2b0] sm:$0xff]
    %v2690 = vld [vmem:[#allocation10 + $0x2b8] sm:$0xff]
    %v2691 = vld [vmem:[#allocation10 + $0x2c0] sm:$0xff]
    %v2692 = vld [vmem:[#allocation10 + $0x2c8] sm:$0xff]
    %v2693 = vld [vmem:[#allocation10 + $0x2d0] sm:$0xff]
    %v2694 = vld [vmem:[#allocation10 + $0x2d8] sm:$0xff]
    %v2695 = vld [vmem:[#allocation10 + $0x2e0] sm:$0xff]
    %v2696 = vld [vmem:[#allocation10 + $0x2e8] sm:$0xff]
    %v2697 = vld [vmem:[#allocation10 + $0x2f0] sm:$0xff]
    %v2698 = vld [vmem:[#allocation10 + $0x2f8] sm:$0xff]
    %v2699 = vld [vmem:[%s8] sm:$0x3f]
    %v2701 = vlaneseq
    %v2702 = vshrl.u32 %v2701, 7
    %v2703 = vsub.s32 0, %v2702
    %v2704 = vrot.slane %v2699, %v2703
    %v2705 = vlaneseq
    %v2706 = vshrl.u32 %v2705, 7
    %v2707 = vsub.s32 1, %v2706
    %v2708 = vrot.slane %v2699, %v2707
    %v2709 = vlaneseq
    %v2710 = vshrl.u32 %v2709, 7
    %v2711 = vsub.s32 2, %v2710
    %v2712 = vrot.slane %v2699, %v2711
    %v2713 = vlaneseq
    %v2714 = vshrl.u32 %v2713, 7
    %v2715 = vsub.s32 3, %v2714
    %v2716 = vrot.slane %v2699, %v2715
    %v2717 = vlaneseq
    %v2718 = vshrl.u32 %v2717, 7
    %v2719 = vsub.s32 4, %v2718
    %v2720 = vrot.slane %v2699, %v2719
    %v2721 = vlaneseq
    %v2722 = vshrl.u32 %v2721, 7
    %v2723 = vsub.s32 5, %v2722
    %v2724 = vrot.slane %v2699, %v2723
    %v2827 = vunpack.c.l.b16 %v2603
    %v2828 = vunpack.c.h.b16 %v2603
    %v2829 = vunpack.c.l.b16 %v2604
    %v2830 = vunpack.c.h.b16 %v2604
    %v2831 = vunpack.c.l.b16 %v2605
    %v2832 = vunpack.c.h.b16 %v2605
    %v2833 = vunpack.c.l.b16 %v2606
    %v2834 = vunpack.c.h.b16 %v2606
    %v2835 = vunpack.c.l.b16 %v2607
    %v2836 = vunpack.c.h.b16 %v2607
    %v2837 = vunpack.c.l.b16 %v2608
    %v2838 = vunpack.c.h.b16 %v2608
    %v2839 = vunpack.c.l.b16 %v2609
    %v2840 = vunpack.c.h.b16 %v2609
    %v2841 = vunpack.c.l.b16 %v2610
    %v2842 = vunpack.c.h.b16 %v2610
    %v2843 = vunpack.c.l.b16 %v2611
    %v2844 = vunpack.c.h.b16 %v2611
    %v2845 = vunpack.c.l.b16 %v2612
    %v2846 = vunpack.c.h.b16 %v2612
    %v2847 = vunpack.c.l.b16 %v2613
    %v2848 = vunpack.c.h.b16 %v2613
    %v2849 = vunpack.c.l.b16 %v2614
    %v2850 = vunpack.c.h.b16 %v2614
    %v2851 = vunpack.c.l.b16 %v2615
    %v2852 = vunpack.c.h.b16 %v2615
    %v2853 = vunpack.c.l.b16 %v2616
    %v2854 = vunpack.c.h.b16 %v2616
    %v2855 = vunpack.c.l.b16 %v2617
    %v2856 = vunpack.c.h.b16 %v2617
    %v2857 = vunpack.c.l.b16 %v2618
    %v2858 = vunpack.c.h.b16 %v2618
    %v2859 = vunpack.c.l.b16 %v2619
    %v2860 = vunpack.c.h.b16 %v2619
    %v2861 = vunpack.c.l.b16 %v2620
    %v2862 = vunpack.c.h.b16 %v2620
    %v2863 = vunpack.c.l.b16 %v2621
    %v2864 = vunpack.c.h.b16 %v2621
    %v2865 = vunpack.c.l.b16 %v2622
    %v2866 = vunpack.c.h.b16 %v2622
    %v2867 = vunpack.c.l.b16 %v2623
    %v2868 = vunpack.c.h.b16 %v2623
    %v2869 = vunpack.c.l.b16 %v2624
    %v2870 = vunpack.c.h.b16 %v2624
    %v2871 = vunpack.c.l.b16 %v2625
    %v2872 = vunpack.c.h.b16 %v2625
    %v2873 = vunpack.c.l.b16 %v2626
    %v2874 = vunpack.c.h.b16 %v2626
    %v2875 = vunpack.c.l.b16 %v2627
    %v2876 = vunpack.c.h.b16 %v2627
    %v2877 = vunpack.c.l.b16 %v2628
    %v2878 = vunpack.c.h.b16 %v2628
    %v2879 = vunpack.c.l.b16 %v2629
    %v2880 = vunpack.c.h.b16 %v2629
    %v2881 = vunpack.c.l.b16 %v2630
    %v2882 = vunpack.c.h.b16 %v2630
    %v2883 = vunpack.c.l.b16 %v2631
    %v2884 = vunpack.c.h.b16 %v2631
    %v2885 = vunpack.c.l.b16 %v2632
    %v2886 = vunpack.c.h.b16 %v2632
    %v2887 = vunpack.c.l.b16 %v2633
    %v2888 = vunpack.c.h.b16 %v2633
    %v2889 = vunpack.c.l.b16 %v2634
    %v2890 = vunpack.c.h.b16 %v2634
    %v2891 = vunpack.c.l.b16 %v2635
    %v2892 = vunpack.c.h.b16 %v2635
    %v2893 = vunpack.c.l.b16 %v2636
    %v2894 = vunpack.c.h.b16 %v2636
    %v2895 = vunpack.c.l.b16 %v2637
    %v2896 = vunpack.c.h.b16 %v2637
    %v2897 = vunpack.c.l.b16 %v2638
    %v2898 = vunpack.c.h.b16 %v2638
    %v2899 = vunpack.c.l.b16 %v2639
    %v2900 = vunpack.c.h.b16 %v2639
    %v2901 = vunpack.c.l.b16 %v2640
    %v2902 = vunpack.c.h.b16 %v2640
    %v2903 = vunpack.c.l.b16 %v2641
    %v2904 = vunpack.c.h.b16 %v2641
    %v2905 = vunpack.c.l.b16 %v2642
    %v2906 = vunpack.c.h.b16 %v2642
    %v2907 = vunpack.c.l.b16 %v2643
    %v2908 = vunpack.c.h.b16 %v2643
    %v2909 = vunpack.c.l.b16 %v2644
    %v2910 = vunpack.c.h.b16 %v2644
    %v2911 = vunpack.c.l.b16 %v2645
    %v2912 = vunpack.c.h.b16 %v2645
    %v2913 = vunpack.c.l.b16 %v2646
    %v2914 = vunpack.c.h.b16 %v2646
    %v2915 = vunpack.c.l.b16 %v2647
    %v2916 = vunpack.c.h.b16 %v2647
    %v2917 = vunpack.c.l.b16 %v2648
    %v2918 = vunpack.c.h.b16 %v2648
    %v2919 = vunpack.c.l.b16 %v2649
    %v2920 = vunpack.c.h.b16 %v2649
    %v2921 = vunpack.c.l.b16 %v2650
    %v2922 = vunpack.c.h.b16 %v2650
    %v2923 = vunpack.c.l.b16 %v2651
    %v2924 = vunpack.c.h.b16 %v2651
    %v2925 = vunpack.c.l.b16 %v2652
    %v2926 = vunpack.c.h.b16 %v2652
    %v2927 = vunpack.c.l.b16 %v2653
    %v2928 = vunpack.c.h.b16 %v2653
    %v2929 = vunpack.c.l.b16 %v2654
    %v2930 = vunpack.c.h.b16 %v2654
    %v2931 = vunpack.c.l.b16 %v2655
    %v2932 = vunpack.c.h.b16 %v2655
    %v2933 = vunpack.c.l.b16 %v2656
    %v2934 = vunpack.c.h.b16 %v2656
    %v2935 = vunpack.c.l.b16 %v2657
    %v2936 = vunpack.c.h.b16 %v2657
    %v2937 = vunpack.c.l.b16 %v2658
    %v2938 = vunpack.c.h.b16 %v2658
    %v2939 = vunpack.c.l.b16 %v2659
    %v2940 = vunpack.c.h.b16 %v2659
    %v2941 = vunpack.c.l.b16 %v2660
    %v2942 = vunpack.c.h.b16 %v2660
    %v2943 = vunpack.c.l.b16 %v2661
    %v2944 = vunpack.c.h.b16 %v2661
    %v2945 = vunpack.c.l.b16 %v2662
    %v2946 = vunpack.c.h.b16 %v2662
    %v2947 = vunpack.c.l.b16 %v2663
    %v2948 = vunpack.c.h.b16 %v2663
    %v2949 = vunpack.c.l.b16 %v2664
    %v2950 = vunpack.c.h.b16 %v2664
    %v2951 = vunpack.c.l.b16 %v2665
    %v2952 = vunpack.c.h.b16 %v2665
    %v2953 = vunpack.c.l.b16 %v2666
    %v2954 = vunpack.c.h.b16 %v2666
    %v2955 = vunpack.c.l.b16 %v2667
    %v2956 = vunpack.c.h.b16 %v2667
    %v2957 = vunpack.c.l.b16 %v2668
    %v2958 = vunpack.c.h.b16 %v2668
    %v2959 = vunpack.c.l.b16 %v2669
    %v2960 = vunpack.c.h.b16 %v2669
    %v2961 = vunpack.c.l.b16 %v2670
    %v2962 = vunpack.c.h.b16 %v2670
    %v2963 = vunpack.c.l.b16 %v2671
    %v2964 = vunpack.c.h.b16 %v2671
    %v2965 = vunpack.c.l.b16 %v2672
    %v2966 = vunpack.c.h.b16 %v2672
    %v2967 = vunpack.c.l.b16 %v2673
    %v2968 = vunpack.c.h.b16 %v2673
    %v2969 = vunpack.c.l.b16 %v2674
    %v2970 = vunpack.c.h.b16 %v2674
    %v2971 = vunpack.c.l.b16 %v2675
    %v2972 = vunpack.c.h.b16 %v2675
    %v2973 = vunpack.c.l.b16 %v2676
    %v2974 = vunpack.c.h.b16 %v2676
    %v2975 = vunpack.c.l.b16 %v2677
    %v2976 = vunpack.c.h.b16 %v2677
    %v2977 = vunpack.c.l.b16 %v2678
    %v2978 = vunpack.c.h.b16 %v2678
    %v2979 = vunpack.c.l.b16 %v2679
    %v2980 = vunpack.c.h.b16 %v2679
    %v2981 = vunpack.c.l.b16 %v2680
    %v2982 = vunpack.c.h.b16 %v2680
    %v2983 = vunpack.c.l.b16 %v2681
    %v2984 = vunpack.c.h.b16 %v2681
    %v2985 = vunpack.c.l.b16 %v2682
    %v2986 = vunpack.c.h.b16 %v2682
    %v2987 = vunpack.c.l.b16 %v2683
    %v2988 = vunpack.c.h.b16 %v2683
    %v2989 = vunpack.c.l.b16 %v2684
    %v2990 = vunpack.c.h.b16 %v2684
    %v2991 = vunpack.c.l.b16 %v2685
    %v2992 = vunpack.c.h.b16 %v2685
    %v2993 = vunpack.c.l.b16 %v2686
    %v2994 = vunpack.c.h.b16 %v2686
    %v2995 = vunpack.c.l.b16 %v2687
    %v2996 = vunpack.c.h.b16 %v2687
    %v2997 = vunpack.c.l.b16 %v2688
    %v2998 = vunpack.c.h.b16 %v2688
    %v2999 = vunpack.c.l.b16 %v2689
    %v3000 = vunpack.c.h.b16 %v2689
    %v3001 = vunpack.c.l.b16 %v2690
    %v3002 = vunpack.c.h.b16 %v2690
    %v3003 = vunpack.c.l.b16 %v2691
    %v3004 = vunpack.c.h.b16 %v2691
    %v3005 = vunpack.c.l.b16 %v2692
    %v3006 = vunpack.c.h.b16 %v2692
    %v3007 = vunpack.c.l.b16 %v2693
    %v3008 = vunpack.c.h.b16 %v2693
    %v3009 = vunpack.c.l.b16 %v2694
    %v3010 = vunpack.c.h.b16 %v2694
    %v3011 = vunpack.c.l.b16 %v2695
    %v3012 = vunpack.c.h.b16 %v2695
    %v3013 = vunpack.c.l.b16 %v2696
    %v3014 = vunpack.c.h.b16 %v2696
    %v3015 = vunpack.c.l.b16 %v2697
    %v3016 = vunpack.c.h.b16 %v2697
    %v3017 = vunpack.c.l.b16 %v2698
    %v3018 = vunpack.c.h.b16 %v2698
    %v3019 = vpack.c.b16 %v2833, %v2827
    %v3020 = vpack.c.b16 %v2834, %v2828
    %v3021 = vpack.c.b16 %v2835, %v2829
    %v3022 = vpack.c.b16 %v2836, %v2830
    %v3023 = vpack.c.b16 %v2837, %v2831
    %v3024 = vpack.c.b16 %v2838, %v2832
    %v3025 = vpack.c.b16 %v2845, %v2839
    %v3026 = vpack.c.b16 %v2846, %v2840
    %v3027 = vpack.c.b16 %v2847, %v2841
    %v3028 = vpack.c.b16 %v2848, %v2842
    %v3029 = vpack.c.b16 %v2849, %v2843
    %v3030 = vpack.c.b16 %v2850, %v2844
    %v3031 = vpack.c.b16 %v2857, %v2851
    %v3032 = vpack.c.b16 %v2858, %v2852
    %v3033 = vpack.c.b16 %v2859, %v2853
    %v3034 = vpack.c.b16 %v2860, %v2854
    %v3035 = vpack.c.b16 %v2861, %v2855
    %v3036 = vpack.c.b16 %v2862, %v2856
    %v3037 = vpack.c.b16 %v2869, %v2863
    %v3038 = vpack.c.b16 %v2870, %v2864
    %v3039 = vpack.c.b16 %v2871, %v2865
    %v3040 = vpack.c.b16 %v2872, %v2866
    %v3041 = vpack.c.b16 %v2873, %v2867
    %v3042 = vpack.c.b16 %v2874, %v2868
    %v3043 = vpack.c.b16 %v2881, %v2875
    %v3044 = vpack.c.b16 %v2882, %v2876
    %v3045 = vpack.c.b16 %v2883, %v2877
    %v3046 = vpack.c.b16 %v2884, %v2878
    %v3047 = vpack.c.b16 %v2885, %v2879
    %v3048 = vpack.c.b16 %v2886, %v2880
    %v3049 = vpack.c.b16 %v2893, %v2887
    %v3050 = vpack.c.b16 %v2894, %v2888
    %v3051 = vpack.c.b16 %v2895, %v2889
    %v3052 = vpack.c.b16 %v2896, %v2890
    %v3053 = vpack.c.b16 %v2897, %v2891
    %v3054 = vpack.c.b16 %v2898, %v2892
    %v3055 = vpack.c.b16 %v2905, %v2899
    %v3056 = vpack.c.b16 %v2906, %v2900
    %v3057 = vpack.c.b16 %v2907, %v2901
    %v3058 = vpack.c.b16 %v2908, %v2902
    %v3059 = vpack.c.b16 %v2909, %v2903
    %v3060 = vpack.c.b16 %v2910, %v2904
    %v3061 = vpack.c.b16 %v2917, %v2911
    %v3062 = vpack.c.b16 %v2918, %v2912
    %v3063 = vpack.c.b16 %v2919, %v2913
    %v3064 = vpack.c.b16 %v2920, %v2914
    %v3065 = vpack.c.b16 %v2921, %v2915
    %v3066 = vpack.c.b16 %v2922, %v2916
    %v3067 = vpack.c.b16 %v2929, %v2923
    %v3068 = vpack.c.b16 %v2930, %v2924
    %v3069 = vpack.c.b16 %v2931, %v2925
    %v3070 = vpack.c.b16 %v2932, %v2926
    %v3071 = vpack.c.b16 %v2933, %v2927
    %v3072 = vpack.c.b16 %v2934, %v2928
    %v3073 = vpack.c.b16 %v2941, %v2935
    %v3074 = vpack.c.b16 %v2942, %v2936
    %v3075 = vpack.c.b16 %v2943, %v2937
    %v3076 = vpack.c.b16 %v2944, %v2938
    %v3077 = vpack.c.b16 %v2945, %v2939
    %v3078 = vpack.c.b16 %v2946, %v2940
    %v3079 = vpack.c.b16 %v2953, %v2947
    %v3080 = vpack.c.b16 %v2954, %v2948
    %v3081 = vpack.c.b16 %v2955, %v2949
    %v3082 = vpack.c.b16 %v2956, %v2950
    %v3083 = vpack.c.b16 %v2957, %v2951
    %v3084 = vpack.c.b16 %v2958, %v2952
    %v3085 = vpack.c.b16 %v2965, %v2959
    %v3086 = vpack.c.b16 %v2966, %v2960
    %v3087 = vpack.c.b16 %v2967, %v2961
    %v3088 = vpack.c.b16 %v2968, %v2962
    %v3089 = vpack.c.b16 %v2969, %v2963
    %v3090 = vpack.c.b16 %v2970, %v2964
    %v3091 = vpack.c.b16 %v2977, %v2971
    %v3092 = vpack.c.b16 %v2978, %v2972
    %v3093 = vpack.c.b16 %v2979, %v2973
    %v3094 = vpack.c.b16 %v2980, %v2974
    %v3095 = vpack.c.b16 %v2981, %v2975
    %v3096 = vpack.c.b16 %v2982, %v2976
    %v3097 = vpack.c.b16 %v2989, %v2983
    %v3098 = vpack.c.b16 %v2990, %v2984
    %v3099 = vpack.c.b16 %v2991, %v2985
    %v3100 = vpack.c.b16 %v2992, %v2986
    %v3101 = vpack.c.b16 %v2993, %v2987
    %v3102 = vpack.c.b16 %v2994, %v2988
    %v3103 = vpack.c.b16 %v3001, %v2995
    %v3104 = vpack.c.b16 %v3002, %v2996
    %v3105 = vpack.c.b16 %v3003, %v2997
    %v3106 = vpack.c.b16 %v3004, %v2998
    %v3107 = vpack.c.b16 %v3005, %v2999
    %v3108 = vpack.c.b16 %v3006, %v3000
    %v3109 = vpack.c.b16 %v3013, %v3007
    %v3110 = vpack.c.b16 %v3014, %v3008
    %v3111 = vpack.c.b16 %v3015, %v3009
    %v3112 = vpack.c.b16 %v3016, %v3010
    %v3113 = vpack.c.b16 %v3017, %v3011
    %v3114 = vpack.c.b16 %v3018, %v3012
    %3211 = vmatprep.subr.bf16.mxu0 %v3020
    %3212 = vmatpush1.bf16.msra.mxu0 %v3019
    %3213 = vmatprep.subr.bf16.mxu0 %v3026
    %3214 = vmatpush1.bf16.msra.mxu0 %v3025
    %3215 = vmatprep.subr.bf16.mxu0 %v3032
    %3216 = vmatpush1.bf16.msra.mxu0 %v3031
    %3217 = vmatprep.subr.bf16.mxu0 %v3038
    %3218 = vmatpush1.bf16.msra.mxu0 %v3037
    %3219 = vmatprep.subr.bf16.mxu0 %v3044
    %3220 = vmatpush1.bf16.msra.mxu0 %v3043
    %3221 = vmatprep.subr.bf16.mxu0 %v3050
    %3222 = vmatpush1.bf16.msra.mxu0 %v3049
    %3223 = vmatprep.subr.bf16.mxu0 %v3056
    %3224 = vmatpush1.bf16.msra.mxu0 %v3055
    %3225 = vmatprep.subr.bf16.mxu0 %v3062
    %3226 = vmatpush1.bf16.msra.mxu0 %v3061
    %3227 = vmatprep.subr.bf16.mxu0 %v3068
    %3228 = vmatpush1.bf16.msra.mxu0 %v3067
    %3229 = vmatprep.subr.bf16.mxu0 %v3074
    %3230 = vmatpush1.bf16.msra.mxu0 %v3073
    %3231 = vmatprep.subr.bf16.mxu0 %v3080
    %3232 = vmatpush1.bf16.msra.mxu0 %v3079
    %3233 = vmatprep.subr.bf16.mxu0 %v3086
    %3234 = vmatpush1.bf16.msra.mxu0 %v3085
    %3235 = vmatprep.subr.bf16.mxu0 %v3092
    %3236 = vmatpush1.bf16.msra.mxu0 %v3091
    %3237 = vmatprep.subr.bf16.mxu0 %v3098
    %3238 = vmatpush1.bf16.msra.mxu0 %v3097
    %3239 = vmatprep.subr.bf16.mxu0 %v3104
    %3240 = vmatpush1.bf16.msra.mxu0 %v3103
    %3241 = vmatprep.subr.bf16.mxu0 %v3110
    %3242 = vmatpush1.bf16.msra.mxu0 %v3109
    %3243 = vmatprep.mubr.bf16.mxu0 %v2602
    %3244 = vmatmul.mubr.bf16.gmra.mrb[0].mxu0 %v2601
    %v3245 = vpop.f32.mrb[0].mxu0
    %v3246 = vadd.f32 %v2704, %v3245
    %v3247 = vpop.f32.mrb[0].mxu0
    %v3248 = vadd.f32 %v2708, %v3247
    %v3249 = vpop.f32.mrb[0].mxu0
    %v3250 = vpop.f32.mrb[0].mxu0
    %3251 = vdwg.mxu0
    %3252 = vmatprep.subr.bf16.mxu0 %v3022
    %3253 = vmatpush1.bf16.msra.mxu0 %v3021
    %3254 = vmatprep.subr.bf16.mxu0 %v3028
    %3255 = vmatpush1.bf16.msra.mxu0 %v3027
    %3256 = vmatprep.subr.bf16.mxu0 %v3034
    %3257 = vmatpush1.bf16.msra.mxu0 %v3033
    %3258 = vmatprep.subr.bf16.mxu0 %v3040
    %3259 = vmatpush1.bf16.msra.mxu0 %v3039
    %3260 = vmatprep.subr.bf16.mxu0 %v3046
    %3261 = vmatpush1.bf16.msra.mxu0 %v3045
    %3262 = vmatprep.subr.bf16.mxu0 %v3052
    %3263 = vmatpush1.bf16.msra.mxu0 %v3051
    %3264 = vmatprep.subr.bf16.mxu0 %v3058
    %3265 = vmatpush1.bf16.msra.mxu0 %v3057
    %3266 = vmatprep.subr.bf16.mxu0 %v3064
    %3267 = vmatpush1.bf16.msra.mxu0 %v3063
    %3268 = vmatprep.subr.bf16.mxu0 %v3070
    %3269 = vmatpush1.bf16.msra.mxu0 %v3069
    %3270 = vmatprep.subr.bf16.mxu0 %v3076
    %3271 = vmatpush1.bf16.msra.mxu0 %v3075
    %3272 = vmatprep.subr.bf16.mxu0 %v3082
    %3273 = vmatpush1.bf16.msra.mxu0 %v3081
    %3274 = vmatprep.subr.bf16.mxu0 %v3088
    %3275 = vmatpush1.bf16.msra.mxu0 %v3087
    %3276 = vmatprep.subr.bf16.mxu0 %v3094
    %3277 = vmatpush1.bf16.msra.mxu0 %v3093
    %3278 = vmatprep.subr.bf16.mxu0 %v3100
    %3279 = vmatpush1.bf16.msra.mxu0 %v3099
    %3280 = vmatprep.subr.bf16.mxu0 %v3106
    %3281 = vmatpush1.bf16.msra.mxu0 %v3105
    %3282 = vmatprep.subr.bf16.mxu0 %v3112
    %3283 = vmatpush1.bf16.msra.mxu0 %v3111
    %3284 = vmatprep.mubr.bf16.mxu0 %v2602
    %3285 = vmatmul.mubr.bf16.gmra.mrb[0].mxu0 %v2601
    %v3286 = vpop.f32.mrb[0].mxu0
    %v3287 = vadd.f32 %v2712, %v3286
    %v3288 = vpop.f32.mrb[0].mxu0
    %v3289 = vadd.f32 %v2716, %v3288
    %v3290 = vpop.f32.mrb[0].mxu0
    %v3291 = vpop.f32.mrb[0].mxu0
    %3292 = vdwg.mxu0
    %3293 = vmatprep.subr.bf16.mxu0 %v3024
    %3294 = vmatpush1.bf16.msra.mxu0 %v3023
    %3295 = vmatprep.subr.bf16.mxu0 %v3030
    %3296 = vmatpush1.bf16.msra.mxu0 %v3029
    %3297 = vmatprep.subr.bf16.mxu0 %v3036
    %3298 = vmatpush1.bf16.msra.mxu0 %v3035
    %3299 = vmatprep.subr.bf16.mxu0 %v3042
    %3300 = vmatpush1.bf16.msra.mxu0 %v3041
    %3301 = vmatprep.subr.bf16.mxu0 %v3048
    %3302 = vmatpush1.bf16.msra.mxu0 %v3047
    %3303 = vmatprep.subr.bf16.mxu0 %v3054
    %3304 = vmatpush1.bf16.msra.mxu0 %v3053
    %3305 = vmatprep.subr.bf16.mxu0 %v3060
    %3306 = vmatpush1.bf16.msra.mxu0 %v3059
    %3307 = vmatprep.subr.bf16.mxu0 %v3066
    %3308 = vmatpush1.bf16.msra.mxu0 %v3065
    %3309 = vmatprep.subr.bf16.mxu0 %v3072
    %3310 = vmatpush1.bf16.msra.mxu0 %v3071
    %3311 = vmatprep.subr.bf16.mxu0 %v3078
    %3312 = vmatpush1.bf16.msra.mxu0 %v3077
    %3313 = vmatprep.subr.bf16.mxu0 %v3084
    %3314 = vmatpush1.bf16.msra.mxu0 %v3083
    %3315 = vmatprep.subr.bf16.mxu0 %v3090
    %3316 = vmatpush1.bf16.msra.mxu0 %v3089
    %3317 = vmatprep.subr.bf16.mxu0 %v3096
    %3318 = vmatpush1.bf16.msra.mxu0 %v3095
    %3319 = vmatprep.subr.bf16.mxu0 %v3102
    %3320 = vmatpush1.bf16.msra.mxu0 %v3101
    %3321 = vmatprep.subr.bf16.mxu0 %v3108
    %3322 = vmatpush1.bf16.msra.mxu0 %v3107
    %3323 = vmatprep.subr.bf16.mxu0 %v3114
    %3324 = vmatpush1.bf16.msra.mxu0 %v3113
    %3325 = vmatprep.mubr.bf16.mxu0 %v2602
    %3326 = vmatmul.mubr.bf16.gmra.mrb[0].mxu0 %v2601
    %v3327 = vpop.f32.mrb[0].mxu0
    %v3328 = vadd.f32 %v2720, %v3327
    %v3329 = vpop.f32.mrb[0].mxu0
    %v3330 = vadd.f32 %v2724, %v3329
    %v3331 = vpop.f32.mrb[0].mxu0
    %v3332 = vpop.f32.mrb[0].mxu0
    %3333 = vdwg.mxu0
    %v3334 = vadd.f32 %v2595, %v3246
    %v3335 = vadd.f32 %v2596, %v3248
    %v3336 = vxor.u32 %v3334, 2147483648
    %v3337 = vxor.u32 %v3335, 2147483648
    %v3338 = vmul.f32 %v3336, 1.442695
    %v3339 = vpow.pop %v3338
    %v3340 = vmul.f32 %v3337, 1.442695
    %v3341 = vpow.pop %v3340
    %v3342 = vadd.f32 %v3339, 1.0
    %v3343 = vadd.f32 %v3341, 1.0
    %v3344 = vrcp.pop %v3342
    %v3345 = vmul.f32 1.0, %v3344
    %v3346 = vrcp.pop %v3343
    %v3347 = vmul.f32 1.0, %v3346
    %v3348 = vadd.f32 %v2597, %v3287
    %v3349 = vadd.f32 %v2598, %v3289
    %v3350 = vxor.u32 %v3348, 2147483648
    %v3351 = vxor.u32 %v3349, 2147483648
    %v3352 = vmul.f32 %v3350, 1.442695
    %v3353 = vpow.pop %v3352
    %v3354 = vmul.f32 %v3351, 1.442695
    %v3355 = vpow.pop %v3354
    %v3356 = vadd.f32 %v3353, 1.0
    %v3357 = vadd.f32 %v3355, 1.0
    %v3358 = vrcp.pop %v3356
    %v3359 = vmul.f32 1.0, %v3358
    %v3360 = vrcp.pop %v3357
    %v3361 = vmul.f32 1.0, %v3360
    %v3362 = vmul.f32 %v3345, %v3328
    %v3363 = vmul.f32 %v3347, %v3330
    %v3364 = vadd.f32 %v2599, %v3362
    %v3365 = vadd.f32 %v2600, %v3363
    %v3366 = vtanh.pop %v3364
    %v3367 = vtanh.pop %v3365
    %v3368 = vsub.f32 1.0, %v3359
    %v3369 = vsub.f32 1.0, %v3361
    %v3370 = vmul.f32 %v3368, %v3366
    %v3371 = vmul.f32 %v3369, %v3367
    %v3372 = vmul.f32 %v3359, %v2591
    %v3373 = vmul.f32 %v3361, %v2592
    %v3374 = vadd.f32 %v3370, %v3372
    %v3375 = vadd.f32 %v3371, %v3373
    %3376 = vst [vmem:[#allocation3 + $0x20] sm:$0xff] %v3374
    %3377 = vst [vmem:[#allocation3 + $0x28] sm:$0xff] %v3375
    %v3378 = vld [vmem:[#allocation2 + $0x90] sm:$0xff]
    %v3379 = vld [vmem:[#allocation2 + $0x98] sm:$0xff]
    %v3380 = vld [vmem:[#allocation2 + $0xa0] sm:$0xff]
    %v3381 = vld [vmem:[#allocation2 + $0xa8] sm:$0xff]
    %v3382 = vld [vmem:[#allocation2 + $0xb0] sm:$0xff]
    %v3383 = vld [vmem:[#allocation2 + $0xb8] sm:$0xff]
    %v3384 = vpack.c.bf16 %v3374, %v3374
    %v3385 = vpack.c.bf16 %v3375, %v3375
    %v3386 = vld [vmem:[#allocation10] sm:$0xff]
    %v3387 = vld [vmem:[#allocation10 + $0x8] sm:$0xff]
    %v3388 = vld [vmem:[#allocation10 + $0x10] sm:$0xff]
    %v3389 = vld [vmem:[#allocation10 + $0x18] sm:$0xff]
    %v3390 = vld [vmem:[#allocation10 + $0x20] sm:$0xff]
    %v3391 = vld [vmem:[#allocation10 + $0x28] sm:$0xff]
    %v3392 = vld [vmem:[#allocation10 + $0x30] sm:$0xff]
    %v3393 = vld [vmem:[#allocation10 + $0x38] sm:$0xff]
    %v3394 = vld [vmem:[#allocation10 + $0x40] sm:$0xff]
    %v3395 = vld [vmem:[#allocation10 + $0x48] sm:$0xff]
    %v3396 = vld [vmem:[#allocation10 + $0x50] sm:$0xff]
    %v3397 = vld [vmem:[#allocation10 + $0x58] sm:$0xff]
    %v3398 = vld [vmem:[#allocation10 + $0x60] sm:$0xff]
    %v3399 = vld [vmem:[#allocation10 + $0x68] sm:$0xff]
    %v3400 = vld [vmem:[#allocation10 + $0x70] sm:$0xff]
    %v3401 = vld [vmem:[#allocation10 + $0x78] sm:$0xff]
    %v3402 = vld [vmem:[#allocation10 + $0x80] sm:$0xff]
    %v3403 = vld [vmem:[#allocation10 + $0x88] sm:$0xff]
    %v3404 = vld [vmem:[#allocation10 + $0x90] sm:$0xff]
    %v3405 = vld [vmem:[#allocation10 + $0x98] sm:$0xff]
    %v3406 = vld [vmem:[#allocation10 + $0xa0] sm:$0xff]
    %v3407 = vld [vmem:[#allocation10 + $0xa8] sm:$0xff]
    %v3408 = vld [vmem:[#allocation10 + $0xb0] sm:$0xff]
    %v3409 = vld [vmem:[#allocation10 + $0xb8] sm:$0xff]
    %v3410 = vld [vmem:[#allocation10 + $0xc0] sm:$0xff]
    %v3411 = vld [vmem:[#allocation10 + $0xc8] sm:$0xff]
    %v3412 = vld [vmem:[#allocation10 + $0xd0] sm:$0xff]
    %v3413 = vld [vmem:[#allocation10 + $0xd8] sm:$0xff]
    %v3414 = vld [vmem:[#allocation10 + $0xe0] sm:$0xff]
    %v3415 = vld [vmem:[#allocation10 + $0xe8] sm:$0xff]
    %v3416 = vld [vmem:[#allocation10 + $0xf0] sm:$0xff]
    %v3417 = vld [vmem:[#allocation10 + $0xf8] sm:$0xff]
    %v3418 = vld [vmem:[#allocation10 + $0x100] sm:$0xff]
    %v3419 = vld [vmem:[#allocation10 + $0x108] sm:$0xff]
    %v3420 = vld [vmem:[#allocation10 + $0x110] sm:$0xff]
    %v3421 = vld [vmem:[#allocation10 + $0x118] sm:$0xff]
    %v3422 = vld [vmem:[#allocation10 + $0x120] sm:$0xff]
    %v3423 = vld [vmem:[#allocation10 + $0x128] sm:$0xff]
    %v3424 = vld [vmem:[#allocation10 + $0x130] sm:$0xff]
    %v3425 = vld [vmem:[#allocation10 + $0x138] sm:$0xff]
    %v3426 = vld [vmem:[#allocation10 + $0x140] sm:$0xff]
    %v3427 = vld [vmem:[#allocation10 + $0x148] sm:$0xff]
    %v3428 = vld [vmem:[#allocation10 + $0x150] sm:$0xff]
    %v3429 = vld [vmem:[#allocation10 + $0x158] sm:$0xff]
    %v3430 = vld [vmem:[#allocation10 + $0x160] sm:$0xff]
    %v3431 = vld [vmem:[#allocation10 + $0x168] sm:$0xff]
    %v3432 = vld [vmem:[#allocation10 + $0x170] sm:$0xff]
    %v3433 = vld [vmem:[#allocation10 + $0x178] sm:$0xff]
    %v3434 = vld [vmem:[#allocation10 + $0x180] sm:$0xff]
    %v3435 = vld [vmem:[#allocation10 + $0x188] sm:$0xff]
    %v3436 = vld [vmem:[#allocation10 + $0x190] sm:$0xff]
    %v3437 = vld [vmem:[#allocation10 + $0x198] sm:$0xff]
    %v3438 = vld [vmem:[#allocation10 + $0x1a0] sm:$0xff]
    %v3439 = vld [vmem:[#allocation10 + $0x1a8] sm:$0xff]
    %v3440 = vld [vmem:[#allocation10 + $0x1b0] sm:$0xff]
    %v3441 = vld [vmem:[#allocation10 + $0x1b8] sm:$0xff]
    %v3442 = vld [vmem:[#allocation10 + $0x1c0] sm:$0xff]
    %v3443 = vld [vmem:[#allocation10 + $0x1c8] sm:$0xff]
    %v3444 = vld [vmem:[#allocation10 + $0x1d0] sm:$0xff]
    %v3445 = vld [vmem:[#allocation10 + $0x1d8] sm:$0xff]
    %v3446 = vld [vmem:[#allocation10 + $0x1e0] sm:$0xff]
    %v3447 = vld [vmem:[#allocation10 + $0x1e8] sm:$0xff]
    %v3448 = vld [vmem:[#allocation10 + $0x1f0] sm:$0xff]
    %v3449 = vld [vmem:[#allocation10 + $0x1f8] sm:$0xff]
    %v3450 = vld [vmem:[#allocation10 + $0x200] sm:$0xff]
    %v3451 = vld [vmem:[#allocation10 + $0x208] sm:$0xff]
    %v3452 = vld [vmem:[#allocation10 + $0x210] sm:$0xff]
    %v3453 = vld [vmem:[#allocation10 + $0x218] sm:$0xff]
    %v3454 = vld [vmem:[#allocation10 + $0x220] sm:$0xff]
    %v3455 = vld [vmem:[#allocation10 + $0x228] sm:$0xff]
    %v3456 = vld [vmem:[#allocation10 + $0x230] sm:$0xff]
    %v3457 = vld [vmem:[#allocation10 + $0x238] sm:$0xff]
    %v3458 = vld [vmem:[#allocation10 + $0x240] sm:$0xff]
    %v3459 = vld [vmem:[#allocation10 + $0x248] sm:$0xff]
    %v3460 = vld [vmem:[#allocation10 + $0x250] sm:$0xff]
    %v3461 = vld [vmem:[#allocation10 + $0x258] sm:$0xff]
    %v3462 = vld [vmem:[#allocation10 + $0x260] sm:$0xff]
    %v3463 = vld [vmem:[#allocation10 + $0x268] sm:$0xff]
    %v3464 = vld [vmem:[#allocation10 + $0x270] sm:$0xff]
    %v3465 = vld [vmem:[#allocation10 + $0x278] sm:$0xff]
    %v3466 = vld [vmem:[#allocation10 + $0x280] sm:$0xff]
    %v3467 = vld [vmem:[#allocation10 + $0x288] sm:$0xff]
    %v3468 = vld [vmem:[#allocation10 + $0x290] sm:$0xff]
    %v3469 = vld [vmem:[#allocation10 + $0x298] sm:$0xff]
    %v3470 = vld [vmem:[#allocation10 + $0x2a0] sm:$0xff]
    %v3471 = vld [vmem:[#allocation10 + $0x2a8] sm:$0xff]
    %v3472 = vld [vmem:[#allocation10 + $0x2b0] sm:$0xff]
    %v3473 = vld [vmem:[#allocation10 + $0x2b8] sm:$0xff]
    %v3474 = vld [vmem:[#allocation10 + $0x2c0] sm:$0xff]
    %v3475 = vld [vmem:[#allocation10 + $0x2c8] sm:$0xff]
    %v3476 = vld [vmem:[#allocation10 + $0x2d0] sm:$0xff]
    %v3477 = vld [vmem:[#allocation10 + $0x2d8] sm:$0xff]
    %v3478 = vld [vmem:[#allocation10 + $0x2e0] sm:$0xff]
    %v3479 = vld [vmem:[#allocation10 + $0x2e8] sm:$0xff]
    %v3480 = vld [vmem:[#allocation10 + $0x2f0] sm:$0xff]
    %v3481 = vld [vmem:[#allocation10 + $0x2f8] sm:$0xff]
    %v3482 = vld [vmem:[%s8] sm:$0x3f]
    %v3484 = vlaneseq
    %v3485 = vshrl.u32 %v3484, 7
    %v3486 = vsub.s32 0, %v3485
    %v3487 = vrot.slane %v3482, %v3486
    %v3488 = vlaneseq
    %v3489 = vshrl.u32 %v3488, 7
    %v3490 = vsub.s32 1, %v3489
    %v3491 = vrot.slane %v3482, %v3490
    %v3492 = vlaneseq
    %v3493 = vshrl.u32 %v3492, 7
    %v3494 = vsub.s32 2, %v3493
    %v3495 = vrot.slane %v3482, %v3494
    %v3496 = vlaneseq
    %v3497 = vshrl.u32 %v3496, 7
    %v3498 = vsub.s32 3, %v3497
    %v3499 = vrot.slane %v3482, %v3498
    %v3500 = vlaneseq
    %v3501 = vshrl.u32 %v3500, 7
    %v3502 = vsub.s32 4, %v3501
    %v3503 = vrot.slane %v3482, %v3502
    %v3504 = vlaneseq
    %v3505 = vshrl.u32 %v3504, 7
    %v3506 = vsub.s32 5, %v3505
    %v3507 = vrot.slane %v3482, %v3506
    %v3610 = vunpack.c.l.b16 %v3386
    %v3611 = vunpack.c.h.b16 %v3386
    %v3612 = vunpack.c.l.b16 %v3387
    %v3613 = vunpack.c.h.b16 %v3387
    %v3614 = vunpack.c.l.b16 %v3388
    %v3615 = vunpack.c.h.b16 %v3388
    %v3616 = vunpack.c.l.b16 %v3389
    %v3617 = vunpack.c.h.b16 %v3389
    %v3618 = vunpack.c.l.b16 %v3390
    %v3619 = vunpack.c.h.b16 %v3390
    %v3620 = vunpack.c.l.b16 %v3391
    %v3621 = vunpack.c.h.b16 %v3391
    %v3622 = vunpack.c.l.b16 %v3392
    %v3623 = vunpack.c.h.b16 %v3392
    %v3624 = vunpack.c.l.b16 %v3393
    %v3625 = vunpack.c.h.b16 %v3393
    %v3626 = vunpack.c.l.b16 %v3394
    %v3627 = vunpack.c.h.b16 %v3394
    %v3628 = vunpack.c.l.b16 %v3395
    %v3629 = vunpack.c.h.b16 %v3395
    %v3630 = vunpack.c.l.b16 %v3396
    %v3631 = vunpack.c.h.b16 %v3396
    %v3632 = vunpack.c.l.b16 %v3397
    %v3633 = vunpack.c.h.b16 %v3397
    %v3634 = vunpack.c.l.b16 %v3398
    %v3635 = vunpack.c.h.b16 %v3398
    %v3636 = vunpack.c.l.b16 %v3399
    %v3637 = vunpack.c.h.b16 %v3399
    %v3638 = vunpack.c.l.b16 %v3400
    %v3639 = vunpack.c.h.b16 %v3400
    %v3640 = vunpack.c.l.b16 %v3401
    %v3641 = vunpack.c.h.b16 %v3401
    %v3642 = vunpack.c.l.b16 %v3402
    %v3643 = vunpack.c.h.b16 %v3402
    %v3644 = vunpack.c.l.b16 %v3403
    %v3645 = vunpack.c.h.b16 %v3403
    %v3646 = vunpack.c.l.b16 %v3404
    %v3647 = vunpack.c.h.b16 %v3404
    %v3648 = vunpack.c.l.b16 %v3405
    %v3649 = vunpack.c.h.b16 %v3405
    %v3650 = vunpack.c.l.b16 %v3406
    %v3651 = vunpack.c.h.b16 %v3406
    %v3652 = vunpack.c.l.b16 %v3407
    %v3653 = vunpack.c.h.b16 %v3407
    %v3654 = vunpack.c.l.b16 %v3408
    %v3655 = vunpack.c.h.b16 %v3408
    %v3656 = vunpack.c.l.b16 %v3409
    %v3657 = vunpack.c.h.b16 %v3409
    %v3658 = vunpack.c.l.b16 %v3410
    %v3659 = vunpack.c.h.b16 %v3410
    %v3660 = vunpack.c.l.b16 %v3411
    %v3661 = vunpack.c.h.b16 %v3411
    %v3662 = vunpack.c.l.b16 %v3412
    %v3663 = vunpack.c.h.b16 %v3412
    %v3664 = vunpack.c.l.b16 %v3413
    %v3665 = vunpack.c.h.b16 %v3413
    %v3666 = vunpack.c.l.b16 %v3414
    %v3667 = vunpack.c.h.b16 %v3414
    %v3668 = vunpack.c.l.b16 %v3415
    %v3669 = vunpack.c.h.b16 %v3415
    %v3670 = vunpack.c.l.b16 %v3416
    %v3671 = vunpack.c.h.b16 %v3416
    %v3672 = vunpack.c.l.b16 %v3417
    %v3673 = vunpack.c.h.b16 %v3417
    %v3674 = vunpack.c.l.b16 %v3418
    %v3675 = vunpack.c.h.b16 %v3418
    %v3676 = vunpack.c.l.b16 %v3419
    %v3677 = vunpack.c.h.b16 %v3419
    %v3678 = vunpack.c.l.b16 %v3420
    %v3679 = vunpack.c.h.b16 %v3420
    %v3680 = vunpack.c.l.b16 %v3421
    %v3681 = vunpack.c.h.b16 %v3421
    %v3682 = vunpack.c.l.b16 %v3422
    %v3683 = vunpack.c.h.b16 %v3422
    %v3684 = vunpack.c.l.b16 %v3423
    %v3685 = vunpack.c.h.b16 %v3423
    %v3686 = vunpack.c.l.b16 %v3424
    %v3687 = vunpack.c.h.b16 %v3424
    %v3688 = vunpack.c.l.b16 %v3425
    %v3689 = vunpack.c.h.b16 %v3425
    %v3690 = vunpack.c.l.b16 %v3426
    %v3691 = vunpack.c.h.b16 %v3426
    %v3692 = vunpack.c.l.b16 %v3427
    %v3693 = vunpack.c.h.b16 %v3427
    %v3694 = vunpack.c.l.b16 %v3428
    %v3695 = vunpack.c.h.b16 %v3428
    %v3696 = vunpack.c.l.b16 %v3429
    %v3697 = vunpack.c.h.b16 %v3429
    %v3698 = vunpack.c.l.b16 %v3430
    %v3699 = vunpack.c.h.b16 %v3430
    %v3700 = vunpack.c.l.b16 %v3431
    %v3701 = vunpack.c.h.b16 %v3431
    %v3702 = vunpack.c.l.b16 %v3432
    %v3703 = vunpack.c.h.b16 %v3432
    %v3704 = vunpack.c.l.b16 %v3433
    %v3705 = vunpack.c.h.b16 %v3433
    %v3706 = vunpack.c.l.b16 %v3434
    %v3707 = vunpack.c.h.b16 %v3434
    %v3708 = vunpack.c.l.b16 %v3435
    %v3709 = vunpack.c.h.b16 %v3435
    %v3710 = vunpack.c.l.b16 %v3436
    %v3711 = vunpack.c.h.b16 %v3436
    %v3712 = vunpack.c.l.b16 %v3437
    %v3713 = vunpack.c.h.b16 %v3437
    %v3714 = vunpack.c.l.b16 %v3438
    %v3715 = vunpack.c.h.b16 %v3438
    %v3716 = vunpack.c.l.b16 %v3439
    %v3717 = vunpack.c.h.b16 %v3439
    %v3718 = vunpack.c.l.b16 %v3440
    %v3719 = vunpack.c.h.b16 %v3440
    %v3720 = vunpack.c.l.b16 %v3441
    %v3721 = vunpack.c.h.b16 %v3441
    %v3722 = vunpack.c.l.b16 %v3442
    %v3723 = vunpack.c.h.b16 %v3442
    %v3724 = vunpack.c.l.b16 %v3443
    %v3725 = vunpack.c.h.b16 %v3443
    %v3726 = vunpack.c.l.b16 %v3444
    %v3727 = vunpack.c.h.b16 %v3444
    %v3728 = vunpack.c.l.b16 %v3445
    %v3729 = vunpack.c.h.b16 %v3445
    %v3730 = vunpack.c.l.b16 %v3446
    %v3731 = vunpack.c.h.b16 %v3446
    %v3732 = vunpack.c.l.b16 %v3447
    %v3733 = vunpack.c.h.b16 %v3447
    %v3734 = vunpack.c.l.b16 %v3448
    %v3735 = vunpack.c.h.b16 %v3448
    %v3736 = vunpack.c.l.b16 %v3449
    %v3737 = vunpack.c.h.b16 %v3449
    %v3738 = vunpack.c.l.b16 %v3450
    %v3739 = vunpack.c.h.b16 %v3450
    %v3740 = vunpack.c.l.b16 %v3451
    %v3741 = vunpack.c.h.b16 %v3451
    %v3742 = vunpack.c.l.b16 %v3452
    %v3743 = vunpack.c.h.b16 %v3452
    %v3744 = vunpack.c.l.b16 %v3453
    %v3745 = vunpack.c.h.b16 %v3453
    %v3746 = vunpack.c.l.b16 %v3454
    %v3747 = vunpack.c.h.b16 %v3454
    %v3748 = vunpack.c.l.b16 %v3455
    %v3749 = vunpack.c.h.b16 %v3455
    %v3750 = vunpack.c.l.b16 %v3456
    %v3751 = vunpack.c.h.b16 %v3456
    %v3752 = vunpack.c.l.b16 %v3457
    %v3753 = vunpack.c.h.b16 %v3457
    %v3754 = vunpack.c.l.b16 %v3458
    %v3755 = vunpack.c.h.b16 %v3458
    %v3756 = vunpack.c.l.b16 %v3459
    %v3757 = vunpack.c.h.b16 %v3459
    %v3758 = vunpack.c.l.b16 %v3460
    %v3759 = vunpack.c.h.b16 %v3460
    %v3760 = vunpack.c.l.b16 %v3461
    %v3761 = vunpack.c.h.b16 %v3461
    %v3762 = vunpack.c.l.b16 %v3462
    %v3763 = vunpack.c.h.b16 %v3462
    %v3764 = vunpack.c.l.b16 %v3463
    %v3765 = vunpack.c.h.b16 %v3463
    %v3766 = vunpack.c.l.b16 %v3464
    %v3767 = vunpack.c.h.b16 %v3464
    %v3768 = vunpack.c.l.b16 %v3465
    %v3769 = vunpack.c.h.b16 %v3465
    %v3770 = vunpack.c.l.b16 %v3466
    %v3771 = vunpack.c.h.b16 %v3466
    %v3772 = vunpack.c.l.b16 %v3467
    %v3773 = vunpack.c.h.b16 %v3467
    %v3774 = vunpack.c.l.b16 %v3468
    %v3775 = vunpack.c.h.b16 %v3468
    %v3776 = vunpack.c.l.b16 %v3469
    %v3777 = vunpack.c.h.b16 %v3469
    %v3778 = vunpack.c.l.b16 %v3470
    %v3779 = vunpack.c.h.b16 %v3470
    %v3780 = vunpack.c.l.b16 %v3471
    %v3781 = vunpack.c.h.b16 %v3471
    %v3782 = vunpack.c.l.b16 %v3472
    %v3783 = vunpack.c.h.b16 %v3472
    %v3784 = vunpack.c.l.b16 %v3473
    %v3785 = vunpack.c.h.b16 %v3473
    %v3786 = vunpack.c.l.b16 %v3474
    %v3787 = vunpack.c.h.b16 %v3474
    %v3788 = vunpack.c.l.b16 %v3475
    %v3789 = vunpack.c.h.b16 %v3475
    %v3790 = vunpack.c.l.b16 %v3476
    %v3791 = vunpack.c.h.b16 %v3476
    %v3792 = vunpack.c.l.b16 %v3477
    %v3793 = vunpack.c.h.b16 %v3477
    %v3794 = vunpack.c.l.b16 %v3478
    %v3795 = vunpack.c.h.b16 %v3478
    %v3796 = vunpack.c.l.b16 %v3479
    %v3797 = vunpack.c.h.b16 %v3479
    %v3798 = vunpack.c.l.b16 %v3480
    %v3799 = vunpack.c.h.b16 %v3480
    %v3800 = vunpack.c.l.b16 %v3481
    %v3801 = vunpack.c.h.b16 %v3481
    %v3802 = vpack.c.b16 %v3616, %v3610
    %v3803 = vpack.c.b16 %v3617, %v3611
    %v3804 = vpack.c.b16 %v3618, %v3612
    %v3805 = vpack.c.b16 %v3619, %v3613
    %v3806 = vpack.c.b16 %v3620, %v3614
    %v3807 = vpack.c.b16 %v3621, %v3615
    %v3808 = vpack.c.b16 %v3628, %v3622
    %v3809 = vpack.c.b16 %v3629, %v3623
    %v3810 = vpack.c.b16 %v3630, %v3624
    %v3811 = vpack.c.b16 %v3631, %v3625
    %v3812 = vpack.c.b16 %v3632, %v3626
    %v3813 = vpack.c.b16 %v3633, %v3627
    %v3814 = vpack.c.b16 %v3640, %v3634
    %v3815 = vpack.c.b16 %v3641, %v3635
    %v3816 = vpack.c.b16 %v3642, %v3636
    %v3817 = vpack.c.b16 %v3643, %v3637
    %v3818 = vpack.c.b16 %v3644, %v3638
    %v3819 = vpack.c.b16 %v3645, %v3639
    %v3820 = vpack.c.b16 %v3652, %v3646
    %v3821 = vpack.c.b16 %v3653, %v3647
    %v3822 = vpack.c.b16 %v3654, %v3648
    %v3823 = vpack.c.b16 %v3655, %v3649
    %v3824 = vpack.c.b16 %v3656, %v3650
    %v3825 = vpack.c.b16 %v3657, %v3651
    %v3826 = vpack.c.b16 %v3664, %v3658
    %v3827 = vpack.c.b16 %v3665, %v3659
    %v3828 = vpack.c.b16 %v3666, %v3660
    %v3829 = vpack.c.b16 %v3667, %v3661
    %v3830 = vpack.c.b16 %v3668, %v3662
    %v3831 = vpack.c.b16 %v3669, %v3663
    %v3832 = vpack.c.b16 %v3676, %v3670
    %v3833 = vpack.c.b16 %v3677, %v3671
    %v3834 = vpack.c.b16 %v3678, %v3672
    %v3835 = vpack.c.b16 %v3679, %v3673
    %v3836 = vpack.c.b16 %v3680, %v3674
    %v3837 = vpack.c.b16 %v3681, %v3675
    %v3838 = vpack.c.b16 %v3688, %v3682
    %v3839 = vpack.c.b16 %v3689, %v3683
    %v3840 = vpack.c.b16 %v3690, %v3684
    %v3841 = vpack.c.b16 %v3691, %v3685
    %v3842 = vpack.c.b16 %v3692, %v3686
    %v3843 = vpack.c.b16 %v3693, %v3687
    %v3844 = vpack.c.b16 %v3700, %v3694
    %v3845 = vpack.c.b16 %v3701, %v3695
    %v3846 = vpack.c.b16 %v3702, %v3696
    %v3847 = vpack.c.b16 %v3703, %v3697
    %v3848 = vpack.c.b16 %v3704, %v3698
    %v3849 = vpack.c.b16 %v3705, %v3699
    %v3850 = vpack.c.b16 %v3712, %v3706
    %v3851 = vpack.c.b16 %v3713, %v3707
    %v3852 = vpack.c.b16 %v3714, %v3708
    %v3853 = vpack.c.b16 %v3715, %v3709
    %v3854 = vpack.c.b16 %v3716, %v3710
    %v3855 = vpack.c.b16 %v3717, %v3711
    %v3856 = vpack.c.b16 %v3724, %v3718
    %v3857 = vpack.c.b16 %v3725, %v3719
    %v3858 = vpack.c.b16 %v3726, %v3720
    %v3859 = vpack.c.b16 %v3727, %v3721
    %v3860 = vpack.c.b16 %v3728, %v3722
    %v3861 = vpack.c.b16 %v3729, %v3723
    %v3862 = vpack.c.b16 %v3736, %v3730
    %v3863 = vpack.c.b16 %v3737, %v3731
    %v3864 = vpack.c.b16 %v3738, %v3732
    %v3865 = vpack.c.b16 %v3739, %v3733
    %v3866 = vpack.c.b16 %v3740, %v3734
    %v3867 = vpack.c.b16 %v3741, %v3735
    %v3868 = vpack.c.b16 %v3748, %v3742
    %v3869 = vpack.c.b16 %v3749, %v3743
    %v3870 = vpack.c.b16 %v3750, %v3744
    %v3871 = vpack.c.b16 %v3751, %v3745
    %v3872 = vpack.c.b16 %v3752, %v3746
    %v3873 = vpack.c.b16 %v3753, %v3747
    %v3874 = vpack.c.b16 %v3760, %v3754
    %v3875 = vpack.c.b16 %v3761, %v3755
    %v3876 = vpack.c.b16 %v3762, %v3756
    %v3877 = vpack.c.b16 %v3763, %v3757
    %v3878 = vpack.c.b16 %v3764, %v3758
    %v3879 = vpack.c.b16 %v3765, %v3759
    %v3880 = vpack.c.b16 %v3772, %v3766
    %v3881 = vpack.c.b16 %v3773, %v3767
    %v3882 = vpack.c.b16 %v3774, %v3768
    %v3883 = vpack.c.b16 %v3775, %v3769
    %v3884 = vpack.c.b16 %v3776, %v3770
    %v3885 = vpack.c.b16 %v3777, %v3771
    %v3886 = vpack.c.b16 %v3784, %v3778
    %v3887 = vpack.c.b16 %v3785, %v3779
    %v3888 = vpack.c.b16 %v3786, %v3780
    %v3889 = vpack.c.b16 %v3787, %v3781
    %v3890 = vpack.c.b16 %v3788, %v3782
    %v3891 = vpack.c.b16 %v3789, %v3783
    %v3892 = vpack.c.b16 %v3796, %v3790
    %v3893 = vpack.c.b16 %v3797, %v3791
    %v3894 = vpack.c.b16 %v3798, %v3792
    %v3895 = vpack.c.b16 %v3799, %v3793
    %v3896 = vpack.c.b16 %v3800, %v3794
    %v3897 = vpack.c.b16 %v3801, %v3795
    %3994 = vmatprep.subr.bf16.mxu0 %v3803
    %3995 = vmatpush1.bf16.msra.mxu0 %v3802
    %3996 = vmatprep.subr.bf16.mxu0 %v3809
    %3997 = vmatpush1.bf16.msra.mxu0 %v3808
    %3998 = vmatprep.subr.bf16.mxu0 %v3815
    %3999 = vmatpush1.bf16.msra.mxu0 %v3814
    %4000 = vmatprep.subr.bf16.mxu0 %v3821
    %4001 = vmatpush1.bf16.msra.mxu0 %v3820
    %4002 = vmatprep.subr.bf16.mxu0 %v3827
    %4003 = vmatpush1.bf16.msra.mxu0 %v3826
    %4004 = vmatprep.subr.bf16.mxu0 %v3833
    %4005 = vmatpush1.bf16.msra.mxu0 %v3832
    %4006 = vmatprep.subr.bf16.mxu0 %v3839
    %4007 = vmatpush1.bf16.msra.mxu0 %v3838
    %4008 = vmatprep.subr.bf16.mxu0 %v3845
    %4009 = vmatpush1.bf16.msra.mxu0 %v3844
    %4010 = vmatprep.subr.bf16.mxu0 %v3851
    %4011 = vmatpush1.bf16.msra.mxu0 %v3850
    %4012 = vmatprep.subr.bf16.mxu0 %v3857
    %4013 = vmatpush1.bf16.msra.mxu0 %v3856
    %4014 = vmatprep.subr.bf16.mxu0 %v3863
    %4015 = vmatpush1.bf16.msra.mxu0 %v3862
    %4016 = vmatprep.subr.bf16.mxu0 %v3869
    %4017 = vmatpush1.bf16.msra.mxu0 %v3868
    %4018 = vmatprep.subr.bf16.mxu0 %v3875
    %4019 = vmatpush1.bf16.msra.mxu0 %v3874
    %4020 = vmatprep.subr.bf16.mxu0 %v3881
    %4021 = vmatpush1.bf16.msra.mxu0 %v3880
    %4022 = vmatprep.subr.bf16.mxu0 %v3887
    %4023 = vmatpush1.bf16.msra.mxu0 %v3886
    %4024 = vmatprep.subr.bf16.mxu0 %v3893
    %4025 = vmatpush1.bf16.msra.mxu0 %v3892
    %4026 = vmatprep.mubr.bf16.mxu0 %v3385
    %4027 = vmatmul.mubr.bf16.gmra.mrb[0].mxu0 %v3384
    %v4028 = vpop.f32.mrb[0].mxu0
    %v4029 = vadd.f32 %v3487, %v4028
    %v4030 = vpop.f32.mrb[0].mxu0
    %v4031 = vadd.f32 %v3491, %v4030
    %v4032 = vpop.f32.mrb[0].mxu0
    %v4033 = vpop.f32.mrb[0].mxu0
    %4034 = vdwg.mxu0
    %4035 = vmatprep.subr.bf16.mxu0 %v3805
    %4036 = vmatpush1.bf16.msra.mxu0 %v3804
    %4037 = vmatprep.subr.bf16.mxu0 %v3811
    %4038 = vmatpush1.bf16.msra.mxu0 %v3810
    %4039 = vmatprep.subr.bf16.mxu0 %v3817
    %4040 = vmatpush1.bf16.msra.mxu0 %v3816
    %4041 = vmatprep.subr.bf16.mxu0 %v3823
    %4042 = vmatpush1.bf16.msra.mxu0 %v3822
    %4043 = vmatprep.subr.bf16.mxu0 %v3829
    %4044 = vmatpush1.bf16.msra.mxu0 %v3828
    %4045 = vmatprep.subr.bf16.mxu0 %v3835
    %4046 = vmatpush1.bf16.msra.mxu0 %v3834
    %4047 = vmatprep.subr.bf16.mxu0 %v3841
    %4048 = vmatpush1.bf16.msra.mxu0 %v3840
    %4049 = vmatprep.subr.bf16.mxu0 %v3847
    %4050 = vmatpush1.bf16.msra.mxu0 %v3846
    %4051 = vmatprep.subr.bf16.mxu0 %v3853
    %4052 = vmatpush1.bf16.msra.mxu0 %v3852
    %4053 = vmatprep.subr.bf16.mxu0 %v3859
    %4054 = vmatpush1.bf16.msra.mxu0 %v3858
    %4055 = vmatprep.subr.bf16.mxu0 %v3865
    %4056 = vmatpush1.bf16.msra.mxu0 %v3864
    %4057 = vmatprep.subr.bf16.mxu0 %v3871
    %4058 = vmatpush1.bf16.msra.mxu0 %v3870
    %4059 = vmatprep.subr.bf16.mxu0 %v3877
    %4060 = vmatpush1.bf16.msra.mxu0 %v3876
    %4061 = vmatprep.subr.bf16.mxu0 %v3883
    %4062 = vmatpush1.bf16.msra.mxu0 %v3882
    %4063 = vmatprep.subr.bf16.mxu0 %v3889
    %4064 = vmatpush1.bf16.msra.mxu0 %v3888
    %4065 = vmatprep.subr.bf16.mxu0 %v3895
    %4066 = vmatpush1.bf16.msra.mxu0 %v3894
    %4067 = vmatprep.mubr.bf16.mxu0 %v3385
    %4068 = vmatmul.mubr.bf16.gmra.mrb[0].mxu0 %v3384
    %v4069 = vpop.f32.mrb[0].mxu0
    %v4070 = vadd.f32 %v3495, %v4069
    %v4071 = vpop.f32.mrb[0].mxu0
    %v4072 = vadd.f32 %v3499, %v4071
    %v4073 = vpop.f32.mrb[0].mxu0
    %v4074 = vpop.f32.mrb[0].mxu0
    %4075 = vdwg.mxu0
    %4076 = vmatprep.subr.bf16.mxu0 %v3807
    %4077 = vmatpush1.bf16.msra.mxu0 %v3806
    %4078 = vmatprep.subr.bf16.mxu0 %v3813
    %4079 = vmatpush1.bf16.msra.mxu0 %v3812
    %4080 = vmatprep.subr.bf16.mxu0 %v3819
    %4081 = vmatpush1.bf16.msra.mxu0 %v3818
    %4082 = vmatprep.subr.bf16.mxu0 %v3825
    %4083 = vmatpush1.bf16.msra.mxu0 %v3824
    %4084 = vmatprep.subr.bf16.mxu0 %v3831
    %4085 = vmatpush1.bf16.msra.mxu0 %v3830
    %4086 = vmatprep.subr.bf16.mxu0 %v3837
    %4087 = vmatpush1.bf16.msra.mxu0 %v3836
    %4088 = vmatprep.subr.bf16.mxu0 %v3843
    %4089 = vmatpush1.bf16.msra.mxu0 %v3842
    %4090 = vmatprep.subr.bf16.mxu0 %v3849
    %4091 = vmatpush1.bf16.msra.mxu0 %v3848
    %4092 = vmatprep.subr.bf16.mxu0 %v3855
    %4093 = vmatpush1.bf16.msra.mxu0 %v3854
    %4094 = vmatprep.subr.bf16.mxu0 %v3861
    %4095 = vmatpush1.bf16.msra.mxu0 %v3860
    %4096 = vmatprep.subr.bf16.mxu0 %v3867
    %4097 = vmatpush1.bf16.msra.mxu0 %v3866
    %4098 = vmatprep.subr.bf16.mxu0 %v3873
    %4099 = vmatpush1.bf16.msra.mxu0 %v3872
    %4100 = vmatprep.subr.bf16.mxu0 %v3879
    %4101 = vmatpush1.bf16.msra.mxu0 %v3878
    %4102 = vmatprep.subr.bf16.mxu0 %v3885
    %4103 = vmatpush1.bf16.msra.mxu0 %v3884
    %4104 = vmatprep.subr.bf16.mxu0 %v3891
    %4105 = vmatpush1.bf16.msra.mxu0 %v3890
    %4106 = vmatprep.subr.bf16.mxu0 %v3897
    %4107 = vmatpush1.bf16.msra.mxu0 %v3896
    %4108 = vmatprep.mubr.bf16.mxu0 %v3385
    %4109 = vmatmul.mubr.bf16.gmra.mrb[0].mxu0 %v3384
    %v4110 = vpop.f32.mrb[0].mxu0
    %v4111 = vadd.f32 %v3503, %v4110
    %v4112 = vpop.f32.mrb[0].mxu0
    %v4113 = vadd.f32 %v3507, %v4112
    %v4114 = vpop.f32.mrb[0].mxu0
    %v4115 = vpop.f32.mrb[0].mxu0
    %4116 = vdwg.mxu0
    %v4117 = vadd.f32 %v3378, %v4029
    %v4118 = vadd.f32 %v3379, %v4031
    %v4119 = vxor.u32 %v4117, 2147483648
    %v4120 = vxor.u32 %v4118, 2147483648
    %v4121 = vmul.f32 %v4119, 1.442695
    %v4122 = vpow.pop %v4121
    %v4123 = vmul.f32 %v4120, 1.442695
    %v4124 = vpow.pop %v4123
    %v4125 = vadd.f32 %v4122, 1.0
    %v4126 = vadd.f32 %v4124, 1.0
    %v4127 = vrcp.pop %v4125
    %v4128 = vmul.f32 1.0, %v4127
    %v4129 = vrcp.pop %v4126
    %v4130 = vmul.f32 1.0, %v4129
    %v4131 = vadd.f32 %v3380, %v4070
    %v4132 = vadd.f32 %v3381, %v4072
    %v4133 = vxor.u32 %v4131, 2147483648
    %v4134 = vxor.u32 %v4132, 2147483648
    %v4135 = vmul.f32 %v4133, 1.442695
    %v4136 = vpow.pop %v4135
    %v4137 = vmul.f32 %v4134, 1.442695
    %v4138 = vpow.pop %v4137
    %v4139 = vadd.f32 %v4136, 1.0
    %v4140 = vadd.f32 %v4138, 1.0
    %v4141 = vrcp.pop %v4139
    %v4142 = vmul.f32 1.0, %v4141
    %v4143 = vrcp.pop %v4140
    %v4144 = vmul.f32 1.0, %v4143
    %v4145 = vmul.f32 %v4128, %v4111
    %v4146 = vmul.f32 %v4130, %v4113
    %v4147 = vadd.f32 %v3382, %v4145
    %v4148 = vadd.f32 %v3383, %v4146
    %v4149 = vtanh.pop %v4147
    %v4150 = vtanh.pop %v4148
    %v4151 = vsub.f32 1.0, %v4142
    %v4152 = vsub.f32 1.0, %v4144
    %v4153 = vmul.f32 %v4151, %v4149
    %v4154 = vmul.f32 %v4152, %v4150
    %v4155 = vmul.f32 %v4142, %v3374
    %v4156 = vmul.f32 %v4144, %v3375
    %v4157 = vadd.f32 %v4153, %v4155
    %v4158 = vadd.f32 %v4154, %v4156
    %4159 = vst [vmem:[#allocation3 + $0x30] sm:$0xff] %v4157
    %4160 = vst [vmem:[#allocation3 + $0x38] sm:$0xff] %v4158
    %v4161 = vld [vmem:[#allocation2 + $0xc0] sm:$0xff]
    %v4162 = vld [vmem:[#allocation2 + $0xc8] sm:$0xff]
    %v4163 = vld [vmem:[#allocation2 + $0xd0] sm:$0xff]
    %v4164 = vld [vmem:[#allocation2 + $0xd8] sm:$0xff]
    %v4165 = vld [vmem:[#allocation2 + $0xe0] sm:$0xff]
    %v4166 = vld [vmem:[#allocation2 + $0xe8] sm:$0xff]
    %v4167 = vpack.c.bf16 %v4157, %v4157
    %v4168 = vpack.c.bf16 %v4158, %v4158
    %v4169 = vld [vmem:[#allocation10] sm:$0xff]
    %v4170 = vld [vmem:[#allocation10 + $0x8] sm:$0xff]
    %v4171 = vld [vmem:[#allocation10 + $0x10] sm:$0xff]
    %v4172 = vld [vmem:[#allocation10 + $0x18] sm:$0xff]
    %v4173 = vld [vmem:[#allocation10 + $0x20] sm:$0xff]
    %v4174 = vld [vmem:[#allocation10 + $0x28] sm:$0xff]
    %v4175 = vld [vmem:[#allocation10 + $0x30] sm:$0xff]
    %v4176 = vld [vmem:[#allocation10 + $0x38] sm:$0xff]
    %v4177 = vld [vmem:[#allocation10 + $0x40] sm:$0xff]
    %v4178 = vld [vmem:[#allocation10 + $0x48] sm:$0xff]
    %v4179 = vld [vmem:[#allocation10 + $0x50] sm:$0xff]
    %v4180 = vld [vmem:[#allocation10 + $0x58] sm:$0xff]
    %v4181 = vld [vmem:[#allocation10 + $0x60] sm:$0xff]
    %v4182 = vld [vmem:[#allocation10 + $0x68] sm:$0xff]
    %v4183 = vld [vmem:[#allocation10 + $0x70] sm:$0xff]
    %v4184 = vld [vmem:[#allocation10 + $0x78] sm:$0xff]
    %v4185 = vld [vmem:[#allocation10 + $0x80] sm:$0xff]
    %v4186 = vld [vmem:[#allocation10 + $0x88] sm:$0xff]
    %v4187 = vld [vmem:[#allocation10 + $0x90] sm:$0xff]
    %v4188 = vld [vmem:[#allocation10 + $0x98] sm:$0xff]
    %v4189 = vld [vmem:[#allocation10 + $0xa0] sm:$0xff]
    %v4190 = vld [vmem:[#allocation10 + $0xa8] sm:$0xff]
    %v4191 = vld [vmem:[#allocation10 + $0xb0] sm:$0xff]
    %v4192 = vld [vmem:[#allocation10 + $0xb8] sm:$0xff]
    %v4193 = vld [vmem:[#allocation10 + $0xc0] sm:$0xff]
    %v4194 = vld [vmem:[#allocation10 + $0xc8] sm:$0xff]
    %v4195 = vld [vmem:[#allocation10 + $0xd0] sm:$0xff]
    %v4196 = vld [vmem:[#allocation10 + $0xd8] sm:$0xff]
    %v4197 = vld [vmem:[#allocation10 + $0xe0] sm:$0xff]
    %v4198 = vld [vmem:[#allocation10 + $0xe8] sm:$0xff]
    %v4199 = vld [vmem:[#allocation10 + $0xf0] sm:$0xff]
    %v4200 = vld [vmem:[#allocation10 + $0xf8] sm:$0xff]
    %v4201 = vld [vmem:[#allocation10 + $0x100] sm:$0xff]
    %v4202 = vld [vmem:[#allocation10 + $0x108] sm:$0xff]
    %v4203 = vld [vmem:[#allocation10 + $0x110] sm:$0xff]
    %v4204 = vld [vmem:[#allocation10 + $0x118] sm:$0xff]
    %v4205 = vld [vmem:[#allocation10 + $0x120] sm:$0xff]
    %v4206 = vld [vmem:[#allocation10 + $0x128] sm:$0xff]
    %v4207 = vld [vmem:[#allocation10 + $0x130] sm:$0xff]
    %v4208 = vld [vmem:[#allocation10 + $0x138] sm:$0xff]
    %v4209 = vld [vmem:[#allocation10 + $0x140] sm:$0xff]
    %v4210 = vld [vmem:[#allocation10 + $0x148] sm:$0xff]
    %v4211 = vld [vmem:[#allocation10 + $0x150] sm:$0xff]
    %v4212 = vld [vmem:[#allocation10 + $0x158] sm:$0xff]
    %v4213 = vld [vmem:[#allocation10 + $0x160] sm:$0xff]
    %v4214 = vld [vmem:[#allocation10 + $0x168] sm:$0xff]
    %v4215 = vld [vmem:[#allocation10 + $0x170] sm:$0xff]
    %v4216 = vld [vmem:[#allocation10 + $0x178] sm:$0xff]
    %v4217 = vld [vmem:[#allocation10 + $0x180] sm:$0xff]
    %v4218 = vld [vmem:[#allocation10 + $0x188] sm:$0xff]
    %v4219 = vld [vmem:[#allocation10 + $0x190] sm:$0xff]
    %v4220 = vld [vmem:[#allocation10 + $0x198] sm:$0xff]
    %v4221 = vld [vmem:[#allocation10 + $0x1a0] sm:$0xff]
    %v4222 = vld [vmem:[#allocation10 + $0x1a8] sm:$0xff]
    %v4223 = vld [vmem:[#allocation10 + $0x1b0] sm:$0xff]
    %v4224 = vld [vmem:[#allocation10 + $0x1b8] sm:$0xff]
    %v4225 = vld [vmem:[#allocation10 + $0x1c0] sm:$0xff]
    %v4226 = vld [vmem:[#allocation10 + $0x1c8] sm:$0xff]
    %v4227 = vld [vmem:[#allocation10 + $0x1d0] sm:$0xff]
    %v4228 = vld [vmem:[#allocation10 + $0x1d8] sm:$0xff]
    %v4229 = vld [vmem:[#allocation10 + $0x1e0] sm:$0xff]
    %v4230 = vld [vmem:[#allocation10 + $0x1e8] sm:$0xff]
    %v4231 = vld [vmem:[#allocation10 + $0x1f0] sm:$0xff]
    %v4232 = vld [vmem:[#allocation10 + $0x1f8] sm:$0xff]
    %v4233 = vld [vmem:[#allocation10 + $0x200] sm:$0xff]
    %v4234 = vld [vmem:[#allocation10 + $0x208] sm:$0xff]
    %v4235 = vld [vmem:[#allocation10 + $0x210] sm:$0xff]
    %v4236 = vld [vmem:[#allocation10 + $0x218] sm:$0xff]
    %v4237 = vld [vmem:[#allocation10 + $0x220] sm:$0xff]
    %v4238 = vld [vmem:[#allocation10 + $0x228] sm:$0xff]
    %v4239 = vld [vmem:[#allocation10 + $0x230] sm:$0xff]
    %v4240 = vld [vmem:[#allocation10 + $0x238] sm:$0xff]
    %v4241 = vld [vmem:[#allocation10 + $0x240] sm:$0xff]
    %v4242 = vld [vmem:[#allocation10 + $0x248] sm:$0xff]
    %v4243 = vld [vmem:[#allocation10 + $0x250] sm:$0xff]
    %v4244 = vld [vmem:[#allocation10 + $0x258] sm:$0xff]
    %v4245 = vld [vmem:[#allocation10 + $0x260] sm:$0xff]
    %v4246 = vld [vmem:[#allocation10 + $0x268] sm:$0xff]
    %v4247 = vld [vmem:[#allocation10 + $0x270] sm:$0xff]
    %v4248 = vld [vmem:[#allocation10 + $0x278] sm:$0xff]
    %v4249 = vld [vmem:[#allocation10 + $0x280] sm:$0xff]
    %v4250 = vld [vmem:[#allocation10 + $0x288] sm:$0xff]
    %v4251 = vld [vmem:[#allocation10 + $0x290] sm:$0xff]
    %v4252 = vld [vmem:[#allocation10 + $0x298] sm:$0xff]
    %v4253 = vld [vmem:[#allocation10 + $0x2a0] sm:$0xff]
    %v4254 = vld [vmem:[#allocation10 + $0x2a8] sm:$0xff]
    %v4255 = vld [vmem:[#allocation10 + $0x2b0] sm:$0xff]
    %v4256 = vld [vmem:[#allocation10 + $0x2b8] sm:$0xff]
    %v4257 = vld [vmem:[#allocation10 + $0x2c0] sm:$0xff]
    %v4258 = vld [vmem:[#allocation10 + $0x2c8] sm:$0xff]
    %v4259 = vld [vmem:[#allocation10 + $0x2d0] sm:$0xff]
    %v4260 = vld [vmem:[#allocation10 + $0x2d8] sm:$0xff]
    %v4261 = vld [vmem:[#allocation10 + $0x2e0] sm:$0xff]
    %v4262 = vld [vmem:[#allocation10 + $0x2e8] sm:$0xff]
    %v4263 = vld [vmem:[#allocation10 + $0x2f0] sm:$0xff]
    %v4264 = vld [vmem:[#allocation10 + $0x2f8] sm:$0xff]
    %v4265 = vld [vmem:[%s8] sm:$0x3f]
    %v4267 = vlaneseq
    %v4268 = vshrl.u32 %v4267, 7
    %v4269 = vsub.s32 0, %v4268
    %v4270 = vrot.slane %v4265, %v4269
    %v4271 = vlaneseq
    %v4272 = vshrl.u32 %v4271, 7
    %v4273 = vsub.s32 1, %v4272
    %v4274 = vrot.slane %v4265, %v4273
    %v4275 = vlaneseq
    %v4276 = vshrl.u32 %v4275, 7
    %v4277 = vsub.s32 2, %v4276
    %v4278 = vrot.slane %v4265, %v4277
    %v4279 = vlaneseq
    %v4280 = vshrl.u32 %v4279, 7
    %v4281 = vsub.s32 3, %v4280
    %v4282 = vrot.slane %v4265, %v4281
    %v4283 = vlaneseq
    %v4284 = vshrl.u32 %v4283, 7
    %v4285 = vsub.s32 4, %v4284
    %v4286 = vrot.slane %v4265, %v4285
    %v4287 = vlaneseq
    %v4288 = vshrl.u32 %v4287, 7
    %v4289 = vsub.s32 5, %v4288
    %v4290 = vrot.slane %v4265, %v4289
    %v4393 = vunpack.c.l.b16 %v4169
    %v4394 = vunpack.c.h.b16 %v4169
    %v4395 = vunpack.c.l.b16 %v4170
    %v4396 = vunpack.c.h.b16 %v4170
    %v4397 = vunpack.c.l.b16 %v4171
    %v4398 = vunpack.c.h.b16 %v4171
    %v4399 = vunpack.c.l.b16 %v4172
    %v4400 = vunpack.c.h.b16 %v4172
    %v4401 = vunpack.c.l.b16 %v4173
    %v4402 = vunpack.c.h.b16 %v4173
    %v4403 = vunpack.c.l.b16 %v4174
    %v4404 = vunpack.c.h.b16 %v4174
    %v4405 = vunpack.c.l.b16 %v4175
    %v4406 = vunpack.c.h.b16 %v4175
    %v4407 = vunpack.c.l.b16 %v4176
    %v4408 = vunpack.c.h.b16 %v4176
    %v4409 = vunpack.c.l.b16 %v4177
    %v4410 = vunpack.c.h.b16 %v4177
    %v4411 = vunpack.c.l.b16 %v4178
    %v4412 = vunpack.c.h.b16 %v4178
    %v4413 = vunpack.c.l.b16 %v4179
    %v4414 = vunpack.c.h.b16 %v4179
    %v4415 = vunpack.c.l.b16 %v4180
    %v4416 = vunpack.c.h.b16 %v4180
    %v4417 = vunpack.c.l.b16 %v4181
    %v4418 = vunpack.c.h.b16 %v4181
    %v4419 = vunpack.c.l.b16 %v4182
    %v4420 = vunpack.c.h.b16 %v4182
    %v4421 = vunpack.c.l.b16 %v4183
    %v4422 = vunpack.c.h.b16 %v4183
    %v4423 = vunpack.c.l.b16 %v4184
    %v4424 = vunpack.c.h.b16 %v4184
    %v4425 = vunpack.c.l.b16 %v4185
    %v4426 = vunpack.c.h.b16 %v4185
    %v4427 = vunpack.c.l.b16 %v4186
    %v4428 = vunpack.c.h.b16 %v4186
    %v4429 = vunpack.c.l.b16 %v4187
    %v4430 = vunpack.c.h.b16 %v4187
    %v4431 = vunpack.c.l.b16 %v4188
    %v4432 = vunpack.c.h.b16 %v4188
    %v4433 = vunpack.c.l.b16 %v4189
    %v4434 = vunpack.c.h.b16 %v4189
    %v4435 = vunpack.c.l.b16 %v4190
    %v4436 = vunpack.c.h.b16 %v4190
    %v4437 = vunpack.c.l.b16 %v4191
    %v4438 = vunpack.c.h.b16 %v4191
    %v4439 = vunpack.c.l.b16 %v4192
    %v4440 = vunpack.c.h.b16 %v4192
    %v4441 = vunpack.c.l.b16 %v4193
    %v4442 = vunpack.c.h.b16 %v4193
    %v4443 = vunpack.c.l.b16 %v4194
    %v4444 = vunpack.c.h.b16 %v4194
    %v4445 = vunpack.c.l.b16 %v4195
    %v4446 = vunpack.c.h.b16 %v4195
    %v4447 = vunpack.c.l.b16 %v4196
    %v4448 = vunpack.c.h.b16 %v4196
    %v4449 = vunpack.c.l.b16 %v4197
    %v4450 = vunpack.c.h.b16 %v4197
    %v4451 = vunpack.c.l.b16 %v4198
    %v4452 = vunpack.c.h.b16 %v4198
    %v4453 = vunpack.c.l.b16 %v4199
    %v4454 = vunpack.c.h.b16 %v4199
    %v4455 = vunpack.c.l.b16 %v4200
    %v4456 = vunpack.c.h.b16 %v4200
    %v4457 = vunpack.c.l.b16 %v4201
    %v4458 = vunpack.c.h.b16 %v4201
    %v4459 = vunpack.c.l.b16 %v4202
    %v4460 = vunpack.c.h.b16 %v4202
    %v4461 = vunpack.c.l.b16 %v4203
    %v4462 = vunpack.c.h.b16 %v4203
    %v4463 = vunpack.c.l.b16 %v4204
    %v4464 = vunpack.c.h.b16 %v4204
    %v4465 = vunpack.c.l.b16 %v4205
    %v4466 = vunpack.c.h.b16 %v4205
    %v4467 = vunpack.c.l.b16 %v4206
    %v4468 = vunpack.c.h.b16 %v4206
    %v4469 = vunpack.c.l.b16 %v4207
    %v4470 = vunpack.c.h.b16 %v4207
    %v4471 = vunpack.c.l.b16 %v4208
    %v4472 = vunpack.c.h.b16 %v4208
    %v4473 = vunpack.c.l.b16 %v4209
    %v4474 = vunpack.c.h.b16 %v4209
    %v4475 = vunpack.c.l.b16 %v4210
    %v4476 = vunpack.c.h.b16 %v4210
    %v4477 = vunpack.c.l.b16 %v4211
    %v4478 = vunpack.c.h.b16 %v4211
    %v4479 = vunpack.c.l.b16 %v4212
    %v4480 = vunpack.c.h.b16 %v4212
    %v4481 = vunpack.c.l.b16 %v4213
    %v4482 = vunpack.c.h.b16 %v4213
    %v4483 = vunpack.c.l.b16 %v4214
    %v4484 = vunpack.c.h.b16 %v4214
    %v4485 = vunpack.c.l.b16 %v4215
    %v4486 = vunpack.c.h.b16 %v4215
    %v4487 = vunpack.c.l.b16 %v4216
    %v4488 = vunpack.c.h.b16 %v4216
    %v4489 = vunpack.c.l.b16 %v4217
    %v4490 = vunpack.c.h.b16 %v4217
    %v4491 = vunpack.c.l.b16 %v4218
    %v4492 = vunpack.c.h.b16 %v4218
    %v4493 = vunpack.c.l.b16 %v4219
    %v4494 = vunpack.c.h.b16 %v4219
    %v4495 = vunpack.c.l.b16 %v4220
    %v4496 = vunpack.c.h.b16 %v4220
    %v4497 = vunpack.c.l.b16 %v4221
    %v4498 = vunpack.c.h.b16 %v4221
    %v4499 = vunpack.c.l.b16 %v4222
    %v4500 = vunpack.c.h.b16 %v4222
    %v4501 = vunpack.c.l.b16 %v4223
    %v4502 = vunpack.c.h.b16 %v4223
    %v4503 = vunpack.c.l.b16 %v4224
    %v4504 = vunpack.c.h.b16 %v4224
    %v4505 = vunpack.c.l.b16 %v4225
    %v4506 = vunpack.c.h.b16 %v4225
    %v4507 = vunpack.c.l.b16 %v4226
    %v4508 = vunpack.c.h.b16 %v4226
    %v4509 = vunpack.c.l.b16 %v4227
    %v4510 = vunpack.c.h.b16 %v4227
    %v4511 = vunpack.c.l.b16 %v4228
    %v4512 = vunpack.c.h.b16 %v4228
    %v4513 = vunpack.c.l.b16 %v4229
    %v4514 = vunpack.c.h.b16 %v4229
    %v4515 = vunpack.c.l.b16 %v4230
    %v4516 = vunpack.c.h.b16 %v4230
    %v4517 = vunpack.c.l.b16 %v4231
    %v4518 = vunpack.c.h.b16 %v4231
    %v4519 = vunpack.c.l.b16 %v4232
    %v4520 = vunpack.c.h.b16 %v4232
    %v4521 = vunpack.c.l.b16 %v4233
    %v4522 = vunpack.c.h.b16 %v4233
    %v4523 = vunpack.c.l.b16 %v4234
    %v4524 = vunpack.c.h.b16 %v4234
    %v4525 = vunpack.c.l.b16 %v4235
    %v4526 = vunpack.c.h.b16 %v4235
    %v4527 = vunpack.c.l.b16 %v4236
    %v4528 = vunpack.c.h.b16 %v4236
    %v4529 = vunpack.c.l.b16 %v4237
    %v4530 = vunpack.c.h.b16 %v4237
    %v4531 = vunpack.c.l.b16 %v4238
    %v4532 = vunpack.c.h.b16 %v4238
    %v4533 = vunpack.c.l.b16 %v4239
    %v4534 = vunpack.c.h.b16 %v4239
    %v4535 = vunpack.c.l.b16 %v4240
    %v4536 = vunpack.c.h.b16 %v4240
    %v4537 = vunpack.c.l.b16 %v4241
    %v4538 = vunpack.c.h.b16 %v4241
    %v4539 = vunpack.c.l.b16 %v4242
    %v4540 = vunpack.c.h.b16 %v4242
    %v4541 = vunpack.c.l.b16 %v4243
    %v4542 = vunpack.c.h.b16 %v4243
    %v4543 = vunpack.c.l.b16 %v4244
    %v4544 = vunpack.c.h.b16 %v4244
    %v4545 = vunpack.c.l.b16 %v4245
    %v4546 = vunpack.c.h.b16 %v4245
    %v4547 = vunpack.c.l.b16 %v4246
    %v4548 = vunpack.c.h.b16 %v4246
    %v4549 = vunpack.c.l.b16 %v4247
    %v4550 = vunpack.c.h.b16 %v4247
    %v4551 = vunpack.c.l.b16 %v4248
    %v4552 = vunpack.c.h.b16 %v4248
    %v4553 = vunpack.c.l.b16 %v4249
    %v4554 = vunpack.c.h.b16 %v4249
    %v4555 = vunpack.c.l.b16 %v4250
    %v4556 = vunpack.c.h.b16 %v4250
    %v4557 = vunpack.c.l.b16 %v4251
    %v4558 = vunpack.c.h.b16 %v4251
    %v4559 = vunpack.c.l.b16 %v4252
    %v4560 = vunpack.c.h.b16 %v4252
    %v4561 = vunpack.c.l.b16 %v4253
    %v4562 = vunpack.c.h.b16 %v4253
    %v4563 = vunpack.c.l.b16 %v4254
    %v4564 = vunpack.c.h.b16 %v4254
    %v4565 = vunpack.c.l.b16 %v4255
    %v4566 = vunpack.c.h.b16 %v4255
    %v4567 = vunpack.c.l.b16 %v4256
    %v4568 = vunpack.c.h.b16 %v4256
    %v4569 = vunpack.c.l.b16 %v4257
    %v4570 = vunpack.c.h.b16 %v4257
    %v4571 = vunpack.c.l.b16 %v4258
    %v4572 = vunpack.c.h.b16 %v4258
    %v4573 = vunpack.c.l.b16 %v4259
    %v4574 = vunpack.c.h.b16 %v4259
    %v4575 = vunpack.c.l.b16 %v4260
    %v4576 = vunpack.c.h.b16 %v4260
    %v4577 = vunpack.c.l.b16 %v4261
    %v4578 = vunpack.c.h.b16 %v4261
    %v4579 = vunpack.c.l.b16 %v4262
    %v4580 = vunpack.c.h.b16 %v4262
    %v4581 = vunpack.c.l.b16 %v4263
    %v4582 = vunpack.c.h.b16 %v4263
    %v4583 = vunpack.c.l.b16 %v4264
    %v4584 = vunpack.c.h.b16 %v4264
    %v4585 = vpack.c.b16 %v4399, %v4393
    %v4586 = vpack.c.b16 %v4400, %v4394
    %v4587 = vpack.c.b16 %v4401, %v4395
    %v4588 = vpack.c.b16 %v4402, %v4396
    %v4589 = vpack.c.b16 %v4403, %v4397
    %v4590 = vpack.c.b16 %v4404, %v4398
    %v4591 = vpack.c.b16 %v4411, %v4405
    %v4592 = vpack.c.b16 %v4412, %v4406
    %v4593 = vpack.c.b16 %v4413, %v4407
    %v4594 = vpack.c.b16 %v4414, %v4408
    %v4595 = vpack.c.b16 %v4415, %v4409
    %v4596 = vpack.c.b16 %v4416, %v4410
    %v4597 = vpack.c.b16 %v4423, %v4417
    %v4598 = vpack.c.b16 %v4424, %v4418
    %v4599 = vpack.c.b16 %v4425, %v4419
    %v4600 = vpack.c.b16 %v4426, %v4420
    %v4601 = vpack.c.b16 %v4427, %v4421
    %v4602 = vpack.c.b16 %v4428, %v4422
    %v4603 = vpack.c.b16 %v4435, %v4429
    %v4604 = vpack.c.b16 %v4436, %v4430
    %v4605 = vpack.c.b16 %v4437, %v4431
    %v4606 = vpack.c.b16 %v4438, %v4432
    %v4607 = vpack.c.b16 %v4439, %v4433
    %v4608 = vpack.c.b16 %v4440, %v4434
    %v4609 = vpack.c.b16 %v4447, %v4441
    %v4610 = vpack.c.b16 %v4448, %v4442
    %v4611 = vpack.c.b16 %v4449, %v4443
    %v4612 = vpack.c.b16 %v4450, %v4444
    %v4613 = vpack.c.b16 %v4451, %v4445
    %v4614 = vpack.c.b16 %v4452, %v4446
    %v4615 = vpack.c.b16 %v4459, %v4453
    %v4616 = vpack.c.b16 %v4460, %v4454
    %v4617 = vpack.c.b16 %v4461, %v4455
    %v4618 = vpack.c.b16 %v4462, %v4456
    %v4619 = vpack.c.b16 %v4463, %v4457
    %v4620 = vpack.c.b16 %v4464, %v4458
    %v4621 = vpack.c.b16 %v4471, %v4465
    %v4622 = vpack.c.b16 %v4472, %v4466
    %v4623 = vpack.c.b16 %v4473, %v4467
    %v4624 = vpack.c.b16 %v4474, %v4468
    %v4625 = vpack.c.b16 %v4475, %v4469
    %v4626 = vpack.c.b16 %v4476, %v4470
    %v4627 = vpack.c.b16 %v4483, %v4477
    %v4628 = vpack.c.b16 %v4484, %v4478
    %v4629 = vpack.c.b16 %v4485, %v4479
    %v4630 = vpack.c.b16 %v4486, %v4480
    %v4631 = vpack.c.b16 %v4487, %v4481
    %v4632 = vpack.c.b16 %v4488, %v4482
    %v4633 = vpack.c.b16 %v4495, %v4489
    %v4634 = vpack.c.b16 %v4496, %v4490
    %v4635 = vpack.c.b16 %v4497, %v4491
    %v4636 = vpack.c.b16 %v4498, %v4492
    %v4637 = vpack.c.b16 %v4499, %v4493
    %v4638 = vpack.c.b16 %v4500, %v4494
    %v4639 = vpack.c.b16 %v4507, %v4501
    %v4640 = vpack.c.b16 %v4508, %v4502
    %v4641 = vpack.c.b16 %v4509, %v4503
    %v4642 = vpack.c.b16 %v4510, %v4504
    %v4643 = vpack.c.b16 %v4511, %v4505
    %v4644 = vpack.c.b16 %v4512, %v4506
    %v4645 = vpack.c.b16 %v4519, %v4513
    %v4646 = vpack.c.b16 %v4520, %v4514
    %v4647 = vpack.c.b16 %v4521, %v4515
    %v4648 = vpack.c.b16 %v4522, %v4516
    %v4649 = vpack.c.b16 %v4523, %v4517
    %v4650 = vpack.c.b16 %v4524, %v4518
    %v4651 = vpack.c.b16 %v4531, %v4525
    %v4652 = vpack.c.b16 %v4532, %v4526
    %v4653 = vpack.c.b16 %v4533, %v4527
    %v4654 = vpack.c.b16 %v4534, %v4528
    %v4655 = vpack.c.b16 %v4535, %v4529
    %v4656 = vpack.c.b16 %v4536, %v4530
    %v4657 = vpack.c.b16 %v4543, %v4537
    %v4658 = vpack.c.b16 %v4544, %v4538
    %v4659 = vpack.c.b16 %v4545, %v4539
    %v4660 = vpack.c.b16 %v4546, %v4540
    %v4661 = vpack.c.b16 %v4547, %v4541
    %v4662 = vpack.c.b16 %v4548, %v4542
    %v4663 = vpack.c.b16 %v4555, %v4549
    %v4664 = vpack.c.b16 %v4556, %v4550
    %v4665 = vpack.c.b16 %v4557, %v4551
    %v4666 = vpack.c.b16 %v4558, %v4552
    %v4667 = vpack.c.b16 %v4559, %v4553
    %v4668 = vpack.c.b16 %v4560, %v4554
    %v4669 = vpack.c.b16 %v4567, %v4561
    %v4670 = vpack.c.b16 %v4568, %v4562
    %v4671 = vpack.c.b16 %v4569, %v4563
    %v4672 = vpack.c.b16 %v4570, %v4564
    %v4673 = vpack.c.b16 %v4571, %v4565
    %v4674 = vpack.c.b16 %v4572, %v4566
    %v4675 = vpack.c.b16 %v4579, %v4573
    %v4676 = vpack.c.b16 %v4580, %v4574
    %v4677 = vpack.c.b16 %v4581, %v4575
    %v4678 = vpack.c.b16 %v4582, %v4576
    %v4679 = vpack.c.b16 %v4583, %v4577
    %v4680 = vpack.c.b16 %v4584, %v4578
    %4777 = vmatprep.subr.bf16.mxu0 %v4586
    %4778 = vmatpush1.bf16.msra.mxu0 %v4585
    %4779 = vmatprep.subr.bf16.mxu0 %v4592
    %4780 = vmatpush1.bf16.msra.mxu0 %v4591
    %4781 = vmatprep.subr.bf16.mxu0 %v4598
    %4782 = vmatpush1.bf16.msra.mxu0 %v4597
    %4783 = vmatprep.subr.bf16.mxu0 %v4604
    %4784 = vmatpush1.bf16.msra.mxu0 %v4603
    %4785 = vmatprep.subr.bf16.mxu0 %v4610
    %4786 = vmatpush1.bf16.msra.mxu0 %v4609
    %4787 = vmatprep.subr.bf16.mxu0 %v4616
    %4788 = vmatpush1.bf16.msra.mxu0 %v4615
    %4789 = vmatprep.subr.bf16.mxu0 %v4622
    %4790 = vmatpush1.bf16.msra.mxu0 %v4621
    %4791 = vmatprep.subr.bf16.mxu0 %v4628
    %4792 = vmatpush1.bf16.msra.mxu0 %v4627
    %4793 = vmatprep.subr.bf16.mxu0 %v4634
    %4794 = vmatpush1.bf16.msra.mxu0 %v4633
    %4795 = vmatprep.subr.bf16.mxu0 %v4640
    %4796 = vmatpush1.bf16.msra.mxu0 %v4639
    %4797 = vmatprep.subr.bf16.mxu0 %v4646
    %4798 = vmatpush1.bf16.msra.mxu0 %v4645
    %4799 = vmatprep.subr.bf16.mxu0 %v4652
    %4800 = vmatpush1.bf16.msra.mxu0 %v4651
    %4801 = vmatprep.subr.bf16.mxu0 %v4658
    %4802 = vmatpush1.bf16.msra.mxu0 %v4657
    %4803 = vmatprep.subr.bf16.mxu0 %v4664
    %4804 = vmatpush1.bf16.msra.mxu0 %v4663
    %4805 = vmatprep.subr.bf16.mxu0 %v4670
    %4806 = vmatpush1.bf16.msra.mxu0 %v4669
    %4807 = vmatprep.subr.bf16.mxu0 %v4676
    %4808 = vmatpush1.bf16.msra.mxu0 %v4675
    %4809 = vmatprep.mubr.bf16.mxu0 %v4168
    %4810 = vmatmul.mubr.bf16.gmra.mrb[0].mxu0 %v4167
    %v4811 = vpop.f32.mrb[0].mxu0
    %v4812 = vadd.f32 %v4270, %v4811
    %v4813 = vpop.f32.mrb[0].mxu0
    %v4814 = vadd.f32 %v4274, %v4813
    %v4815 = vpop.f32.mrb[0].mxu0
    %v4816 = vpop.f32.mrb[0].mxu0
    %4817 = vdwg.mxu0
    %4818 = vmatprep.subr.bf16.mxu0 %v4588
    %4819 = vmatpush1.bf16.msra.mxu0 %v4587
    %4820 = vmatprep.subr.bf16.mxu0 %v4594
    %4821 = vmatpush1.bf16.msra.mxu0 %v4593
    %4822 = vmatprep.subr.bf16.mxu0 %v4600
    %4823 = vmatpush1.bf16.msra.mxu0 %v4599
    %4824 = vmatprep.subr.bf16.mxu0 %v4606
    %4825 = vmatpush1.bf16.msra.mxu0 %v4605
    %4826 = vmatprep.subr.bf16.mxu0 %v4612
    %4827 = vmatpush1.bf16.msra.mxu0 %v4611
    %4828 = vmatprep.subr.bf16.mxu0 %v4618
    %4829 = vmatpush1.bf16.msra.mxu0 %v4617
    %4830 = vmatprep.subr.bf16.mxu0 %v4624
    %4831 = vmatpush1.bf16.msra.mxu0 %v4623
    %4832 = vmatprep.subr.bf16.mxu0 %v4630
    %4833 = vmatpush1.bf16.msra.mxu0 %v4629
    %4834 = vmatprep.subr.bf16.mxu0 %v4636
    %4835 = vmatpush1.bf16.msra.mxu0 %v4635
    %4836 = vmatprep.subr.bf16.mxu0 %v4642
    %4837 = vmatpush1.bf16.msra.mxu0 %v4641
    %4838 = vmatprep.subr.bf16.mxu0 %v4648
    %4839 = vmatpush1.bf16.msra.mxu0 %v4647
    %4840 = vmatprep.subr.bf16.mxu0 %v4654
    %4841 = vmatpush1.bf16.msra.mxu0 %v4653
    %4842 = vmatprep.subr.bf16.mxu0 %v4660
    %4843 = vmatpush1.bf16.msra.mxu0 %v4659
    %4844 = vmatprep.subr.bf16.mxu0 %v4666
    %4845 = vmatpush1.bf16.msra.mxu0 %v4665
    %4846 = vmatprep.subr.bf16.mxu0 %v4672
    %4847 = vmatpush1.bf16.msra.mxu0 %v4671
    %4848 = vmatprep.subr.bf16.mxu0 %v4678
    %4849 = vmatpush1.bf16.msra.mxu0 %v4677
    %4850 = vmatprep.mubr.bf16.mxu0 %v4168
    %4851 = vmatmul.mubr.bf16.gmra.mrb[0].mxu0 %v4167
    %v4852 = vpop.f32.mrb[0].mxu0
    %v4853 = vadd.f32 %v4278, %v4852
    %v4854 = vpop.f32.mrb[0].mxu0
    %v4855 = vadd.f32 %v4282, %v4854
    %v4856 = vpop.f32.mrb[0].mxu0
    %v4857 = vpop.f32.mrb[0].mxu0
    %4858 = vdwg.mxu0
    %4859 = vmatprep.subr.bf16.mxu0 %v4590
    %4860 = vmatpush1.bf16.msra.mxu0 %v4589
    %4861 = vmatprep.subr.bf16.mxu0 %v4596
    %4862 = vmatpush1.bf16.msra.mxu0 %v4595
    %4863 = vmatprep.subr.bf16.mxu0 %v4602
    %4864 = vmatpush1.bf16.msra.mxu0 %v4601
    %4865 = vmatprep.subr.bf16.mxu0 %v4608
    %4866 = vmatpush1.bf16.msra.mxu0 %v4607
    %4867 = vmatprep.subr.bf16.mxu0 %v4614
    %4868 = vmatpush1.bf16.msra.mxu0 %v4613
    %4869 = vmatprep.subr.bf16.mxu0 %v4620
    %4870 = vmatpush1.bf16.msra.mxu0 %v4619
    %4871 = vmatprep.subr.bf16.mxu0 %v4626
    %4872 = vmatpush1.bf16.msra.mxu0 %v4625
    %4873 = vmatprep.subr.bf16.mxu0 %v4632
    %4874 = vmatpush1.bf16.msra.mxu0 %v4631
    %4875 = vmatprep.subr.bf16.mxu0 %v4638
    %4876 = vmatpush1.bf16.msra.mxu0 %v4637
    %4877 = vmatprep.subr.bf16.mxu0 %v4644
    %4878 = vmatpush1.bf16.msra.mxu0 %v4643
    %4879 = vmatprep.subr.bf16.mxu0 %v4650
    %4880 = vmatpush1.bf16.msra.mxu0 %v4649
    %4881 = vmatprep.subr.bf16.mxu0 %v4656
    %4882 = vmatpush1.bf16.msra.mxu0 %v4655
    %4883 = vmatprep.subr.bf16.mxu0 %v4662
    %4884 = vmatpush1.bf16.msra.mxu0 %v4661
    %4885 = vmatprep.subr.bf16.mxu0 %v4668
    %4886 = vmatpush1.bf16.msra.mxu0 %v4667
    %4887 = vmatprep.subr.bf16.mxu0 %v4674
    %4888 = vmatpush1.bf16.msra.mxu0 %v4673
    %4889 = vmatprep.subr.bf16.mxu0 %v4680
    %4890 = vmatpush1.bf16.msra.mxu0 %v4679
    %4891 = vmatprep.mubr.bf16.mxu0 %v4168
    %4892 = vmatmul.mubr.bf16.gmra.mrb[0].mxu0 %v4167
    %v4893 = vpop.f32.mrb[0].mxu0
    %v4894 = vadd.f32 %v4286, %v4893
    %v4895 = vpop.f32.mrb[0].mxu0
    %v4896 = vadd.f32 %v4290, %v4895
    %v4897 = vpop.f32.mrb[0].mxu0
    %v4898 = vpop.f32.mrb[0].mxu0
    %4899 = vdwg.mxu0
    %v4900 = vadd.f32 %v4161, %v4812
    %v4901 = vadd.f32 %v4162, %v4814
    %v4902 = vxor.u32 %v4900, 2147483648
    %v4903 = vxor.u32 %v4901, 2147483648
    %v4904 = vmul.f32 %v4902, 1.442695
    %v4905 = vpow.pop %v4904
    %v4906 = vmul.f32 %v4903, 1.442695
    %v4907 = vpow.pop %v4906
    %v4908 = vadd.f32 %v4905, 1.0
    %v4909 = vadd.f32 %v4907, 1.0
    %v4910 = vrcp.pop %v4908
    %v4911 = vmul.f32 1.0, %v4910
    %v4912 = vrcp.pop %v4909
    %v4913 = vmul.f32 1.0, %v4912
    %v4914 = vadd.f32 %v4163, %v4853
    %v4915 = vadd.f32 %v4164, %v4855
    %v4916 = vxor.u32 %v4914, 2147483648
    %v4917 = vxor.u32 %v4915, 2147483648
    %v4918 = vmul.f32 %v4916, 1.442695
    %v4919 = vpow.pop %v4918
    %v4920 = vmul.f32 %v4917, 1.442695
    %v4921 = vpow.pop %v4920
    %v4922 = vadd.f32 %v4919, 1.0
    %v4923 = vadd.f32 %v4921, 1.0
    %v4924 = vrcp.pop %v4922
    %v4925 = vmul.f32 1.0, %v4924
    %v4926 = vrcp.pop %v4923
    %v4927 = vmul.f32 1.0, %v4926
    %v4928 = vmul.f32 %v4911, %v4894
    %v4929 = vmul.f32 %v4913, %v4896
    %v4930 = vadd.f32 %v4165, %v4928
    %v4931 = vadd.f32 %v4166, %v4929
    %v4932 = vtanh.pop %v4930
    %v4933 = vtanh.pop %v4931
    %v4934 = vsub.f32 1.0, %v4925
    %v4935 = vsub.f32 1.0, %v4927
    %v4936 = vmul.f32 %v4934, %v4932
    %v4937 = vmul.f32 %v4935, %v4933
    %v4938 = vmul.f32 %v4925, %v4157
    %v4939 = vmul.f32 %v4927, %v4158
    %v4940 = vadd.f32 %v4936, %v4938
    %v4941 = vadd.f32 %v4937, %v4939
    %4942 = vst [vmem:[#allocation3 + $0x40] sm:$0xff] %v4940
    %4943 = vst [vmem:[#allocation3 + $0x48] sm:$0xff] %v4941
    %v4944 = vld [vmem:[#allocation2 + $0xf0] sm:$0xff]
    %v4945 = vld [vmem:[#allocation2 + $0xf8] sm:$0xff]
    %v4946 = vld [vmem:[#allocation2 + $0x100] sm:$0xff]
    %v4947 = vld [vmem:[#allocation2 + $0x108] sm:$0xff]
    %v4948 = vld [vmem:[#allocation2 + $0x110] sm:$0xff]
    %v4949 = vld [vmem:[#allocation2 + $0x118] sm:$0xff]
    %v4950 = vpack.c.bf16 %v4940, %v4940
    %v4951 = vpack.c.bf16 %v4941, %v4941
    %v4952 = vld [vmem:[#allocation10] sm:$0xff]
    %v4953 = vld [vmem:[#allocation10 + $0x8] sm:$0xff]
    %v4954 = vld [vmem:[#allocation10 + $0x10] sm:$0xff]
    %v4955 = vld [vmem:[#allocation10 + $0x18] sm:$0xff]
    %v4956 = vld [vmem:[#allocation10 + $0x20] sm:$0xff]
    %v4957 = vld [vmem:[#allocation10 + $0x28] sm:$0xff]
    %v4958 = vld [vmem:[#allocation10 + $0x30] sm:$0xff]
    %v4959 = vld [vmem:[#allocation10 + $0x38] sm:$0xff]
    %v4960 = vld [vmem:[#allocation10 + $0x40] sm:$0xff]
    %v4961 = vld [vmem:[#allocation10 + $0x48] sm:$0xff]
    %v4962 = vld [vmem:[#allocation10 + $0x50] sm:$0xff]
    %v4963 = vld [vmem:[#allocation10 + $0x58] sm:$0xff]
    %v4964 = vld [vmem:[#allocation10 + $0x60] sm:$0xff]
    %v4965 = vld [vmem:[#allocation10 + $0x68] sm:$0xff]
    %v4966 = vld [vmem:[#allocation10 + $0x70] sm:$0xff]
    %v4967 = vld [vmem:[#allocation10 + $0x78] sm:$0xff]
    %v4968 = vld [vmem:[#allocation10 + $0x80] sm:$0xff]
    %v4969 = vld [vmem:[#allocation10 + $0x88] sm:$0xff]
    %v4970 = vld [vmem:[#allocation10 + $0x90] sm:$0xff]
    %v4971 = vld [vmem:[#allocation10 + $0x98] sm:$0xff]
    %v4972 = vld [vmem:[#allocation10 + $0xa0] sm:$0xff]
    %v4973 = vld [vmem:[#allocation10 + $0xa8] sm:$0xff]
    %v4974 = vld [vmem:[#allocation10 + $0xb0] sm:$0xff]
    %v4975 = vld [vmem:[#allocation10 + $0xb8] sm:$0xff]
    %v4976 = vld [vmem:[#allocation10 + $0xc0] sm:$0xff]
    %v4977 = vld [vmem:[#allocation10 + $0xc8] sm:$0xff]
    %v4978 = vld [vmem:[#allocation10 + $0xd0] sm:$0xff]
    %v4979 = vld [vmem:[#allocation10 + $0xd8] sm:$0xff]
    %v4980 = vld [vmem:[#allocation10 + $0xe0] sm:$0xff]
    %v4981 = vld [vmem:[#allocation10 + $0xe8] sm:$0xff]
    %v4982 = vld [vmem:[#allocation10 + $0xf0] sm:$0xff]
    %v4983 = vld [vmem:[#allocation10 + $0xf8] sm:$0xff]
    %v4984 = vld [vmem:[#allocation10 + $0x100] sm:$0xff]
    %v4985 = vld [vmem:[#allocation10 + $0x108] sm:$0xff]
    %v4986 = vld [vmem:[#allocation10 + $0x110] sm:$0xff]
    %v4987 = vld [vmem:[#allocation10 + $0x118] sm:$0xff]
    %v4988 = vld [vmem:[#allocation10 + $0x120] sm:$0xff]
    %v4989 = vld [vmem:[#allocation10 + $0x128] sm:$0xff]
    %v4990 = vld [vmem:[#allocation10 + $0x130] sm:$0xff]
    %v4991 = vld [vmem:[#allocation10 + $0x138] sm:$0xff]
    %v4992 = vld [vmem:[#allocation10 + $0x140] sm:$0xff]
    %v4993 = vld [vmem:[#allocation10 + $0x148] sm:$0xff]
    %v4994 = vld [vmem:[#allocation10 + $0x150] sm:$0xff]
    %v4995 = vld [vmem:[#allocation10 + $0x158] sm:$0xff]
    %v4996 = vld [vmem:[#allocation10 + $0x160] sm:$0xff]
    %v4997 = vld [vmem:[#allocation10 + $0x168] sm:$0xff]
    %v4998 = vld [vmem:[#allocation10 + $0x170] sm:$0xff]
    %v4999 = vld [vmem:[#allocation10 + $0x178] sm:$0xff]
    %v5000 = vld [vmem:[#allocation10 + $0x180] sm:$0xff]
    %v5001 = vld [vmem:[#allocation10 + $0x188] sm:$0xff]
    %v5002 = vld [vmem:[#allocation10 + $0x190] sm:$0xff]
    %v5003 = vld [vmem:[#allocation10 + $0x198] sm:$0xff]
    %v5004 = vld [vmem:[#allocation10 + $0x1a0] sm:$0xff]
    %v5005 = vld [vmem:[#allocation10 + $0x1a8] sm:$0xff]
    %v5006 = vld [vmem:[#allocation10 + $0x1b0] sm:$0xff]
    %v5007 = vld [vmem:[#allocation10 + $0x1b8] sm:$0xff]
    %v5008 = vld [vmem:[#allocation10 + $0x1c0] sm:$0xff]
    %v5009 = vld [vmem:[#allocation10 + $0x1c8] sm:$0xff]
    %v5010 = vld [vmem:[#allocation10 + $0x1d0] sm:$0xff]
    %v5011 = vld [vmem:[#allocation10 + $0x1d8] sm:$0xff]
    %v5012 = vld [vmem:[#allocation10 + $0x1e0] sm:$0xff]
    %v5013 = vld [vmem:[#allocation10 + $0x1e8] sm:$0xff]
    %v5014 = vld [vmem:[#allocation10 + $0x1f0] sm:$0xff]
    %v5015 = vld [vmem:[#allocation10 + $0x1f8] sm:$0xff]
    %v5016 = vld [vmem:[#allocation10 + $0x200] sm:$0xff]
    %v5017 = vld [vmem:[#allocation10 + $0x208] sm:$0xff]
    %v5018 = vld [vmem:[#allocation10 + $0x210] sm:$0xff]
    %v5019 = vld [vmem:[#allocation10 + $0x218] sm:$0xff]
    %v5020 = vld [vmem:[#allocation10 + $0x220] sm:$0xff]
    %v5021 = vld [vmem:[#allocation10 + $0x228] sm:$0xff]
    %v5022 = vld [vmem:[#allocation10 + $0x230] sm:$0xff]
    %v5023 = vld [vmem:[#allocation10 + $0x238] sm:$0xff]
    %v5024 = vld [vmem:[#allocation10 + $0x240] sm:$0xff]
    %v5025 = vld [vmem:[#allocation10 + $0x248] sm:$0xff]
    %v5026 = vld [vmem:[#allocation10 + $0x250] sm:$0xff]
    %v5027 = vld [vmem:[#allocation10 + $0x258] sm:$0xff]
    %v5028 = vld [vmem:[#allocation10 + $0x260] sm:$0xff]
    %v5029 = vld [vmem:[#allocation10 + $0x268] sm:$0xff]
    %v5030 = vld [vmem:[#allocation10 + $0x270] sm:$0xff]
    %v5031 = vld [vmem:[#allocation10 + $0x278] sm:$0xff]
    %v5032 = vld [vmem:[#allocation10 + $0x280] sm:$0xff]
    %v5033 = vld [vmem:[#allocation10 + $0x288] sm:$0xff]
    %v5034 = vld [vmem:[#allocation10 + $0x290] sm:$0xff]
    %v5035 = vld [vmem:[#allocation10 + $0x298] sm:$0xff]
    %v5036 = vld [vmem:[#allocation10 + $0x2a0] sm:$0xff]
    %v5037 = vld [vmem:[#allocation10 + $0x2a8] sm:$0xff]
    %v5038 = vld [vmem:[#allocation10 + $0x2b0] sm:$0xff]
    %v5039 = vld [vmem:[#allocation10 + $0x2b8] sm:$0xff]
    %v5040 = vld [vmem:[#allocation10 + $0x2c0] sm:$0xff]
    %v5041 = vld [vmem:[#allocation10 + $0x2c8] sm:$0xff]
    %v5042 = vld [vmem:[#allocation10 + $0x2d0] sm:$0xff]
    %v5043 = vld [vmem:[#allocation10 + $0x2d8] sm:$0xff]
    %v5044 = vld [vmem:[#allocation10 + $0x2e0] sm:$0xff]
    %v5045 = vld [vmem:[#allocation10 + $0x2e8] sm:$0xff]
    %v5046 = vld [vmem:[#allocation10 + $0x2f0] sm:$0xff]
    %v5047 = vld [vmem:[#allocation10 + $0x2f8] sm:$0xff]
    %v5048 = vld [vmem:[%s8] sm:$0x3f]
    %v5050 = vlaneseq
    %v5051 = vshrl.u32 %v5050, 7
    %v5052 = vsub.s32 0, %v5051
    %v5053 = vrot.slane %v5048, %v5052
    %v5054 = vlaneseq
    %v5055 = vshrl.u32 %v5054, 7
    %v5056 = vsub.s32 1, %v5055
    %v5057 = vrot.slane %v5048, %v5056
    %v5058 = vlaneseq
    %v5059 = vshrl.u32 %v5058, 7
    %v5060 = vsub.s32 2, %v5059
    %v5061 = vrot.slane %v5048, %v5060
    %v5062 = vlaneseq
    %v5063 = vshrl.u32 %v5062, 7
    %v5064 = vsub.s32 3, %v5063
    %v5065 = vrot.slane %v5048, %v5064
    %v5066 = vlaneseq
    %v5067 = vshrl.u32 %v5066, 7
    %v5068 = vsub.s32 4, %v5067
    %v5069 = vrot.slane %v5048, %v5068
    %v5070 = vlaneseq
    %v5071 = vshrl.u32 %v5070, 7
    %v5072 = vsub.s32 5, %v5071
    %v5073 = vrot.slane %v5048, %v5072
    %v5176 = vunpack.c.l.b16 %v4952
    %v5177 = vunpack.c.h.b16 %v4952
    %v5178 = vunpack.c.l.b16 %v4953
    %v5179 = vunpack.c.h.b16 %v4953
    %v5180 = vunpack.c.l.b16 %v4954
    %v5181 = vunpack.c.h.b16 %v4954
    %v5182 = vunpack.c.l.b16 %v4955
    %v5183 = vunpack.c.h.b16 %v4955
    %v5184 = vunpack.c.l.b16 %v4956
    %v5185 = vunpack.c.h.b16 %v4956
    %v5186 = vunpack.c.l.b16 %v4957
    %v5187 = vunpack.c.h.b16 %v4957
    %v5188 = vunpack.c.l.b16 %v4958
    %v5189 = vunpack.c.h.b16 %v4958
    %v5190 = vunpack.c.l.b16 %v4959
    %v5191 = vunpack.c.h.b16 %v4959
    %v5192 = vunpack.c.l.b16 %v4960
    %v5193 = vunpack.c.h.b16 %v4960
    %v5194 = vunpack.c.l.b16 %v4961
    %v5195 = vunpack.c.h.b16 %v4961
    %v5196 = vunpack.c.l.b16 %v4962
    %v5197 = vunpack.c.h.b16 %v4962
    %v5198 = vunpack.c.l.b16 %v4963
    %v5199 = vunpack.c.h.b16 %v4963
    %v5200 = vunpack.c.l.b16 %v4964
    %v5201 = vunpack.c.h.b16 %v4964
    %v5202 = vunpack.c.l.b16 %v4965
    %v5203 = vunpack.c.h.b16 %v4965
    %v5204 = vunpack.c.l.b16 %v4966
    %v5205 = vunpack.c.h.b16 %v4966
    %v5206 = vunpack.c.l.b16 %v4967
    %v5207 = vunpack.c.h.b16 %v4967
    %v5208 = vunpack.c.l.b16 %v4968
    %v5209 = vunpack.c.h.b16 %v4968
    %v5210 = vunpack.c.l.b16 %v4969
    %v5211 = vunpack.c.h.b16 %v4969
    %v5212 = vunpack.c.l.b16 %v4970
    %v5213 = vunpack.c.h.b16 %v4970
    %v5214 = vunpack.c.l.b16 %v4971
    %v5215 = vunpack.c.h.b16 %v4971
    %v5216 = vunpack.c.l.b16 %v4972
    %v5217 = vunpack.c.h.b16 %v4972
    %v5218 = vunpack.c.l.b16 %v4973
    %v5219 = vunpack.c.h.b16 %v4973
    %v5220 = vunpack.c.l.b16 %v4974
    %v5221 = vunpack.c.h.b16 %v4974
    %v5222 = vunpack.c.l.b16 %v4975
    %v5223 = vunpack.c.h.b16 %v4975
    %v5224 = vunpack.c.l.b16 %v4976
    %v5225 = vunpack.c.h.b16 %v4976
    %v5226 = vunpack.c.l.b16 %v4977
    %v5227 = vunpack.c.h.b16 %v4977
    %v5228 = vunpack.c.l.b16 %v4978
    %v5229 = vunpack.c.h.b16 %v4978
    %v5230 = vunpack.c.l.b16 %v4979
    %v5231 = vunpack.c.h.b16 %v4979
    %v5232 = vunpack.c.l.b16 %v4980
    %v5233 = vunpack.c.h.b16 %v4980
    %v5234 = vunpack.c.l.b16 %v4981
    %v5235 = vunpack.c.h.b16 %v4981
    %v5236 = vunpack.c.l.b16 %v4982
    %v5237 = vunpack.c.h.b16 %v4982
    %v5238 = vunpack.c.l.b16 %v4983
    %v5239 = vunpack.c.h.b16 %v4983
    %v5240 = vunpack.c.l.b16 %v4984
    %v5241 = vunpack.c.h.b16 %v4984
    %v5242 = vunpack.c.l.b16 %v4985
    %v5243 = vunpack.c.h.b16 %v4985
    %v5244 = vunpack.c.l.b16 %v4986
    %v5245 = vunpack.c.h.b16 %v4986
    %v5246 = vunpack.c.l.b16 %v4987
    %v5247 = vunpack.c.h.b16 %v4987
    %v5248 = vunpack.c.l.b16 %v4988
    %v5249 = vunpack.c.h.b16 %v4988
    %v5250 = vunpack.c.l.b16 %v4989
    %v5251 = vunpack.c.h.b16 %v4989
    %v5252 = vunpack.c.l.b16 %v4990
    %v5253 = vunpack.c.h.b16 %v4990
    %v5254 = vunpack.c.l.b16 %v4991
    %v5255 = vunpack.c.h.b16 %v4991
    %v5256 = vunpack.c.l.b16 %v4992
    %v5257 = vunpack.c.h.b16 %v4992
    %v5258 = vunpack.c.l.b16 %v4993
    %v5259 = vunpack.c.h.b16 %v4993
    %v5260 = vunpack.c.l.b16 %v4994
    %v5261 = vunpack.c.h.b16 %v4994
    %v5262 = vunpack.c.l.b16 %v4995
    %v5263 = vunpack.c.h.b16 %v4995
    %v5264 = vunpack.c.l.b16 %v4996
    %v5265 = vunpack.c.h.b16 %v4996
    %v5266 = vunpack.c.l.b16 %v4997
    %v5267 = vunpack.c.h.b16 %v4997
    %v5268 = vunpack.c.l.b16 %v4998
    %v5269 = vunpack.c.h.b16 %v4998
    %v5270 = vunpack.c.l.b16 %v4999
    %v5271 = vunpack.c.h.b16 %v4999
    %v5272 = vunpack.c.l.b16 %v5000
    %v5273 = vunpack.c.h.b16 %v5000
    %v5274 = vunpack.c.l.b16 %v5001
    %v5275 = vunpack.c.h.b16 %v5001
    %v5276 = vunpack.c.l.b16 %v5002
    %v5277 = vunpack.c.h.b16 %v5002
    %v5278 = vunpack.c.l.b16 %v5003
    %v5279 = vunpack.c.h.b16 %v5003
    %v5280 = vunpack.c.l.b16 %v5004
    %v5281 = vunpack.c.h.b16 %v5004
    %v5282 = vunpack.c.l.b16 %v5005
    %v5283 = vunpack.c.h.b16 %v5005
    %v5284 = vunpack.c.l.b16 %v5006
    %v5285 = vunpack.c.h.b16 %v5006
    %v5286 = vunpack.c.l.b16 %v5007
    %v5287 = vunpack.c.h.b16 %v5007
    %v5288 = vunpack.c.l.b16 %v5008
    %v5289 = vunpack.c.h.b16 %v5008
    %v5290 = vunpack.c.l.b16 %v5009
    %v5291 = vunpack.c.h.b16 %v5009
    %v5292 = vunpack.c.l.b16 %v5010
    %v5293 = vunpack.c.h.b16 %v5010
    %v5294 = vunpack.c.l.b16 %v5011
    %v5295 = vunpack.c.h.b16 %v5011
    %v5296 = vunpack.c.l.b16 %v5012
    %v5297 = vunpack.c.h.b16 %v5012
    %v5298 = vunpack.c.l.b16 %v5013
    %v5299 = vunpack.c.h.b16 %v5013
    %v5300 = vunpack.c.l.b16 %v5014
    %v5301 = vunpack.c.h.b16 %v5014
    %v5302 = vunpack.c.l.b16 %v5015
    %v5303 = vunpack.c.h.b16 %v5015
    %v5304 = vunpack.c.l.b16 %v5016
    %v5305 = vunpack.c.h.b16 %v5016
    %v5306 = vunpack.c.l.b16 %v5017
    %v5307 = vunpack.c.h.b16 %v5017
    %v5308 = vunpack.c.l.b16 %v5018
    %v5309 = vunpack.c.h.b16 %v5018
    %v5310 = vunpack.c.l.b16 %v5019
    %v5311 = vunpack.c.h.b16 %v5019
    %v5312 = vunpack.c.l.b16 %v5020
    %v5313 = vunpack.c.h.b16 %v5020
    %v5314 = vunpack.c.l.b16 %v5021
    %v5315 = vunpack.c.h.b16 %v5021
    %v5316 = vunpack.c.l.b16 %v5022
    %v5317 = vunpack.c.h.b16 %v5022
    %v5318 = vunpack.c.l.b16 %v5023
    %v5319 = vunpack.c.h.b16 %v5023
    %v5320 = vunpack.c.l.b16 %v5024
    %v5321 = vunpack.c.h.b16 %v5024
    %v5322 = vunpack.c.l.b16 %v5025
    %v5323 = vunpack.c.h.b16 %v5025
    %v5324 = vunpack.c.l.b16 %v5026
    %v5325 = vunpack.c.h.b16 %v5026
    %v5326 = vunpack.c.l.b16 %v5027
    %v5327 = vunpack.c.h.b16 %v5027
    %v5328 = vunpack.c.l.b16 %v5028
    %v5329 = vunpack.c.h.b16 %v5028
    %v5330 = vunpack.c.l.b16 %v5029
    %v5331 = vunpack.c.h.b16 %v5029
    %v5332 = vunpack.c.l.b16 %v5030
    %v5333 = vunpack.c.h.b16 %v5030
    %v5334 = vunpack.c.l.b16 %v5031
    %v5335 = vunpack.c.h.b16 %v5031
    %v5336 = vunpack.c.l.b16 %v5032
    %v5337 = vunpack.c.h.b16 %v5032
    %v5338 = vunpack.c.l.b16 %v5033
    %v5339 = vunpack.c.h.b16 %v5033
    %v5340 = vunpack.c.l.b16 %v5034
    %v5341 = vunpack.c.h.b16 %v5034
    %v5342 = vunpack.c.l.b16 %v5035
    %v5343 = vunpack.c.h.b16 %v5035
    %v5344 = vunpack.c.l.b16 %v5036
    %v5345 = vunpack.c.h.b16 %v5036
    %v5346 = vunpack.c.l.b16 %v5037
    %v5347 = vunpack.c.h.b16 %v5037
    %v5348 = vunpack.c.l.b16 %v5038
    %v5349 = vunpack.c.h.b16 %v5038
    %v5350 = vunpack.c.l.b16 %v5039
    %v5351 = vunpack.c.h.b16 %v5039
    %v5352 = vunpack.c.l.b16 %v5040
    %v5353 = vunpack.c.h.b16 %v5040
    %v5354 = vunpack.c.l.b16 %v5041
    %v5355 = vunpack.c.h.b16 %v5041
    %v5356 = vunpack.c.l.b16 %v5042
    %v5357 = vunpack.c.h.b16 %v5042
    %v5358 = vunpack.c.l.b16 %v5043
    %v5359 = vunpack.c.h.b16 %v5043
    %v5360 = vunpack.c.l.b16 %v5044
    %v5361 = vunpack.c.h.b16 %v5044
    %v5362 = vunpack.c.l.b16 %v5045
    %v5363 = vunpack.c.h.b16 %v5045
    %v5364 = vunpack.c.l.b16 %v5046
    %v5365 = vunpack.c.h.b16 %v5046
    %v5366 = vunpack.c.l.b16 %v5047
    %v5367 = vunpack.c.h.b16 %v5047
    %v5368 = vpack.c.b16 %v5182, %v5176
    %v5369 = vpack.c.b16 %v5183, %v5177
    %v5370 = vpack.c.b16 %v5184, %v5178
    %v5371 = vpack.c.b16 %v5185, %v5179
    %v5372 = vpack.c.b16 %v5186, %v5180
    %v5373 = vpack.c.b16 %v5187, %v5181
    %v5374 = vpack.c.b16 %v5194, %v5188
    %v5375 = vpack.c.b16 %v5195, %v5189
    %v5376 = vpack.c.b16 %v5196, %v5190
    %v5377 = vpack.c.b16 %v5197, %v5191
    %v5378 = vpack.c.b16 %v5198, %v5192
    %v5379 = vpack.c.b16 %v5199, %v5193
    %v5380 = vpack.c.b16 %v5206, %v5200
    %v5381 = vpack.c.b16 %v5207, %v5201
    %v5382 = vpack.c.b16 %v5208, %v5202
    %v5383 = vpack.c.b16 %v5209, %v5203
    %v5384 = vpack.c.b16 %v5210, %v5204
    %v5385 = vpack.c.b16 %v5211, %v5205
    %v5386 = vpack.c.b16 %v5218, %v5212
    %v5387 = vpack.c.b16 %v5219, %v5213
    %v5388 = vpack.c.b16 %v5220, %v5214
    %v5389 = vpack.c.b16 %v5221, %v5215
    %v5390 = vpack.c.b16 %v5222, %v5216
    %v5391 = vpack.c.b16 %v5223, %v5217
    %v5392 = vpack.c.b16 %v5230, %v5224
    %v5393 = vpack.c.b16 %v5231, %v5225
    %v5394 = vpack.c.b16 %v5232, %v5226
    %v5395 = vpack.c.b16 %v5233, %v5227
    %v5396 = vpack.c.b16 %v5234, %v5228
    %v5397 = vpack.c.b16 %v5235, %v5229
    %v5398 = vpack.c.b16 %v5242, %v5236
    %v5399 = vpack.c.b16 %v5243, %v5237
    %v5400 = vpack.c.b16 %v5244, %v5238
    %v5401 = vpack.c.b16 %v5245, %v5239
    %v5402 = vpack.c.b16 %v5246, %v5240
    %v5403 = vpack.c.b16 %v5247, %v5241
    %v5404 = vpack.c.b16 %v5254, %v5248
    %v5405 = vpack.c.b16 %v5255, %v5249
    %v5406 = vpack.c.b16 %v5256, %v5250
    %v5407 = vpack.c.b16 %v5257, %v5251
    %v5408 = vpack.c.b16 %v5258, %v5252
    %v5409 = vpack.c.b16 %v5259, %v5253
    %v5410 = vpack.c.b16 %v5266, %v5260
    %v5411 = vpack.c.b16 %v5267, %v5261
    %v5412 = vpack.c.b16 %v5268, %v5262
    %v5413 = vpack.c.b16 %v5269, %v5263
    %v5414 = vpack.c.b16 %v5270, %v5264
    %v5415 = vpack.c.b16 %v5271, %v5265
    %v5416 = vpack.c.b16 %v5278, %v5272
    %v5417 = vpack.c.b16 %v5279, %v5273
    %v5418 = vpack.c.b16 %v5280, %v5274
    %v5419 = vpack.c.b16 %v5281, %v5275
    %v5420 = vpack.c.b16 %v5282, %v5276
    %v5421 = vpack.c.b16 %v5283, %v5277
    %v5422 = vpack.c.b16 %v5290, %v5284
    %v5423 = vpack.c.b16 %v5291, %v5285
    %v5424 = vpack.c.b16 %v5292, %v5286
    %v5425 = vpack.c.b16 %v5293, %v5287
    %v5426 = vpack.c.b16 %v5294, %v5288
    %v5427 = vpack.c.b16 %v5295, %v5289
    %v5428 = vpack.c.b16 %v5302, %v5296
    %v5429 = vpack.c.b16 %v5303, %v5297
    %v5430 = vpack.c.b16 %v5304, %v5298
    %v5431 = vpack.c.b16 %v5305, %v5299
    %v5432 = vpack.c.b16 %v5306, %v5300
    %v5433 = vpack.c.b16 %v5307, %v5301
    %v5434 = vpack.c.b16 %v5314, %v5308
    %v5435 = vpack.c.b16 %v5315, %v5309
    %v5436 = vpack.c.b16 %v5316, %v5310
    %v5437 = vpack.c.b16 %v5317, %v5311
    %v5438 = vpack.c.b16 %v5318, %v5312
    %v5439 = vpack.c.b16 %v5319, %v5313
    %v5440 = vpack.c.b16 %v5326, %v5320
    %v5441 = vpack.c.b16 %v5327, %v5321
    %v5442 = vpack.c.b16 %v5328, %v5322
    %v5443 = vpack.c.b16 %v5329, %v5323
    %v5444 = vpack.c.b16 %v5330, %v5324
    %v5445 = vpack.c.b16 %v5331, %v5325
    %v5446 = vpack.c.b16 %v5338, %v5332
    %v5447 = vpack.c.b16 %v5339, %v5333
    %v5448 = vpack.c.b16 %v5340, %v5334
    %v5449 = vpack.c.b16 %v5341, %v5335
    %v5450 = vpack.c.b16 %v5342, %v5336
    %v5451 = vpack.c.b16 %v5343, %v5337
    %v5452 = vpack.c.b16 %v5350, %v5344
    %v5453 = vpack.c.b16 %v5351, %v5345
    %v5454 = vpack.c.b16 %v5352, %v5346
    %v5455 = vpack.c.b16 %v5353, %v5347
    %v5456 = vpack.c.b16 %v5354, %v5348
    %v5457 = vpack.c.b16 %v5355, %v5349
    %v5458 = vpack.c.b16 %v5362, %v5356
    %v5459 = vpack.c.b16 %v5363, %v5357
    %v5460 = vpack.c.b16 %v5364, %v5358
    %v5461 = vpack.c.b16 %v5365, %v5359
    %v5462 = vpack.c.b16 %v5366, %v5360
    %v5463 = vpack.c.b16 %v5367, %v5361
    %5560 = vmatprep.subr.bf16.mxu0 %v5369
    %5561 = vmatpush1.bf16.msra.mxu0 %v5368
    %5562 = vmatprep.subr.bf16.mxu0 %v5375
    %5563 = vmatpush1.bf16.msra.mxu0 %v5374
    %5564 = vmatprep.subr.bf16.mxu0 %v5381
    %5565 = vmatpush1.bf16.msra.mxu0 %v5380
    %5566 = vmatprep.subr.bf16.mxu0 %v5387
    %5567 = vmatpush1.bf16.msra.mxu0 %v5386
    %5568 = vmatprep.subr.bf16.mxu0 %v5393
    %5569 = vmatpush1.bf16.msra.mxu0 %v5392
    %5570 = vmatprep.subr.bf16.mxu0 %v5399
    %5571 = vmatpush1.bf16.msra.mxu0 %v5398
    %5572 = vmatprep.subr.bf16.mxu0 %v5405
    %5573 = vmatpush1.bf16.msra.mxu0 %v5404
    %5574 = vmatprep.subr.bf16.mxu0 %v5411
    %5575 = vmatpush1.bf16.msra.mxu0 %v5410
    %5576 = vmatprep.subr.bf16.mxu0 %v5417
    %5577 = vmatpush1.bf16.msra.mxu0 %v5416
    %5578 = vmatprep.subr.bf16.mxu0 %v5423
    %5579 = vmatpush1.bf16.msra.mxu0 %v5422
    %5580 = vmatprep.subr.bf16.mxu0 %v5429
    %5581 = vmatpush1.bf16.msra.mxu0 %v5428
    %5582 = vmatprep.subr.bf16.mxu0 %v5435
    %5583 = vmatpush1.bf16.msra.mxu0 %v5434
    %5584 = vmatprep.subr.bf16.mxu0 %v5441
    %5585 = vmatpush1.bf16.msra.mxu0 %v5440
    %5586 = vmatprep.subr.bf16.mxu0 %v5447
    %5587 = vmatpush1.bf16.msra.mxu0 %v5446
    %5588 = vmatprep.subr.bf16.mxu0 %v5453
    %5589 = vmatpush1.bf16.msra.mxu0 %v5452
    %5590 = vmatprep.subr.bf16.mxu0 %v5459
    %5591 = vmatpush1.bf16.msra.mxu0 %v5458
    %5592 = vmatprep.mubr.bf16.mxu0 %v4951
    %5593 = vmatmul.mubr.bf16.gmra.mrb[0].mxu0 %v4950
    %v5594 = vpop.f32.mrb[0].mxu0
    %v5595 = vadd.f32 %v5053, %v5594
    %v5596 = vpop.f32.mrb[0].mxu0
    %v5597 = vadd.f32 %v5057, %v5596
    %v5598 = vpop.f32.mrb[0].mxu0
    %v5599 = vpop.f32.mrb[0].mxu0
    %5600 = vdwg.mxu0
    %5601 = vmatprep.subr.bf16.mxu0 %v5371
    %5602 = vmatpush1.bf16.msra.mxu0 %v5370
    %5603 = vmatprep.subr.bf16.mxu0 %v5377
    %5604 = vmatpush1.bf16.msra.mxu0 %v5376
    %5605 = vmatprep.subr.bf16.mxu0 %v5383
    %5606 = vmatpush1.bf16.msra.mxu0 %v5382
    %5607 = vmatprep.subr.bf16.mxu0 %v5389
    %5608 = vmatpush1.bf16.msra.mxu0 %v5388
    %5609 = vmatprep.subr.bf16.mxu0 %v5395
    %5610 = vmatpush1.bf16.msra.mxu0 %v5394
    %5611 = vmatprep.subr.bf16.mxu0 %v5401
    %5612 = vmatpush1.bf16.msra.mxu0 %v5400
    %5613 = vmatprep.subr.bf16.mxu0 %v5407
    %5614 = vmatpush1.bf16.msra.mxu0 %v5406
    %5615 = vmatprep.subr.bf16.mxu0 %v5413
    %5616 = vmatpush1.bf16.msra.mxu0 %v5412
    %5617 = vmatprep.subr.bf16.mxu0 %v5419
    %5618 = vmatpush1.bf16.msra.mxu0 %v5418
    %5619 = vmatprep.subr.bf16.mxu0 %v5425
    %5620 = vmatpush1.bf16.msra.mxu0 %v5424
    %5621 = vmatprep.subr.bf16.mxu0 %v5431
    %5622 = vmatpush1.bf16.msra.mxu0 %v5430
    %5623 = vmatprep.subr.bf16.mxu0 %v5437
    %5624 = vmatpush1.bf16.msra.mxu0 %v5436
    %5625 = vmatprep.subr.bf16.mxu0 %v5443
    %5626 = vmatpush1.bf16.msra.mxu0 %v5442
    %5627 = vmatprep.subr.bf16.mxu0 %v5449
    %5628 = vmatpush1.bf16.msra.mxu0 %v5448
    %5629 = vmatprep.subr.bf16.mxu0 %v5455
    %5630 = vmatpush1.bf16.msra.mxu0 %v5454
    %5631 = vmatprep.subr.bf16.mxu0 %v5461
    %5632 = vmatpush1.bf16.msra.mxu0 %v5460
    %5633 = vmatprep.mubr.bf16.mxu0 %v4951
    %5634 = vmatmul.mubr.bf16.gmra.mrb[0].mxu0 %v4950
    %v5635 = vpop.f32.mrb[0].mxu0
    %v5636 = vadd.f32 %v5061, %v5635
    %v5637 = vpop.f32.mrb[0].mxu0
    %v5638 = vadd.f32 %v5065, %v5637
    %v5639 = vpop.f32.mrb[0].mxu0
    %v5640 = vpop.f32.mrb[0].mxu0
    %5641 = vdwg.mxu0
    %5642 = vmatprep.subr.bf16.mxu0 %v5373
    %5643 = vmatpush1.bf16.msra.mxu0 %v5372
    %5644 = vmatprep.subr.bf16.mxu0 %v5379
    %5645 = vmatpush1.bf16.msra.mxu0 %v5378
    %5646 = vmatprep.subr.bf16.mxu0 %v5385
    %5647 = vmatpush1.bf16.msra.mxu0 %v5384
    %5648 = vmatprep.subr.bf16.mxu0 %v5391
    %5649 = vmatpush1.bf16.msra.mxu0 %v5390
    %5650 = vmatprep.subr.bf16.mxu0 %v5397
    %5651 = vmatpush1.bf16.msra.mxu0 %v5396
    %5652 = vmatprep.subr.bf16.mxu0 %v5403
    %5653 = vmatpush1.bf16.msra.mxu0 %v5402
    %5654 = vmatprep.subr.bf16.mxu0 %v5409
    %5655 = vmatpush1.bf16.msra.mxu0 %v5408
    %5656 = vmatprep.subr.bf16.mxu0 %v5415
    %5657 = vmatpush1.bf16.msra.mxu0 %v5414
    %5658 = vmatprep.subr.bf16.mxu0 %v5421
    %5659 = vmatpush1.bf16.msra.mxu0 %v5420
    %5660 = vmatprep.subr.bf16.mxu0 %v5427
    %5661 = vmatpush1.bf16.msra.mxu0 %v5426
    %5662 = vmatprep.subr.bf16.mxu0 %v5433
    %5663 = vmatpush1.bf16.msra.mxu0 %v5432
    %5664 = vmatprep.subr.bf16.mxu0 %v5439
    %5665 = vmatpush1.bf16.msra.mxu0 %v5438
    %5666 = vmatprep.subr.bf16.mxu0 %v5445
    %5667 = vmatpush1.bf16.msra.mxu0 %v5444
    %5668 = vmatprep.subr.bf16.mxu0 %v5451
    %5669 = vmatpush1.bf16.msra.mxu0 %v5450
    %5670 = vmatprep.subr.bf16.mxu0 %v5457
    %5671 = vmatpush1.bf16.msra.mxu0 %v5456
    %5672 = vmatprep.subr.bf16.mxu0 %v5463
    %5673 = vmatpush1.bf16.msra.mxu0 %v5462
    %5674 = vmatprep.mubr.bf16.mxu0 %v4951
    %5675 = vmatmul.mubr.bf16.gmra.mrb[0].mxu0 %v4950
    %v5676 = vpop.f32.mrb[0].mxu0
    %v5677 = vadd.f32 %v5069, %v5676
    %v5678 = vpop.f32.mrb[0].mxu0
    %v5679 = vadd.f32 %v5073, %v5678
    %v5680 = vpop.f32.mrb[0].mxu0
    %v5681 = vpop.f32.mrb[0].mxu0
    %5682 = vdwg.mxu0
    %v5683 = vadd.f32 %v4944, %v5595
    %v5684 = vadd.f32 %v4945, %v5597
    %v5685 = vxor.u32 %v5683, 2147483648
    %v5686 = vxor.u32 %v5684, 2147483648
    %v5687 = vmul.f32 %v5685, 1.442695
    %v5688 = vpow.pop %v5687
    %v5689 = vmul.f32 %v5686, 1.442695
    %v5690 = vpow.pop %v5689
    %v5691 = vadd.f32 %v5688, 1.0
    %v5692 = vadd.f32 %v5690, 1.0
    %v5693 = vrcp.pop %v5691
    %v5694 = vmul.f32 1.0, %v5693
    %v5695 = vrcp.pop %v5692
    %v5696 = vmul.f32 1.0, %v5695
    %v5697 = vadd.f32 %v4946, %v5636
    %v5698 = vadd.f32 %v4947, %v5638
    %v5699 = vxor.u32 %v5697, 2147483648
    %v5700 = vxor.u32 %v5698, 2147483648
    %v5701 = vmul.f32 %v5699, 1.442695
    %v5702 = vpow.pop %v5701
    %v5703 = vmul.f32 %v5700, 1.442695
    %v5704 = vpow.pop %v5703
    %v5705 = vadd.f32 %v5702, 1.0
    %v5706 = vadd.f32 %v5704, 1.0
    %v5707 = vrcp.pop %v5705
    %v5708 = vmul.f32 1.0, %v5707
    %v5709 = vrcp.pop %v5706
    %v5710 = vmul.f32 1.0, %v5709
    %v5711 = vmul.f32 %v5694, %v5677
    %v5712 = vmul.f32 %v5696, %v5679
    %v5713 = vadd.f32 %v4948, %v5711
    %v5714 = vadd.f32 %v4949, %v5712
    %v5715 = vtanh.pop %v5713
    %v5716 = vtanh.pop %v5714
    %v5717 = vsub.f32 1.0, %v5708
    %v5718 = vsub.f32 1.0, %v5710
    %v5719 = vmul.f32 %v5717, %v5715
    %v5720 = vmul.f32 %v5718, %v5716
    %v5721 = vmul.f32 %v5708, %v4940
    %v5722 = vmul.f32 %v5710, %v4941
    %v5723 = vadd.f32 %v5719, %v5721
    %v5724 = vadd.f32 %v5720, %v5722
    %5725 = vst [vmem:[#allocation3 + $0x50] sm:$0xff] %v5723
    %5726 = vst [vmem:[#allocation3 + $0x58] sm:$0xff] %v5724
    %5727 = vst [vmem:[#allocation14] sm:$0xff] %v5723
    %5728 = vst [vmem:[#allocation14 + $0x8] sm:$0xff] %v5724
    %v5729 = vld [vmem:[#allocation3] sm:$0xff]
    %v5730 = vld [vmem:[#allocation3 + $0x8] sm:$0xff]
    %v5731 = vld [vmem:[#allocation3 + $0x10] sm:$0xff]
    %v5732 = vld [vmem:[#allocation3 + $0x18] sm:$0xff]
    %v5733 = vld [vmem:[#allocation3 + $0x20] sm:$0xff]
    %v5734 = vld [vmem:[#allocation3 + $0x28] sm:$0xff]
    %v5735 = vld [vmem:[#allocation3 + $0x30] sm:$0xff]
    %v5736 = vld [vmem:[#allocation3 + $0x38] sm:$0xff]
    %v5737 = vld [vmem:[#allocation3 + $0x40] sm:$0xff]
    %v5738 = vld [vmem:[#allocation3 + $0x48] sm:$0xff]
    %v5739 = vld [vmem:[#allocation3 + $0x50] sm:$0xff]
    %v5740 = vld [vmem:[#allocation3 + $0x58] sm:$0xff]
    %v5741 = vpack.c.bf16 %v5731, %v5729
    %v5742 = vpack.c.bf16 %v5732, %v5730
    %v5743 = vpack.c.bf16 %v5735, %v5733
    %v5744 = vpack.c.bf16 %v5736, %v5734
    %v5745 = vpack.c.bf16 %v5739, %v5737
    %v5746 = vpack.c.bf16 %v5740, %v5738
    %v5747 = vld [vmem:[#allocation12] sm:$0xf]
    %v5748 = vld [vmem:[#allocation12 + $0x4] sm:$0xf]
    %v5749 = vld [vmem:[#allocation12 + $0x8] sm:$0xf]
    %v5750 = vld [vmem:[#allocation12 + $0xc] sm:$0xf]
    %v5751 = vld [vmem:[#allocation12 + $0x10] sm:$0xf]
    %v5752 = vld [vmem:[#allocation12 + $0x14] sm:$0xf]
    %v5753 = vld [vmem:[#allocation12 + $0x18] sm:$0xf]
    %v5754 = vld [vmem:[#allocation12 + $0x1c] sm:$0xf]
    %v5755 = vld [vmem:[#allocation12 + $0x20] sm:$0xf]
    %v5756 = vld [vmem:[#allocation12 + $0x24] sm:$0xf]
    %v5757 = vld [vmem:[#allocation12 + $0x28] sm:$0xf]
    %v5758 = vld [vmem:[#allocation12 + $0x2c] sm:$0xf]
    %v5759 = vld [vmem:[#allocation12 + $0x30] sm:$0xf]
    %v5760 = vld [vmem:[#allocation12 + $0x34] sm:$0xf]
    %v5761 = vld [vmem:[#allocation12 + $0x38] sm:$0xf]
    %v5762 = vld [vmem:[#allocation12 + $0x3c] sm:$0xf]
    %v5763 = vld [vmem:[#allocation12 + $0x40] sm:$0xf]
    %v5764 = vld [vmem:[#allocation12 + $0x44] sm:$0xf]
    %v5765 = vld [vmem:[#allocation12 + $0x48] sm:$0xf]
    %v5766 = vld [vmem:[#allocation12 + $0x4c] sm:$0xf]
    %v5767 = vld [vmem:[#allocation12 + $0x50] sm:$0xf]
    %v5768 = vld [vmem:[#allocation12 + $0x54] sm:$0xf]
    %v5769 = vld [vmem:[#allocation12 + $0x58] sm:$0xf]
    %v5770 = vld [vmem:[#allocation12 + $0x5c] sm:$0xf]
    %v5771 = vld [vmem:[#allocation12 + $0x60] sm:$0xf]
    %v5772 = vld [vmem:[#allocation12 + $0x64] sm:$0xf]
    %v5773 = vld [vmem:[#allocation12 + $0x68] sm:$0xf]
    %v5774 = vld [vmem:[#allocation12 + $0x6c] sm:$0xf]
    %v5775 = vld [vmem:[#allocation12 + $0x70] sm:$0xf]
    %v5776 = vld [vmem:[#allocation12 + $0x74] sm:$0xf]
    %v5777 = vld [vmem:[#allocation12 + $0x78] sm:$0xf]
    %v5778 = vld [vmem:[#allocation12 + $0x7c] sm:$0xf]
    %v5779 = vld [vmem:[%s10] sm:$0x1]
    %v5781 = vlaneseq
    %v5782 = vshrl.u32 %v5781, 7
    %v5783 = vsub.s32 0, %v5782
    %v5784 = vrot.slane %v5779, %v5783
    %v5818 = vunpack.c.l.b16 %v5747
    %v5819 = vunpack.c.l.b16 %v5748
    %v5820 = vunpack.c.l.b16 %v5749
    %v5821 = vunpack.c.l.b16 %v5750
    %v5822 = vunpack.c.l.b16 %v5751
    %v5823 = vunpack.c.l.b16 %v5752
    %v5824 = vunpack.c.l.b16 %v5753
    %v5825 = vunpack.c.l.b16 %v5754
    %v5826 = vunpack.c.l.b16 %v5755
    %v5827 = vunpack.c.l.b16 %v5756
    %v5828 = vunpack.c.l.b16 %v5757
    %v5829 = vunpack.c.l.b16 %v5758
    %v5830 = vunpack.c.l.b16 %v5759
    %v5831 = vunpack.c.l.b16 %v5760
    %v5832 = vunpack.c.l.b16 %v5761
    %v5833 = vunpack.c.l.b16 %v5762
    %v5834 = vunpack.c.l.b16 %v5763
    %v5835 = vunpack.c.l.b16 %v5764
    %v5836 = vunpack.c.l.b16 %v5765
    %v5837 = vunpack.c.l.b16 %v5766
    %v5838 = vunpack.c.l.b16 %v5767
    %v5839 = vunpack.c.l.b16 %v5768
    %v5840 = vunpack.c.l.b16 %v5769
    %v5841 = vunpack.c.l.b16 %v5770
    %v5842 = vunpack.c.l.b16 %v5771
    %v5843 = vunpack.c.l.b16 %v5772
    %v5844 = vunpack.c.l.b16 %v5773
    %v5845 = vunpack.c.l.b16 %v5774
    %v5846 = vunpack.c.l.b16 %v5775
    %v5847 = vunpack.c.l.b16 %v5776
    %v5848 = vunpack.c.l.b16 %v5777
    %v5849 = vunpack.c.l.b16 %v5778
    %v5850 = vpack.c.b16 %v5819, %v5818
    %v5851 = vpack.c.b16 %v5821, %v5820
    %v5852 = vpack.c.b16 %v5823, %v5822
    %v5853 = vpack.c.b16 %v5825, %v5824
    %v5854 = vpack.c.b16 %v5827, %v5826
    %v5855 = vpack.c.b16 %v5829, %v5828
    %v5856 = vpack.c.b16 %v5831, %v5830
    %v5857 = vpack.c.b16 %v5833, %v5832
    %v5858 = vpack.c.b16 %v5835, %v5834
    %v5859 = vpack.c.b16 %v5837, %v5836
    %v5860 = vpack.c.b16 %v5839, %v5838
    %v5861 = vpack.c.b16 %v5841, %v5840
    %v5862 = vpack.c.b16 %v5843, %v5842
    %v5863 = vpack.c.b16 %v5845, %v5844
    %v5864 = vpack.c.b16 %v5847, %v5846
    %v5865 = vpack.c.b16 %v5849, %v5848
    %5882 = vmatprep.subr.bf16.mxu0 0
    %5883 = vmatpush1.bf16.msra.mxu0 %v5850
    %5884 = vmatprep.subr.bf16.mxu0 0
    %5885 = vmatpush1.bf16.msra.mxu0 %v5851
    %5886 = vmatprep.subr.bf16.mxu0 0
    %5887 = vmatpush1.bf16.msra.mxu0 %v5852
    %5888 = vmatprep.subr.bf16.mxu0 0
    %5889 = vmatpush1.bf16.msra.mxu0 %v5853
    %5890 = vmatprep.subr.bf16.mxu0 0
    %5891 = vmatpush1.bf16.msra.mxu0 %v5854
    %5892 = vmatprep.subr.bf16.mxu0 0
    %5893 = vmatpush1.bf16.msra.mxu0 %v5855
    %5894 = vmatprep.subr.bf16.mxu0 0
    %5895 = vmatpush1.bf16.msra.mxu0 %v5856
    %5896 = vmatprep.subr.bf16.mxu0 0
    %5897 = vmatpush1.bf16.msra.mxu0 %v5857
    %5898 = vmatprep.subr.bf16.mxu0 0
    %5899 = vmatpush1.bf16.msra.mxu0 %v5858
    %5900 = vmatprep.subr.bf16.mxu0 0
    %5901 = vmatpush1.bf16.msra.mxu0 %v5859
    %5902 = vmatprep.subr.bf16.mxu0 0
    %5903 = vmatpush1.bf16.msra.mxu0 %v5860
    %5904 = vmatprep.subr.bf16.mxu0 0
    %5905 = vmatpush1.bf16.msra.mxu0 %v5861
    %5906 = vmatprep.subr.bf16.mxu0 0
    %5907 = vmatpush1.bf16.msra.mxu0 %v5862
    %5908 = vmatprep.subr.bf16.mxu0 0
    %5909 = vmatpush1.bf16.msra.mxu0 %v5863
    %5910 = vmatprep.subr.bf16.mxu0 0
    %5911 = vmatpush1.bf16.msra.mxu0 %v5864
    %5912 = vmatprep.subr.bf16.mxu0 0
    %5913 = vmatpush1.bf16.msra.mxu0 %v5865
    %5914 = vmatprep.mubr.bf16.mxu0 %v5742
    %5915 = vmatmul.mubr.bf16.gmra.mrb[0].mxu0 %v5741
    %v5916 = vpop.f32.mrb[0].mxu0
    %v5917 = vadd.f32 %v5784, %v5916
    %v5918 = vpop.f32.mrb[0].mxu0
    %v5919 = vpop.f32.mrb[0].mxu0
    %v5920 = vadd.f32 %v5784, %v5919
    %v5921 = vpop.f32.mrb[0].mxu0
    %5922 = vmatprep.mubr.bf16.mxu0 %v5744
    %5923 = vmatmul.mubr.bf16.gmra.mrb[0].mxu0 %v5743
    %v5924 = vpop.f32.mrb[0].mxu0
    %v5925 = vadd.f32 %v5784, %v5924
    %v5926 = vpop.f32.mrb[0].mxu0
    %v5927 = vpop.f32.mrb[0].mxu0
    %v5928 = vadd.f32 %v5784, %v5927
    %v5929 = vpop.f32.mrb[0].mxu0
    %5930 = vmatprep.mubr.bf16.mxu0 %v5746
    %5931 = vmatmul.mubr.bf16.gmra.mrb[0].mxu0 %v5745
    %v5932 = vpop.f32.mrb[0].mxu0
    %v5933 = vadd.f32 %v5784, %v5932
    %v5934 = vpop.f32.mrb[0].mxu0
    %v5935 = vpop.f32.mrb[0].mxu0
    %v5936 = vadd.f32 %v5784, %v5935
    %v5937 = vpop.f32.mrb[0].mxu0
    %5938 = vdwg.mxu0
    %v5939 = vlaneseq
    %v5940 = vand.u32 %v5939, 127
    %vm5941 = vcmp.lt.s32.totalorder %v5940, 6
    %v5942 = vsel %vm5941, %v5917, -1e+30
    %v5943 = vsel %vm5941, %v5920, -1e+30
    %v5944 = vsel %vm5941, %v5925, -1e+30
    %v5945 = vsel %vm5941, %v5928, -1e+30
    %v5946 = vsel %vm5941, %v5933, -1e+30
    %v5947 = vsel %vm5941, %v5936, -1e+30
    %5948 = vmax.xlane.f32.xlu0 %v5942
    %v5949 = vpop.xlane.xlu0 %5948
    %5950 = vmax.xlane.f32.xlu0 %v5943
    %v5951 = vpop.xlane.xlu0 %5950
    %5952 = vmax.xlane.f32.xlu0 %v5944
    %v5953 = vpop.xlane.xlu0 %5952
    %5954 = vmax.xlane.f32.xlu0 %v5945
    %v5955 = vpop.xlane.xlu0 %5954
    %5956 = vmax.xlane.f32.xlu0 %v5946
    %v5957 = vpop.xlane.xlu0 %5956
    %5958 = vmax.xlane.f32.xlu0 %v5947
    %v5959 = vpop.xlane.xlu0 %5958
    %v5960 = vsub.f32 %v5942, %v5949
    %v5961 = vsub.f32 %v5943, %v5951
    %v5962 = vsub.f32 %v5944, %v5953
    %v5963 = vsub.f32 %v5945, %v5955
    %v5964 = vsub.f32 %v5946, %v5957
    %v5965 = vsub.f32 %v5947, %v5959
    %v5966 = vmul.f32 %v5960, 1.442695
    %v5967 = vpow.pop %v5966
    %v5968 = vmul.f32 %v5961, 1.442695
    %v5969 = vpow.pop %v5968
    %v5970 = vmul.f32 %v5962, 1.442695
    %v5971 = vpow.pop %v5970
    %v5972 = vmul.f32 %v5963, 1.442695
    %v5973 = vpow.pop %v5972
    %v5974 = vmul.f32 %v5964, 1.442695
    %v5975 = vpow.pop %v5974
    %v5976 = vmul.f32 %v5965, 1.442695
    %v5977 = vpow.pop %v5976
    %5978 = vadd.xlane.f32.xlu0 %v5967
    %v5979 = vpop.xlane.xlu0 %5978
    %5980 = vadd.xlane.f32.xlu0 %v5969
    %v5981 = vpop.xlane.xlu0 %5980
    %5982 = vadd.xlane.f32.xlu0 %v5971
    %v5983 = vpop.xlane.xlu0 %5982
    %5984 = vadd.xlane.f32.xlu0 %v5973
    %v5985 = vpop.xlane.xlu0 %5984
    %5986 = vadd.xlane.f32.xlu0 %v5975
    %v5987 = vpop.xlane.xlu0 %5986
    %5988 = vadd.xlane.f32.xlu0 %v5977
    %v5989 = vpop.xlane.xlu0 %5988
    %v5990 = vlog2.pop %v5979
    %v5991 = vmul.f32 %v5990, 0.6931472
    %v5992 = vlog2.pop %v5981
    %v5993 = vmul.f32 %v5992, 0.6931472
    %v5994 = vlog2.pop %v5983
    %v5995 = vmul.f32 %v5994, 0.6931472
    %v5996 = vlog2.pop %v5985
    %v5997 = vmul.f32 %v5996, 0.6931472
    %v5998 = vlog2.pop %v5987
    %v5999 = vmul.f32 %v5998, 0.6931472
    %v6000 = vlog2.pop %v5989
    %v6001 = vmul.f32 %v6000, 0.6931472
    %v6002 = vsub.f32 %v5960, %v5991
    %v6003 = vsub.f32 %v5961, %v5993
    %v6004 = vsub.f32 %v5962, %v5995
    %v6005 = vsub.f32 %v5963, %v5997
    %v6006 = vsub.f32 %v5964, %v5999
    %v6007 = vsub.f32 %v5965, %v6001
    %v6008 = vld [vmem:[%s1] sm:$0xff]
    %v6009 = vld [vmem:[%s1 + $0x8] sm:$0xff]
    %v6010 = vld [vmem:[%s1 + $0x10] sm:$0xff]
    %v6011 = vld [vmem:[%s1 + $0x18] sm:$0xff]
    %v6012 = vld [vmem:[%s1 + $0x20] sm:$0xff]
    %v6013 = vld [vmem:[%s1 + $0x28] sm:$0xff]
    %v6014 = vmul.f32 %v6008, %v5979
    %v6015 = vmul.f32 %v6009, %v5981
    %v6016 = vmul.f32 %v6010, %v5983
    %v6017 = vmul.f32 %v6011, %v5985
    %v6018 = vmul.f32 %v6012, %v5987
    %v6019 = vmul.f32 %v6013, %v5989
    %vm6020 = vcmp.le.s32.totalorder %v5940, 0
    %v6021 = vsel %vm6020, %v5967, 0.0
    %v6022 = vsel %vm6020, %v5969, 0.0
    %v6023 = vsel %vm6020, %v5971, 0.0
    %v6024 = vsel %vm6020, %v5973, 0.0
    %v6025 = vsel %vm6020, %v5975, 0.0
    %v6026 = vsel %vm6020, %v5977, 0.0
    %6027 = vadd.xlane.f32.xlu0 %v6021
    %v6028 = vpop.xlane.xlu0 %6027
    %6029 = vadd.xlane.f32.xlu0 %v6022
    %v6030 = vpop.xlane.xlu0 %6029
    %6031 = vadd.xlane.f32.xlu0 %v6023
    %v6032 = vpop.xlane.xlu0 %6031
    %6033 = vadd.xlane.f32.xlu0 %v6024
    %v6034 = vpop.xlane.xlu0 %6033
    %6035 = vadd.xlane.f32.xlu0 %v6025
    %v6036 = vpop.xlane.xlu0 %6035
    %6037 = vadd.xlane.f32.xlu0 %v6026
    %v6038 = vpop.xlane.xlu0 %6037
    %vm6039 = vcmp.le.f32.partialorder %v6028, %v6014
    %vm6040 = vcmp.le.f32.partialorder %v6030, %v6015
    %vm6041 = vcmp.le.f32.partialorder %v6032, %v6016
    %vm6042 = vcmp.le.f32.partialorder %v6034, %v6017
    %vm6043 = vcmp.le.f32.partialorder %v6036, %v6018
    %vm6044 = vcmp.le.f32.partialorder %v6038, %v6019
    %v6045 = vsel %vm6039, 1.0, 0.0
    %v6046 = vsel %vm6040, 1.0, 0.0
    %v6047 = vsel %vm6041, 1.0, 0.0
    %v6048 = vsel %vm6042, 1.0, 0.0
    %v6049 = vsel %vm6043, 1.0, 0.0
    %v6050 = vsel %vm6044, 1.0, 0.0
    %v6051 = vadd.f32 %v6045, 0.0
    %v6052 = vadd.f32 %v6046, 0.0
    %v6053 = vadd.f32 %v6047, 0.0
    %v6054 = vadd.f32 %v6048, 0.0
    %v6055 = vadd.f32 %v6049, 0.0
    %v6056 = vadd.f32 %v6050, 0.0
    %vm6057 = vcmp.le.s32.totalorder %v5940, 1
    %v6058 = vsel %vm6057, %v5967, 0.0
    %v6059 = vsel %vm6057, %v5969, 0.0
    %v6060 = vsel %vm6057, %v5971, 0.0
    %v6061 = vsel %vm6057, %v5973, 0.0
    %v6062 = vsel %vm6057, %v5975, 0.0
    %v6063 = vsel %vm6057, %v5977, 0.0
    %6064 = vadd.xlane.f32.xlu0 %v6058
    %v6065 = vpop.xlane.xlu0 %6064
    %6066 = vadd.xlane.f32.xlu0 %v6059
    %v6067 = vpop.xlane.xlu0 %6066
    %6068 = vadd.xlane.f32.xlu0 %v6060
    %v6069 = vpop.xlane.xlu0 %6068
    %6070 = vadd.xlane.f32.xlu0 %v6061
    %v6071 = vpop.xlane.xlu0 %6070
    %6072 = vadd.xlane.f32.xlu0 %v6062
    %v6073 = vpop.xlane.xlu0 %6072
    %6074 = vadd.xlane.f32.xlu0 %v6063
    %v6075 = vpop.xlane.xlu0 %6074
    %vm6076 = vcmp.le.f32.partialorder %v6065, %v6014
    %vm6077 = vcmp.le.f32.partialorder %v6067, %v6015
    %vm6078 = vcmp.le.f32.partialorder %v6069, %v6016
    %vm6079 = vcmp.le.f32.partialorder %v6071, %v6017
    %vm6080 = vcmp.le.f32.partialorder %v6073, %v6018
    %vm6081 = vcmp.le.f32.partialorder %v6075, %v6019
    %v6082 = vsel %vm6076, 1.0, 0.0
    %v6083 = vsel %vm6077, 1.0, 0.0
    %v6084 = vsel %vm6078, 1.0, 0.0
    %v6085 = vsel %vm6079, 1.0, 0.0
    %v6086 = vsel %vm6080, 1.0, 0.0
    %v6087 = vsel %vm6081, 1.0, 0.0
    %v6088 = vadd.f32 %v6051, %v6082
    %v6089 = vadd.f32 %v6052, %v6083
    %v6090 = vadd.f32 %v6053, %v6084
    %v6091 = vadd.f32 %v6054, %v6085
    %v6092 = vadd.f32 %v6055, %v6086
    %v6093 = vadd.f32 %v6056, %v6087
    %vm6094 = vcmp.le.s32.totalorder %v5940, 2
    %v6095 = vsel %vm6094, %v5967, 0.0
    %v6096 = vsel %vm6094, %v5969, 0.0
    %v6097 = vsel %vm6094, %v5971, 0.0
    %v6098 = vsel %vm6094, %v5973, 0.0
    %v6099 = vsel %vm6094, %v5975, 0.0
    %v6100 = vsel %vm6094, %v5977, 0.0
    %6101 = vadd.xlane.f32.xlu0 %v6095
    %v6102 = vpop.xlane.xlu0 %6101
    %6103 = vadd.xlane.f32.xlu0 %v6096
    %v6104 = vpop.xlane.xlu0 %6103
    %6105 = vadd.xlane.f32.xlu0 %v6097
    %v6106 = vpop.xlane.xlu0 %6105
    %6107 = vadd.xlane.f32.xlu0 %v6098
    %v6108 = vpop.xlane.xlu0 %6107
    %6109 = vadd.xlane.f32.xlu0 %v6099
    %v6110 = vpop.xlane.xlu0 %6109
    %6111 = vadd.xlane.f32.xlu0 %v6100
    %v6112 = vpop.xlane.xlu0 %6111
    %vm6113 = vcmp.le.f32.partialorder %v6102, %v6014
    %vm6114 = vcmp.le.f32.partialorder %v6104, %v6015
    %vm6115 = vcmp.le.f32.partialorder %v6106, %v6016
    %vm6116 = vcmp.le.f32.partialorder %v6108, %v6017
    %vm6117 = vcmp.le.f32.partialorder %v6110, %v6018
    %vm6118 = vcmp.le.f32.partialorder %v6112, %v6019
    %v6119 = vsel %vm6113, 1.0, 0.0
    %v6120 = vsel %vm6114, 1.0, 0.0
    %v6121 = vsel %vm6115, 1.0, 0.0
    %v6122 = vsel %vm6116, 1.0, 0.0
    %v6123 = vsel %vm6117, 1.0, 0.0
    %v6124 = vsel %vm6118, 1.0, 0.0
    %v6125 = vadd.f32 %v6088, %v6119
    %v6126 = vadd.f32 %v6089, %v6120
    %v6127 = vadd.f32 %v6090, %v6121
    %v6128 = vadd.f32 %v6091, %v6122
    %v6129 = vadd.f32 %v6092, %v6123
    %v6130 = vadd.f32 %v6093, %v6124
    %vm6131 = vcmp.le.s32.totalorder %v5940, 3
    %v6132 = vsel %vm6131, %v5967, 0.0
    %v6133 = vsel %vm6131, %v5969, 0.0
    %v6134 = vsel %vm6131, %v5971, 0.0
    %v6135 = vsel %vm6131, %v5973, 0.0
    %v6136 = vsel %vm6131, %v5975, 0.0
    %v6137 = vsel %vm6131, %v5977, 0.0
    %6138 = vadd.xlane.f32.xlu0 %v6132
    %v6139 = vpop.xlane.xlu0 %6138
    %6140 = vadd.xlane.f32.xlu0 %v6133
    %v6141 = vpop.xlane.xlu0 %6140
    %6142 = vadd.xlane.f32.xlu0 %v6134
    %v6143 = vpop.xlane.xlu0 %6142
    %6144 = vadd.xlane.f32.xlu0 %v6135
    %v6145 = vpop.xlane.xlu0 %6144
    %6146 = vadd.xlane.f32.xlu0 %v6136
    %v6147 = vpop.xlane.xlu0 %6146
    %6148 = vadd.xlane.f32.xlu0 %v6137
    %v6149 = vpop.xlane.xlu0 %6148
    %vm6150 = vcmp.le.f32.partialorder %v6139, %v6014
    %vm6151 = vcmp.le.f32.partialorder %v6141, %v6015
    %vm6152 = vcmp.le.f32.partialorder %v6143, %v6016
    %vm6153 = vcmp.le.f32.partialorder %v6145, %v6017
    %vm6154 = vcmp.le.f32.partialorder %v6147, %v6018
    %vm6155 = vcmp.le.f32.partialorder %v6149, %v6019
    %v6156 = vsel %vm6150, 1.0, 0.0
    %v6157 = vsel %vm6151, 1.0, 0.0
    %v6158 = vsel %vm6152, 1.0, 0.0
    %v6159 = vsel %vm6153, 1.0, 0.0
    %v6160 = vsel %vm6154, 1.0, 0.0
    %v6161 = vsel %vm6155, 1.0, 0.0
    %v6162 = vadd.f32 %v6125, %v6156
    %v6163 = vadd.f32 %v6126, %v6157
    %v6164 = vadd.f32 %v6127, %v6158
    %v6165 = vadd.f32 %v6128, %v6159
    %v6166 = vadd.f32 %v6129, %v6160
    %v6167 = vadd.f32 %v6130, %v6161
    %vm6168 = vcmp.le.s32.totalorder %v5940, 4
    %v6169 = vsel %vm6168, %v5967, 0.0
    %v6170 = vsel %vm6168, %v5969, 0.0
    %v6171 = vsel %vm6168, %v5971, 0.0
    %v6172 = vsel %vm6168, %v5973, 0.0
    %v6173 = vsel %vm6168, %v5975, 0.0
    %v6174 = vsel %vm6168, %v5977, 0.0
    %6175 = vadd.xlane.f32.xlu0 %v6169
    %v6176 = vpop.xlane.xlu0 %6175
    %6177 = vadd.xlane.f32.xlu0 %v6170
    %v6178 = vpop.xlane.xlu0 %6177
    %6179 = vadd.xlane.f32.xlu0 %v6171
    %v6180 = vpop.xlane.xlu0 %6179
    %6181 = vadd.xlane.f32.xlu0 %v6172
    %v6182 = vpop.xlane.xlu0 %6181
    %6183 = vadd.xlane.f32.xlu0 %v6173
    %v6184 = vpop.xlane.xlu0 %6183
    %6185 = vadd.xlane.f32.xlu0 %v6174
    %v6186 = vpop.xlane.xlu0 %6185
    %vm6187 = vcmp.le.f32.partialorder %v6176, %v6014
    %vm6188 = vcmp.le.f32.partialorder %v6178, %v6015
    %vm6189 = vcmp.le.f32.partialorder %v6180, %v6016
    %vm6190 = vcmp.le.f32.partialorder %v6182, %v6017
    %vm6191 = vcmp.le.f32.partialorder %v6184, %v6018
    %vm6192 = vcmp.le.f32.partialorder %v6186, %v6019
    %v6193 = vsel %vm6187, 1.0, 0.0
    %v6194 = vsel %vm6188, 1.0, 0.0
    %v6195 = vsel %vm6189, 1.0, 0.0
    %v6196 = vsel %vm6190, 1.0, 0.0
    %v6197 = vsel %vm6191, 1.0, 0.0
    %v6198 = vsel %vm6192, 1.0, 0.0
    %v6199 = vadd.f32 %v6162, %v6193
    %v6200 = vadd.f32 %v6163, %v6194
    %v6201 = vadd.f32 %v6164, %v6195
    %v6202 = vadd.f32 %v6165, %v6196
    %v6203 = vadd.f32 %v6166, %v6197
    %v6204 = vadd.f32 %v6167, %v6198
    %vm6205 = vcmp.le.s32.totalorder %v5940, 5
    %v6206 = vsel %vm6205, %v5967, 0.0
    %v6207 = vsel %vm6205, %v5969, 0.0
    %v6208 = vsel %vm6205, %v5971, 0.0
    %v6209 = vsel %vm6205, %v5973, 0.0
    %v6210 = vsel %vm6205, %v5975, 0.0
    %v6211 = vsel %vm6205, %v5977, 0.0
    %6212 = vadd.xlane.f32.xlu0 %v6206
    %v6213 = vpop.xlane.xlu0 %6212
    %6214 = vadd.xlane.f32.xlu0 %v6207
    %v6215 = vpop.xlane.xlu0 %6214
    %6216 = vadd.xlane.f32.xlu0 %v6208
    %v6217 = vpop.xlane.xlu0 %6216
    %6218 = vadd.xlane.f32.xlu0 %v6209
    %v6219 = vpop.xlane.xlu0 %6218
    %6220 = vadd.xlane.f32.xlu0 %v6210
    %v6221 = vpop.xlane.xlu0 %6220
    %6222 = vadd.xlane.f32.xlu0 %v6211
    %v6223 = vpop.xlane.xlu0 %6222
    %vm6224 = vcmp.le.f32.partialorder %v6213, %v6014
    %vm6225 = vcmp.le.f32.partialorder %v6215, %v6015
    %vm6226 = vcmp.le.f32.partialorder %v6217, %v6016
    %vm6227 = vcmp.le.f32.partialorder %v6219, %v6017
    %vm6228 = vcmp.le.f32.partialorder %v6221, %v6018
    %vm6229 = vcmp.le.f32.partialorder %v6223, %v6019
    %v6230 = vsel %vm6224, 1.0, 0.0
    %v6231 = vsel %vm6225, 1.0, 0.0
    %v6232 = vsel %vm6226, 1.0, 0.0
    %v6233 = vsel %vm6227, 1.0, 0.0
    %v6234 = vsel %vm6228, 1.0, 0.0
    %v6235 = vsel %vm6229, 1.0, 0.0
    %v6236 = vadd.f32 %v6199, %v6230
    %v6237 = vadd.f32 %v6200, %v6231
    %v6238 = vadd.f32 %v6201, %v6232
    %v6239 = vadd.f32 %v6202, %v6233
    %v6240 = vadd.f32 %v6203, %v6234
    %v6241 = vadd.f32 %v6204, %v6235
    %v6242 = vmin.f32 %v6236, 5.0
    %v6243 = vmin.f32 %v6237, 5.0
    %v6244 = vmin.f32 %v6238, 5.0
    %v6245 = vmin.f32 %v6239, 5.0
    %v6246 = vmin.f32 %v6240, 5.0
    %v6247 = vmin.f32 %v6241, 5.0
    %v6248 = vcvt.f32.s32.to.zero.pseudo %v6242
    %v6249 = vcvt.f32.s32.to.zero.pseudo %v6243
    %v6250 = vcvt.f32.s32.to.zero.pseudo %v6244
    %v6251 = vcvt.f32.s32.to.zero.pseudo %v6245
    %v6252 = vcvt.f32.s32.to.zero.pseudo %v6246
    %v6253 = vcvt.f32.s32.to.zero.pseudo %v6247
    %6254 = vset.pattern.permute.xlu0 0
    %6255 = vperm.xlu0 %6254, %v6248
    %v6256 = vpop.permute.xlu0 %6255
    %6257 = vset.pattern.permute.xlu0 0
    %6258 = vperm.xlu0 %6257, %v6249
    %v6259 = vpop.permute.xlu0 %6258
    %6260 = vset.pattern.permute.xlu0 0
    %6261 = vperm.xlu0 %6260, %v6250
    %v6262 = vpop.permute.xlu0 %6261
    %6263 = vset.pattern.permute.xlu0 0
    %6264 = vperm.xlu0 %6263, %v6251
    %v6265 = vpop.permute.xlu0 %6264
    %6266 = vset.pattern.permute.xlu0 0
    %6267 = vperm.xlu0 %6266, %v6252
    %v6268 = vpop.permute.xlu0 %6267
    %6269 = vset.pattern.permute.xlu0 0
    %6270 = vperm.xlu0 %6269, %v6253
    %v6271 = vpop.permute.xlu0 %6270
    %vm6272 = vcmp.eq.s32.totalorder %v5940, %v6256
    %vm6273 = vcmp.eq.s32.totalorder %v5940, %v6259
    %vm6274 = vcmp.eq.s32.totalorder %v5940, %v6262
    %vm6275 = vcmp.eq.s32.totalorder %v5940, %v6265
    %vm6276 = vcmp.eq.s32.totalorder %v5940, %v6268
    %vm6277 = vcmp.eq.s32.totalorder %v5940, %v6271
    %v6278 = vsel %vm6272, %v6002, 0.0
    %v6279 = vsel %vm6273, %v6003, 0.0
    %v6280 = vsel %vm6274, %v6004, 0.0
    %v6281 = vsel %vm6275, %v6005, 0.0
    %v6282 = vsel %vm6276, %v6006, 0.0
    %v6283 = vsel %vm6277, %v6007, 0.0
    %6284 = vadd.xlane.f32.xlu0 %v6278
    %v6285 = vpop.xlane.xlu0 %6284
    %6286 = vadd.xlane.f32.xlu0 %v6279
    %v6287 = vpop.xlane.xlu0 %6286
    %6288 = vadd.xlane.f32.xlu0 %v6280
    %v6289 = vpop.xlane.xlu0 %6288
    %6290 = vadd.xlane.f32.xlu0 %v6281
    %v6291 = vpop.xlane.xlu0 %6290
    %6292 = vadd.xlane.f32.xlu0 %v6282
    %v6293 = vpop.xlane.xlu0 %6292
    %6294 = vadd.xlane.f32.xlu0 %v6283
    %v6295 = vpop.xlane.xlu0 %6294
    %vm6296 = vcmp.eq.s32.totalorder %v5940, 6
    %v6297 = vsel %vm6296, %v5917, 0.0
    %v6298 = vsel %vm6296, %v5920, 0.0
    %v6299 = vsel %vm6296, %v5925, 0.0
    %v6300 = vsel %vm6296, %v5928, 0.0
    %v6301 = vsel %vm6296, %v5933, 0.0
    %v6302 = vsel %vm6296, %v5936, 0.0
    %6303 = vadd.xlane.f32.xlu0 %v6297
    %v6304 = vpop.xlane.xlu0 %6303
    %6305 = vadd.xlane.f32.xlu0 %v6298
    %v6306 = vpop.xlane.xlu0 %6305
    %6307 = vadd.xlane.f32.xlu0 %v6299
    %v6308 = vpop.xlane.xlu0 %6307
    %6309 = vadd.xlane.f32.xlu0 %v6300
    %v6310 = vpop.xlane.xlu0 %6309
    %6311 = vadd.xlane.f32.xlu0 %v6301
    %v6312 = vpop.xlane.xlu0 %6311
    %6313 = vadd.xlane.f32.xlu0 %v6302
    %v6314 = vpop.xlane.xlu0 %6313
    %vm6315 = vcmp.eq.s32.totalorder %v5940, 0
    %vm6316 = vcmp.eq.s32.totalorder %v5940, 1
    %vm6317 = vcmp.eq.s32.totalorder %v5940, 2
    %v6318 = vsel %vm6317, %v6285, 0.0
    %v6319 = vsel %vm6317, %v6287, 0.0
    %v6320 = vsel %vm6317, %v6289, 0.0
    %v6321 = vsel %vm6317, %v6291, 0.0
    %v6322 = vsel %vm6317, %v6293, 0.0
    %v6323 = vsel %vm6317, %v6295, 0.0
    %v6324 = vsel %vm6316, %v6304, %v6318
    %v6325 = vsel %vm6316, %v6306, %v6319
    %v6326 = vsel %vm6316, %v6308, %v6320
    %v6327 = vsel %vm6316, %v6310, %v6321
    %v6328 = vsel %vm6316, %v6312, %v6322
    %v6329 = vsel %vm6316, %v6314, %v6323
    %6331 = vset.pattern.permute.xlu0 0
    %6332 = vperm.xlu0 %6331, %v6242
    %v6333 = vpop.permute.xlu0 %6332
    %6336 = vset.pattern.permute.xlu0 0
    %6337 = vperm.xlu0 %6336, %v6243
    %v6338 = vpop.permute.xlu0 %6337
    %6341 = vset.pattern.permute.xlu0 0
    %6342 = vperm.xlu0 %6341, %v6244
    %v6343 = vpop.permute.xlu0 %6342
    %6346 = vset.pattern.permute.xlu0 0
    %6347 = vperm.xlu0 %6346, %v6245
    %v6348 = vpop.permute.xlu0 %6347
    %6351 = vset.pattern.permute.xlu0 0
    %6352 = vperm.xlu0 %6351, %v6246
    %v6353 = vpop.permute.xlu0 %6352
    %6356 = vset.pattern.permute.xlu0 0
    %6357 = vperm.xlu0 %6356, %v6247
    %v6358 = vpop.permute.xlu0 %6357
    %v6360 = vsel %vm6315, %v6333, %v6324
    %v6361 = vsel %vm6315, %v6338, %v6325
    %v6362 = vsel %vm6315, %v6343, %v6326
    %v6363 = vsel %vm6315, %v6348, %v6327
    %v6364 = vsel %vm6315, %v6353, %v6328
    %v6365 = vsel %vm6315, %v6358, %v6329
    %6366 = vst [vmem:[#allocation13] sm:$0xff] %v6360
    %6367 = vst [vmem:[#allocation13 + $0x8] sm:$0xff] %v6361
    %6368 = vst [vmem:[#allocation13 + $0x10] sm:$0xff] %v6362
    %6369 = vst [vmem:[#allocation13 + $0x18] sm:$0xff] %v6363
    %6370 = vst [vmem:[#allocation13 + $0x20] sm:$0xff] %v6364
    %6371 = vst [vmem:[#allocation13 + $0x28] sm:$0xff] %v6365
    // Predicated region
    $region66: #{tpu_custom_call.1} parent=1 // pred_check
      _
    $region67: #{tpu_custom_call.1} parent=1 // pred_check_branch
      %6373 = sbr.rel (0) target = $region69
    $region68: #{tpu_custom_call.1} parent=1 // pred_region
      %s6375 = ssub.s32 768, 768
      %6376 = vsyncadd [#allocation6], %s6375
      %s6377 = sshll.u32 [#allocation13], 4
      %s6378 = int_to_ptr.vmem [resolvable:$true] %s6377
      %6383 = dma.vmem_to_hbm [thread:$0]  %s6378, 768, %s11, [#allocation6], 128, 128, 8
    $region69: #{tpu_custom_call.1} parent=1 // pred_fallthru
      _
    // Predicated region
    $region70: #{tpu_custom_call.1} parent=1 // pred_check
      _
    $region71: #{tpu_custom_call.1} parent=1 // pred_check_branch
      %6385 = sbr.rel (0) target = $region73
    $region72: #{tpu_custom_call.1} parent=1 // pred_region
      %s6387 = ssub.s32 256, 256
      %6388 = vsyncadd [#allocation15], %s6387
      %s6390 = sshll.u32 [#allocation14], 4
      %s6391 = int_to_ptr.vmem [resolvable:$true] %s6390
      %6393 = dma.vmem_to_hbm [thread:$0]  %s6391, 256, %s12, [#allocation15]
    $region73: #{tpu_custom_call.1} parent=1 // pred_fallthru
      _
    // Predicated region
    $region74: #{tpu_custom_call.1} parent=1 // pred_check
      _
    $region75: #{tpu_custom_call.1} parent=1 // pred_check_branch
      %6395 = sbr.rel (0) target = $region77
    $region76: #{tpu_custom_call.1} parent=1 // pred_region
      %6396 = dma.done [#allocation6], 768
    $region77: #{tpu_custom_call.1} parent=1 // pred_fallthru
      _
    // Predicated region
    $region78: #{tpu_custom_call.1} parent=1 // pred_check
      _
    $region79: #{tpu_custom_call.1} parent=1 // pred_check_branch
      %6398 = sbr.rel (0) target = $region81
    $region80: #{tpu_custom_call.1} parent=1 // pred_region
      %6399 = dma.done [#allocation15], 256
    $region81: #{tpu_custom_call.1} parent=1 // pred_fallthru
      _
    %6400 = vsyncpa [#allocation5], 1
    %6401 = vsyncpa [#allocation8], 1
    %6402 = vsyncpa [#allocation11], 1
    %6403 = vsyncpa [#allocation6], 1
    %6404 = vsyncpa [#allocation15], 1

</llo_original>
